<compile_context>
chip_gen: v7x
topology: tpu7x:2x2x1
jax: 0.10.0
libtpu: 0.0.40
codegen_flags: <defaults>
</compile_context>

<pallas_src>
import numpy as np
import jax
import jax.numpy as jnp
from jax.experimental import pallas as pl
from jax.experimental.pallas import tpu as pltpu


# ----------------------------------------------------------------------------
# Fused whole-network kernel (one grid step == one image)
# ----------------------------------------------------------------------------
def _net_kernel(x_ref, wt1_ref, b1_ref, s1_ref, wt2_ref, b2_ref, s2_ref,
                w1_ref, fb1_ref, w2_ref, fb2_ref, w3_ref, fb3_ref, o_ref):
    f32 = jnp.float32
    bf16 = jnp.bfloat16

    def conv_relu_pool(xin, wt_ref, s_ref, b_ref, kh, hp, half):
        """xin: (Hin, Win*Cin) bf16 -> pooled activations (hp, half) bf16."""
        ho = 2 * hp
        # 5x5 conv as 5 banded matmuls (one per kernel row ky), f32 accumulation.
        acc = jnp.dot(xin[0:ho, :], wt_ref[0], preferred_element_type=f32)
        for ky in range(1, kh):
            acc = acc + jnp.dot(xin[ky:ky + ho, :], wt_ref[ky],
                                preferred_element_type=f32)
        # Height pool: 0/1 selection matmul gathers (even rows | odd rows), then max.
        y = jnp.dot(s_ref[...], acc.astype(bf16), preferred_element_type=f32)
        rowp = jnp.maximum(y[:hp, :], y[hp:, :])
        # Width pool: dx=0 / dx=1 column halves (ordering baked into the Toeplitz weights).
        pooled = jnp.maximum(rowp[:, :half], rowp[:, half:])
        # Bias + ReLU once, after pooling (commutes: shared bias, monotone ReLU). f32 epilogue.
        return jnp.maximum(pooled + b_ref[...], 0.0).astype(bf16)

    x0 = x_ref[0]                                                    # (48, 144) bf16
    p1 = conv_relu_pool(x0, wt1_ref, s1_ref, b1_ref, kh=5, hp=22, half=132)  # (22, 132)
    p2 = conv_relu_pool(p1, wt2_ref, s2_ref, b2_ref, kh=5, hp=9, half=144)   # (9, 144)

    # fc1 directly on the pooled (9, 144) map; weight rows were pre-permuted to match
    # PyTorch's NCHW flatten, so no in-kernel flatten / transpose is needed.
    h = jnp.dot(p2[0:1, :], w1_ref[0], preferred_element_type=f32)
    for r in range(1, 9):
        h = h + jnp.dot(p2[r:r + 1, :], w1_ref[r], preferred_element_type=f32)
    h = jnp.maximum(h + fb1_ref[...], 0.0).astype(bf16)              # (1, 120)
    h = jnp.maximum(jnp.dot(h, w2_ref[...], preferred_element_type=f32)
                    + fb2_ref[...], 0.0).astype(bf16)                # (1, 84)
    out = jnp.dot(h, w3_ref[...], preferred_element_type=f32) + fb3_ref[...]
    o_ref[0] = out.astype(o_ref.dtype)                               # (1, 7)


# ----------------------------------------------------------------------------
# One-time weight massaging (setup cost, not on the per-forward path)
# ----------------------------------------------------------------------------
def _conv_toeplitz(w_hwio, win):
    """Banded per-kernel-row weight matrices, shape (KH, win*Cin, 2*Wp*Cout).

    T[ky, wi*Cin+ci, (dx*Wp+wp)*Cout+co] = w[ky, wi-(2*wp+dx), ci, co]
    (zero where the kx index falls outside [0, KW)).  Output columns are ordered
    (dx, wp, co), so the width max-pool is just a max of the two column halves.
    """
    kh, kw, cin, cout = w_hwio.shape
    wo = win - kw + 1
    wp = wo // 2
    q = np.arange(2 * wp)
    out_w = 2 * (q % wp) + q // wp                 # conv output column for block q
    wi = np.arange(win)
    kx = wi[:, None] - out_w[None, :]              # (win, 2*wp)
    valid = ((kx >= 0) & (kx < kw)).astype(np.float32)
    kx_c = np.clip(kx, 0, kw - 1)
    g = jnp.asarray(w_hwio)[:, kx_c, :, :]         # (kh, win, 2*wp, cin, cout)
    g = g * jnp.asarray(valid)[None, :, :, None, None]
    t = jnp.transpose(g, (0, 1, 3, 2, 4))          # (kh, win, cin, 2*wp, cout)
    return t.reshape(kh, win * cin, 2 * wp * cout)


def _pool_row_select(hp):
    """(2*hp, 2*hp) 0/1 matrix: rows [0,hp) pick even input rows, [hp,2hp) pick odd."""
    ho = 2 * hp
    s = np.zeros((ho, ho), np.float32)
    r = np.arange(hp)
    s[r, 2 * r] = 1.0
    s[hp + r, 2 * r + 1] = 1.0
    return s


def prepare_kernel_params(p):
    """Convert PyTorch-layout parameters into the kernel's bf16 matmul formats (done once)."""
    f32, bf16 = jnp.float32, jnp.bfloat16
    w1k = jnp.transpose(p["fw1"].reshape(16, 9, 9, 120), (1, 2, 0, 3))  # CHW -> (h, w, c)
    return dict(
        wt1=_conv_toeplitz(p["cw1"], 48).astype(bf16),      # (5, 144, 264)
        wt2=_conv_toeplitz(p["cw2"], 22).astype(bf16),      # (5, 132, 288)
        s1=jnp.asarray(_pool_row_select(22), bf16),         # (44, 44)
        s2=jnp.asarray(_pool_row_select(9), bf16),          # (18, 18)
        b1r=jnp.tile(p["cb1"], 22)[None, :].astype(f32),    # (1, 132)
        b2r=jnp.tile(p["cb2"], 9)[None, :].astype(f32),     # (1, 144)
        w1k=w1k.reshape(9, 144, 120).astype(bf16),          # (9, 144, 120)
        fb1=p["fb1"][None, :].astype(f32),                  # (1, 120)
        w2=p["fw2"].astype(bf16),                           # (120, 84)
        fb2=p["fb2"][None, :].astype(f32),                  # (1, 84)
        w3=p["fw3"].astype(bf16),                           # (84, 7)
        fb3=p["fb3"][None, :].astype(f32),                  # (1, 7)
    )


# ----------------------------------------------------------------------------
# Forward pass: one fused pallas_call
# ----------------------------------------------------------------------------
@jax.jit
def net_forward(x_nchw, kp):
    n = x_nchw.shape[0]

    # NCHW -> (N, H, W*C) channel-fastest, bf16 (halves the input DMA); tiny XLA glue.
    x2d = jnp.transpose(x_nchw, (0, 2, 3, 1)).reshape(n, 48, 144).astype(jnp.bfloat16)

    def _const2(a):
        return pl.BlockSpec(a.shape, lambda i: (0, 0))

    def _const3(a):
        return pl.BlockSpec(a.shape, lambda i: (0, 0, 0))

    out = pl.pallas_call(
        _net_kernel,
        out_shape=jax.ShapeDtypeStruct((n, 1, 7), jnp.float32),
        grid=(n,),
        in_specs=[
            pl.BlockSpec((1, 48, 144), lambda i: (i, 0, 0)),   # per-image input tile
            _const3(kp["wt1"]), _const2(kp["b1r"]), _const2(kp["s1"]),
            _const3(kp["wt2"]), _const2(kp["b2r"]), _const2(kp["s2"]),
            _const3(kp["w1k"]), _const2(kp["fb1"]),
            _const2(kp["w2"]), _const2(kp["fb2"]),
            _const2(kp["w3"]), _const2(kp["fb3"]),
        ],
        out_specs=pl.BlockSpec((1, 1, 7), lambda i: (i, 0, 0)),
        compiler_params=pltpu.CompilerParams(
            dimension_semantics=("parallel",)),                # batch across TCs on v7x
    )(x2d, kp["wt1"], kp["b1r"], kp["s1"], kp["wt2"], kp["b2r"], kp["s2"],
      kp["w1k"], kp["fb1"], kp["w2"], kp["fb2"], kp["w3"], kp["fb3"])
    return out.reshape(n, 7)


# ----------------------------------------------------------------------------
# Pure-JAX f32 reference (for verification)
# ----------------------------------------------------------------------------
@jax.jit
def reference_forward(x_nchw, p):
    x = jnp.transpose(x_nchw, (0, 2, 3, 1))

    def conv_block(x, w, b):
        y = jax.lax.conv_general_dilated(
            x, w, (1, 1), "VALID",
            dimension_numbers=("NHWC", "HWIO", "NHWC"),
            precision=jax.lax.Precision.HIGHEST) + b
        y = jnp.maximum(y, 0.0)
        return jax.lax.reduce_window(y, -jnp.inf, jax.lax.max,
                                     (1, 2, 2, 1), (1, 2, 2, 1), "VALID")

    x = conv_block(x, p["cw1"], p["cb1"])
    x = conv_block(x, p["cw2"], p["cb2"])
    x = jnp.transpose(x, (0, 3, 1, 2)).reshape(x.shape[0], -1)   # PyTorch CHW flatten
    h = jnp.maximum(jnp.dot(x, p["fw1"], precision=jax.lax.Precision.HIGHEST) + p["fb1"], 0.0)
    h = jnp.maximum(jnp.dot(h, p["fw2"], precision=jax.lax.Precision.HIGHEST) + p["fb2"], 0.0)
    return jnp.dot(h, p["fw3"], precision=jax.lax.Precision.HIGHEST) + p["fb3"]


# ----------------------------------------------------------------------------
# Deterministic parameter init (synthetic; shapes match the PyTorch module)
# ----------------------------------------------------------------------------
def init_params(key):
    ks = jax.random.split(key, 10)

    def u(k, shape, fan_in):
        bound = 1.0 / np.sqrt(fan_in)
        return jax.random.uniform(k, shape, jnp.float32, -bound, bound)

    return dict(
        cw1=u(ks[0], (5, 5, 3, 6), 5 * 5 * 3),    cb1=u(ks[1], (6,), 5 * 5 * 3),
        cw2=u(ks[2], (5, 5, 6, 16), 5 * 5 * 6),   cb2=u(ks[3], (16,), 5 * 5 * 6),
        fw1=u(ks[4], (1296, 120), 1296),          fb1=u(ks[5], (120,), 1296),
        fw2=u(ks[6], (120, 84), 120),             fb2=u(ks[7], (84,), 120),
        fw3=u(ks[8], (84, 7), 84),                fb3=u(ks[9], (7,), 84),
    )


if __name__ == "__main__":
    key = jax.random.PRNGKey(0)
    k_param, k_x = jax.random.split(key)
    params = init_params(k_param)
    kernel_params = prepare_kernel_params(params)   # one-time setup

    # Input consistent with fc1.in_features == 1296: (N, 3, 48, 48), NCHW.
    x = jax.random.normal(k_x, (2, 3, 48, 48), jnp.float32)

    out = jax.block_until_ready(net_forward(x, kernel_params))
    ref = jax.block_until_ready(reference_forward(x, params))

    assert out.shape == (2, 7), f"unexpected output shape {out.shape}"
    assert np.all(np.isfinite(np.asarray(out))), "non-finite output"
    np.testing.assert_allclose(np.asarray(out), np.asarray(ref), rtol=2e-2, atol=2e-2)

    print("KERNEL_OK")
</pallas_src>

<mosaic_0001>
module attributes {stable_mosaic.version = 11 : i64} {
  func.func @_net_kernel(%arg0: i32, %arg1: memref<1x48x144xbf16, #tpu.memory_space<vmem>>, %arg2: memref<5x144x264xbf16, #tpu.memory_space<vmem>>, %arg3: memref<1x132xf32, #tpu.memory_space<vmem>>, %arg4: memref<44x44xbf16, #tpu.memory_space<vmem>>, %arg5: memref<5x132x288xbf16, #tpu.memory_space<vmem>>, %arg6: memref<1x144xf32, #tpu.memory_space<vmem>>, %arg7: memref<18x18xbf16, #tpu.memory_space<vmem>>, %arg8: memref<9x144x120xbf16, #tpu.memory_space<vmem>>, %arg9: memref<1x120xf32, #tpu.memory_space<vmem>>, %arg10: memref<120x84xbf16, #tpu.memory_space<vmem>>, %arg11: memref<1x84xf32, #tpu.memory_space<vmem>>, %arg12: memref<84x7xbf16, #tpu.memory_space<vmem>>, %arg13: memref<1x7xf32, #tpu.memory_space<vmem>>, %arg14: memref<1x1x7xf32, #tpu.memory_space<vmem>>) attributes {dimension_semantics = [#tpu.dimension_semantics<parallel>], iteration_bounds = array<i64: 2>, scalar_prefetch = 0 : i64, scratch_operands = 0 : i64, tpu.core_type = #tpu.core_type<tc>, window_params = [{transform_indices = @transform_0, window_bounds = array<i64: 1, 48, 144>}, {pipeline_mode = #tpu.pipeline_mode<synchronous>, transform_indices = @transform_1, window_bounds = array<i64: 5, 144, 264>}, {pipeline_mode = #tpu.pipeline_mode<synchronous>, transform_indices = @transform_2, window_bounds = array<i64: 1, 132>}, {pipeline_mode = #tpu.pipeline_mode<synchronous>, transform_indices = @transform_3, window_bounds = array<i64: 44, 44>}, {pipeline_mode = #tpu.pipeline_mode<synchronous>, transform_indices = @transform_4, window_bounds = array<i64: 5, 132, 288>}, {pipeline_mode = #tpu.pipeline_mode<synchronous>, transform_indices = @transform_5, window_bounds = array<i64: 1, 144>}, {pipeline_mode = #tpu.pipeline_mode<synchronous>, transform_indices = @transform_6, window_bounds = array<i64: 18, 18>}, {pipeline_mode = #tpu.pipeline_mode<synchronous>, transform_indices = @transform_7, window_bounds = array<i64: 9, 144, 120>}, {pipeline_mode = #tpu.pipeline_mode<synchronous>, transform_indices = @transform_8, window_bounds = array<i64: 1, 120>}, {pipeline_mode = #tpu.pipeline_mode<synchronous>, transform_indices = @transform_9, window_bounds = array<i64: 120, 84>}, {pipeline_mode = #tpu.pipeline_mode<synchronous>, transform_indices = @transform_10, window_bounds = array<i64: 1, 84>}, {pipeline_mode = #tpu.pipeline_mode<synchronous>, transform_indices = @transform_11, window_bounds = array<i64: 84, 7>}, {pipeline_mode = #tpu.pipeline_mode<synchronous>, transform_indices = @transform_12, window_bounds = array<i64: 1, 7>}, {transform_indices = @transform_13, window_bounds = array<i64: 1, 1, 7>}]} {
    %c0 = arith.constant 0 : index
    %c0_0 = arith.constant 0 : index
    %c0_1 = arith.constant 0 : index
    %0 = vector.load %arg1[%c0, %c0_0, %c0_1] : memref<1x48x144xbf16, #tpu.memory_space<vmem>>, vector<1x48x144xbf16>
    %1 = vector.shape_cast %0 : vector<1x48x144xbf16> to vector<48x144xbf16>
    %2 = vector.extract_strided_slice %1 {offsets = [0, 0], sizes = [44, 144], strides = [1, 1]} : vector<48x144xbf16> to vector<44x144xbf16>
    %c0_2 = arith.constant 0 : index
    %c0_3 = arith.constant 0 : index
    %c0_4 = arith.constant 0 : index
    %3 = vector.load %arg2[%c0_2, %c0_3, %c0_4] : memref<5x144x264xbf16, #tpu.memory_space<vmem>>, vector<1x144x264xbf16>
    %4 = vector.shape_cast %3 : vector<1x144x264xbf16> to vector<144x264xbf16>
    %cst = arith.constant dense<0.000000e+00> : vector<44x264xf32>
    %5 = tpu.matmul %2, %4, %cst {dimension_numbers = #tpu.dot_dimension_numbers<[1], [0], [0], [1], [0, 0, 1, 1], [], []>} : vector<44x144xbf16>, vector<144x264xbf16>, vector<44x264xf32> -> vector<44x264xf32>
    %6 = vector.extract_strided_slice %1 {offsets = [1, 0], sizes = [44, 144], strides = [1, 1]} : vector<48x144xbf16> to vector<44x144xbf16>
    %c1 = arith.constant 1 : index
    %c0_5 = arith.constant 0 : index
    %c0_6 = arith.constant 0 : index
    %7 = vector.load %arg2[%c1, %c0_5, %c0_6] : memref<5x144x264xbf16, #tpu.memory_space<vmem>>, vector<1x144x264xbf16>
    %8 = vector.shape_cast %7 : vector<1x144x264xbf16> to vector<144x264xbf16>
    %cst_7 = arith.constant dense<0.000000e+00> : vector<44x264xf32>
    %9 = tpu.matmul %6, %8, %cst_7 {dimension_numbers = #tpu.dot_dimension_numbers<[1], [0], [0], [1], [0, 0, 1, 1], [], []>} : vector<44x144xbf16>, vector<144x264xbf16>, vector<44x264xf32> -> vector<44x264xf32>
    %10 = arith.addf %5, %9 : vector<44x264xf32>
    %11 = vector.extract_strided_slice %1 {offsets = [2, 0], sizes = [44, 144], strides = [1, 1]} : vector<48x144xbf16> to vector<44x144xbf16>
    %c2 = arith.constant 2 : index
    %c0_8 = arith.constant 0 : index
    %c0_9 = arith.constant 0 : index
    %12 = vector.load %arg2[%c2, %c0_8, %c0_9] : memref<5x144x264xbf16, #tpu.memory_space<vmem>>, vector<1x144x264xbf16>
    %13 = vector.shape_cast %12 : vector<1x144x264xbf16> to vector<144x264xbf16>
    %cst_10 = arith.constant dense<0.000000e+00> : vector<44x264xf32>
    %14 = tpu.matmul %11, %13, %cst_10 {dimension_numbers = #tpu.dot_dimension_numbers<[1], [0], [0], [1], [0, 0, 1, 1], [], []>} : vector<44x144xbf16>, vector<144x264xbf16>, vector<44x264xf32> -> vector<44x264xf32>
    %15 = arith.addf %10, %14 : vector<44x264xf32>
    %16 = vector.extract_strided_slice %1 {offsets = [3, 0], sizes = [44, 144], strides = [1, 1]} : vector<48x144xbf16> to vector<44x144xbf16>
    %c3 = arith.constant 3 : index
    %c0_11 = arith.constant 0 : index
    %c0_12 = arith.constant 0 : index
    %17 = vector.load %arg2[%c3, %c0_11, %c0_12] : memref<5x144x264xbf16, #tpu.memory_space<vmem>>, vector<1x144x264xbf16>
    %18 = vector.shape_cast %17 : vector<1x144x264xbf16> to vector<144x264xbf16>
    %cst_13 = arith.constant dense<0.000000e+00> : vector<44x264xf32>
    %19 = tpu.matmul %16, %18, %cst_13 {dimension_numbers = #tpu.dot_dimension_numbers<[1], [0], [0], [1], [0, 0, 1, 1], [], []>} : vector<44x144xbf16>, vector<144x264xbf16>, vector<44x264xf32> -> vector<44x264xf32>
    %20 = arith.addf %15, %19 : vector<44x264xf32>
    %21 = vector.extract_strided_slice %1 {offsets = [4, 0], sizes = [44, 144], strides = [1, 1]} : vector<48x144xbf16> to vector<44x144xbf16>
    %c4 = arith.constant 4 : index
    %c0_14 = arith.constant 0 : index
    %c0_15 = arith.constant 0 : index
    %22 = vector.load %arg2[%c4, %c0_14, %c0_15] : memref<5x144x264xbf16, #tpu.memory_space<vmem>>, vector<1x144x264xbf16>
    %23 = vector.shape_cast %22 : vector<1x144x264xbf16> to vector<144x264xbf16>
    %cst_16 = arith.constant dense<0.000000e+00> : vector<44x264xf32>
    %24 = tpu.matmul %21, %23, %cst_16 {dimension_numbers = #tpu.dot_dimension_numbers<[1], [0], [0], [1], [0, 0, 1, 1], [], []>} : vector<44x144xbf16>, vector<144x264xbf16>, vector<44x264xf32> -> vector<44x264xf32>
    %25 = arith.addf %20, %24 : vector<44x264xf32>
    %c0_17 = arith.constant 0 : index
    %c0_18 = arith.constant 0 : index
    %26 = vector.load %arg4[%c0_17, %c0_18] : memref<44x44xbf16, #tpu.memory_space<vmem>>, vector<44x44xbf16>
    %27 = arith.truncf %25 : vector<44x264xf32> to vector<44x264xbf16>
    %cst_19 = arith.constant dense<0.000000e+00> : vector<44x264xf32>
    %28 = tpu.matmul %26, %27, %cst_19 {dimension_numbers = #tpu.dot_dimension_numbers<[1], [0], [0], [1], [0, 0, 1, 1], [], []>} : vector<44x44xbf16>, vector<44x264xbf16>, vector<44x264xf32> -> vector<44x264xf32>
    %29 = vector.extract_strided_slice %28 {offsets = [0, 0], sizes = [22, 264], strides = [1, 1]} : vector<44x264xf32> to vector<22x264xf32>
    %30 = vector.extract_strided_slice %28 {offsets = [22, 0], sizes = [22, 264], strides = [1, 1]} : vector<44x264xf32> to vector<22x264xf32>
    %31 = arith.maximumf %29, %30 : vector<22x264xf32>
    %32 = vector.extract_strided_slice %31 {offsets = [0, 0], sizes = [22, 132], strides = [1, 1]} : vector<22x264xf32> to vector<22x132xf32>
    %33 = vector.extract_strided_slice %31 {offsets = [0, 132], sizes = [22, 132], strides = [1, 1]} : vector<22x264xf32> to vector<22x132xf32>
    %34 = arith.maximumf %32, %33 : vector<22x132xf32>
    %c0_20 = arith.constant 0 : index
    %c0_21 = arith.constant 0 : index
    %35 = vector.load %arg3[%c0_20, %c0_21] : memref<1x132xf32, #tpu.memory_space<vmem>>, vector<1x132xf32>
    %36 = vector.broadcast %35 : vector<1x132xf32> to vector<22x132xf32>
    %37 = arith.addf %34, %36 : vector<22x132xf32>
    %cst_22 = arith.constant 0.000000e+00 : f32
    %38 = vector.broadcast %cst_22 : f32 to vector<22x132xf32>
    %39 = arith.maximumf %37, %38 : vector<22x132xf32>
    %40 = arith.truncf %39 : vector<22x132xf32> to vector<22x132xbf16>
    %41 = vector.extract_strided_slice %40 {offsets = [0, 0], sizes = [18, 132], strides = [1, 1]} : vector<22x132xbf16> to vector<18x132xbf16>
    %c0_23 = arith.constant 0 : index
    %c0_24 = arith.constant 0 : index
    %c0_25 = arith.constant 0 : index
    %42 = vector.load %arg5[%c0_23, %c0_24, %c0_25] : memref<5x132x288xbf16, #tpu.memory_space<vmem>>, vector<1x132x288xbf16>
    %43 = vector.shape_cast %42 : vector<1x132x288xbf16> to vector<132x288xbf16>
    %cst_26 = arith.constant dense<0.000000e+00> : vector<18x288xf32>
    %44 = tpu.matmul %41, %43, %cst_26 {dimension_numbers = #tpu.dot_dimension_numbers<[1], [0], [0], [1], [0, 0, 1, 1], [], []>} : vector<18x132xbf16>, vector<132x288xbf16>, vector<18x288xf32> -> vector<18x288xf32>
    %45 = vector.extract_strided_slice %40 {offsets = [1, 0], sizes = [18, 132], strides = [1, 1]} : vector<22x132xbf16> to vector<18x132xbf16>
    %c1_27 = arith.constant 1 : index
    %c0_28 = arith.constant 0 : index
    %c0_29 = arith.constant 0 : index
    %46 = vector.load %arg5[%c1_27, %c0_28, %c0_29] : memref<5x132x288xbf16, #tpu.memory_space<vmem>>, vector<1x132x288xbf16>
    %47 = vector.shape_cast %46 : vector<1x132x288xbf16> to vector<132x288xbf16>
    %cst_30 = arith.constant dense<0.000000e+00> : vector<18x288xf32>
    %48 = tpu.matmul %45, %47, %cst_30 {dimension_numbers = #tpu.dot_dimension_numbers<[1], [0], [0], [1], [0, 0, 1, 1], [], []>} : vector<18x132xbf16>, vector<132x288xbf16>, vector<18x288xf32> -> vector<18x288xf32>
    %49 = arith.addf %44, %48 : vector<18x288xf32>
    %50 = vector.extract_strided_slice %40 {offsets = [2, 0], sizes = [18, 132], strides = [1, 1]} : vector<22x132xbf16> to vector<18x132xbf16>
    %c2_31 = arith.constant 2 : index
    %c0_32 = arith.constant 0 : index
    %c0_33 = arith.constant 0 : index
    %51 = vector.load %arg5[%c2_31, %c0_32, %c0_33] : memref<5x132x288xbf16, #tpu.memory_space<vmem>>, vector<1x132x288xbf16>
    %52 = vector.shape_cast %51 : vector<1x132x288xbf16> to vector<132x288xbf16>
    %cst_34 = arith.constant dense<0.000000e+00> : vector<18x288xf32>
    %53 = tpu.matmul %50, %52, %cst_34 {dimension_numbers = #tpu.dot_dimension_numbers<[1], [0], [0], [1], [0, 0, 1, 1], [], []>} : vector<18x132xbf16>, vector<132x288xbf16>, vector<18x288xf32> -> vector<18x288xf32>
    %54 = arith.addf %49, %53 : vector<18x288xf32>
    %55 = vector.extract_strided_slice %40 {offsets = [3, 0], sizes = [18, 132], strides = [1, 1]} : vector<22x132xbf16> to vector<18x132xbf16>
    %c3_35 = arith.constant 3 : index
    %c0_36 = arith.constant 0 : index
    %c0_37 = arith.constant 0 : index
    %56 = vector.load %arg5[%c3_35, %c0_36, %c0_37] : memref<5x132x288xbf16, #tpu.memory_space<vmem>>, vector<1x132x288xbf16>
    %57 = vector.shape_cast %56 : vector<1x132x288xbf16> to vector<132x288xbf16>
    %cst_38 = arith.constant dense<0.000000e+00> : vector<18x288xf32>
    %58 = tpu.matmul %55, %57, %cst_38 {dimension_numbers = #tpu.dot_dimension_numbers<[1], [0], [0], [1], [0, 0, 1, 1], [], []>} : vector<18x132xbf16>, vector<132x288xbf16>, vector<18x288xf32> -> vector<18x288xf32>
    %59 = arith.addf %54, %58 : vector<18x288xf32>
    %60 = vector.extract_strided_slice %40 {offsets = [4, 0], sizes = [18, 132], strides = [1, 1]} : vector<22x132xbf16> to vector<18x132xbf16>
    %c4_39 = arith.constant 4 : index
    %c0_40 = arith.constant 0 : index
    %c0_41 = arith.constant 0 : index
    %61 = vector.load %arg5[%c4_39, %c0_40, %c0_41] : memref<5x132x288xbf16, #tpu.memory_space<vmem>>, vector<1x132x288xbf16>
    %62 = vector.shape_cast %61 : vector<1x132x288xbf16> to vector<132x288xbf16>
    %cst_42 = arith.constant dense<0.000000e+00> : vector<18x288xf32>
    %63 = tpu.matmul %60, %62, %cst_42 {dimension_numbers = #tpu.dot_dimension_numbers<[1], [0], [0], [1], [0, 0, 1, 1], [], []>} : vector<18x132xbf16>, vector<132x288xbf16>, vector<18x288xf32> -> vector<18x288xf32>
    %64 = arith.addf %59, %63 : vector<18x288xf32>
    %c0_43 = arith.constant 0 : index
    %c0_44 = arith.constant 0 : index
    %65 = vector.load %arg7[%c0_43, %c0_44] : memref<18x18xbf16, #tpu.memory_space<vmem>>, vector<18x18xbf16>
    %66 = arith.truncf %64 : vector<18x288xf32> to vector<18x288xbf16>
    %cst_45 = arith.constant dense<0.000000e+00> : vector<18x288xf32>
    %67 = tpu.matmul %65, %66, %cst_45 {dimension_numbers = #tpu.dot_dimension_numbers<[1], [0], [0], [1], [0, 0, 1, 1], [], []>} : vector<18x18xbf16>, vector<18x288xbf16>, vector<18x288xf32> -> vector<18x288xf32>
    %68 = vector.extract_strided_slice %67 {offsets = [0, 0], sizes = [9, 288], strides = [1, 1]} : vector<18x288xf32> to vector<9x288xf32>
    %69 = vector.extract_strided_slice %67 {offsets = [9, 0], sizes = [9, 288], strides = [1, 1]} : vector<18x288xf32> to vector<9x288xf32>
    %70 = arith.maximumf %68, %69 : vector<9x288xf32>
    %71 = vector.extract_strided_slice %70 {offsets = [0, 0], sizes = [9, 144], strides = [1, 1]} : vector<9x288xf32> to vector<9x144xf32>
    %72 = vector.extract_strided_slice %70 {offsets = [0, 144], sizes = [9, 144], strides = [1, 1]} : vector<9x288xf32> to vector<9x144xf32>
    %73 = arith.maximumf %71, %72 : vector<9x144xf32>
    %c0_46 = arith.constant 0 : index
    %c0_47 = arith.constant 0 : index
    %74 = vector.load %arg6[%c0_46, %c0_47] : memref<1x144xf32, #tpu.memory_space<vmem>>, vector<1x144xf32>
    %75 = vector.broadcast %74 : vector<1x144xf32> to vector<9x144xf32>
    %76 = arith.addf %73, %75 : vector<9x144xf32>
    %cst_48 = arith.constant 0.000000e+00 : f32
    %77 = vector.broadcast %cst_48 : f32 to vector<9x144xf32>
    %78 = arith.maximumf %76, %77 : vector<9x144xf32>
    %79 = arith.truncf %78 : vector<9x144xf32> to vector<9x144xbf16>
    %80 = vector.extract_strided_slice %79 {offsets = [0, 0], sizes = [1, 144], strides = [1, 1]} : vector<9x144xbf16> to vector<1x144xbf16>
    %c0_49 = arith.constant 0 : index
    %c0_50 = arith.constant 0 : index
    %c0_51 = arith.constant 0 : index
    %81 = vector.load %arg8[%c0_49, %c0_50, %c0_51] : memref<9x144x120xbf16, #tpu.memory_space<vmem>>, vector<1x144x120xbf16>
    %82 = vector.shape_cast %81 : vector<1x144x120xbf16> to vector<144x120xbf16>
    %cst_52 = arith.constant dense<0.000000e+00> : vector<1x120xf32>
    %83 = tpu.matmul %80, %82, %cst_52 {dimension_numbers = #tpu.dot_dimension_numbers<[1], [0], [0], [1], [0, 0, 1, 1], [], []>} : vector<1x144xbf16>, vector<144x120xbf16>, vector<1x120xf32> -> vector<1x120xf32>
    %84 = vector.extract_strided_slice %79 {offsets = [1, 0], sizes = [1, 144], strides = [1, 1]} : vector<9x144xbf16> to vector<1x144xbf16>
    %c1_53 = arith.constant 1 : index
    %c0_54 = arith.constant 0 : index
    %c0_55 = arith.constant 0 : index
    %85 = vector.load %arg8[%c1_53, %c0_54, %c0_55] : memref<9x144x120xbf16, #tpu.memory_space<vmem>>, vector<1x144x120xbf16>
    %86 = vector.shape_cast %85 : vector<1x144x120xbf16> to vector<144x120xbf16>
    %cst_56 = arith.constant dense<0.000000e+00> : vector<1x120xf32>
    %87 = tpu.matmul %84, %86, %cst_56 {dimension_numbers = #tpu.dot_dimension_numbers<[1], [0], [0], [1], [0, 0, 1, 1], [], []>} : vector<1x144xbf16>, vector<144x120xbf16>, vector<1x120xf32> -> vector<1x120xf32>
    %88 = arith.addf %83, %87 : vector<1x120xf32>
    %89 = vector.extract_strided_slice %79 {offsets = [2, 0], sizes = [1, 144], strides = [1, 1]} : vector<9x144xbf16> to vector<1x144xbf16>
    %c2_57 = arith.constant 2 : index
    %c0_58 = arith.constant 0 : index
    %c0_59 = arith.constant 0 : index
    %90 = vector.load %arg8[%c2_57, %c0_58, %c0_59] : memref<9x144x120xbf16, #tpu.memory_space<vmem>>, vector<1x144x120xbf16>
    %91 = vector.shape_cast %90 : vector<1x144x120xbf16> to vector<144x120xbf16>
    %cst_60 = arith.constant dense<0.000000e+00> : vector<1x120xf32>
    %92 = tpu.matmul %89, %91, %cst_60 {dimension_numbers = #tpu.dot_dimension_numbers<[1], [0], [0], [1], [0, 0, 1, 1], [], []>} : vector<1x144xbf16>, vector<144x120xbf16>, vector<1x120xf32> -> vector<1x120xf32>
    %93 = arith.addf %88, %92 : vector<1x120xf32>
    %94 = vector.extract_strided_slice %79 {offsets = [3, 0], sizes = [1, 144], strides = [1, 1]} : vector<9x144xbf16> to vector<1x144xbf16>
    %c3_61 = arith.constant 3 : index
    %c0_62 = arith.constant 0 : index
    %c0_63 = arith.constant 0 : index
    %95 = vector.load %arg8[%c3_61, %c0_62, %c0_63] : memref<9x144x120xbf16, #tpu.memory_space<vmem>>, vector<1x144x120xbf16>
    %96 = vector.shape_cast %95 : vector<1x144x120xbf16> to vector<144x120xbf16>
    %cst_64 = arith.constant dense<0.000000e+00> : vector<1x120xf32>
    %97 = tpu.matmul %94, %96, %cst_64 {dimension_numbers = #tpu.dot_dimension_numbers<[1], [0], [0], [1], [0, 0, 1, 1], [], []>} : vector<1x144xbf16>, vector<144x120xbf16>, vector<1x120xf32> -> vector<1x120xf32>
    %98 = arith.addf %93, %97 : vector<1x120xf32>
    %99 = vector.extract_strided_slice %79 {offsets = [4, 0], sizes = [1, 144], strides = [1, 1]} : vector<9x144xbf16> to vector<1x144xbf16>
    %c4_65 = arith.constant 4 : index
    %c0_66 = arith.constant 0 : index
    %c0_67 = arith.constant 0 : index
    %100 = vector.load %arg8[%c4_65, %c0_66, %c0_67] : memref<9x144x120xbf16, #tpu.memory_space<vmem>>, vector<1x144x120xbf16>
    %101 = vector.shape_cast %100 : vector<1x144x120xbf16> to vector<144x120xbf16>
    %cst_68 = arith.constant dense<0.000000e+00> : vector<1x120xf32>
    %102 = tpu.matmul %99, %101, %cst_68 {dimension_numbers = #tpu.dot_dimension_numbers<[1], [0], [0], [1], [0, 0, 1, 1], [], []>} : vector<1x144xbf16>, vector<144x120xbf16>, vector<1x120xf32> -> vector<1x120xf32>
    %103 = arith.addf %98, %102 : vector<1x120xf32>
    %104 = vector.extract_strided_slice %79 {offsets = [5, 0], sizes = [1, 144], strides = [1, 1]} : vector<9x144xbf16> to vector<1x144xbf16>
    %c5 = arith.constant 5 : index
    %c0_69 = arith.constant 0 : index
    %c0_70 = arith.constant 0 : index
    %105 = vector.load %arg8[%c5, %c0_69, %c0_70] : memref<9x144x120xbf16, #tpu.memory_space<vmem>>, vector<1x144x120xbf16>
    %106 = vector.shape_cast %105 : vector<1x144x120xbf16> to vector<144x120xbf16>
    %cst_71 = arith.constant dense<0.000000e+00> : vector<1x120xf32>
    %107 = tpu.matmul %104, %106, %cst_71 {dimension_numbers = #tpu.dot_dimension_numbers<[1], [0], [0], [1], [0, 0, 1, 1], [], []>} : vector<1x144xbf16>, vector<144x120xbf16>, vector<1x120xf32> -> vector<1x120xf32>
    %108 = arith.addf %103, %107 : vector<1x120xf32>
    %109 = vector.extract_strided_slice %79 {offsets = [6, 0], sizes = [1, 144], strides = [1, 1]} : vector<9x144xbf16> to vector<1x144xbf16>
    %c6 = arith.constant 6 : index
    %c0_72 = arith.constant 0 : index
    %c0_73 = arith.constant 0 : index
    %110 = vector.load %arg8[%c6, %c0_72, %c0_73] : memref<9x144x120xbf16, #tpu.memory_space<vmem>>, vector<1x144x120xbf16>
    %111 = vector.shape_cast %110 : vector<1x144x120xbf16> to vector<144x120xbf16>
    %cst_74 = arith.constant dense<0.000000e+00> : vector<1x120xf32>
    %112 = tpu.matmul %109, %111, %cst_74 {dimension_numbers = #tpu.dot_dimension_numbers<[1], [0], [0], [1], [0, 0, 1, 1], [], []>} : vector<1x144xbf16>, vector<144x120xbf16>, vector<1x120xf32> -> vector<1x120xf32>
    %113 = arith.addf %108, %112 : vector<1x120xf32>
    %114 = vector.extract_strided_slice %79 {offsets = [7, 0], sizes = [1, 144], strides = [1, 1]} : vector<9x144xbf16> to vector<1x144xbf16>
    %c7 = arith.constant 7 : index
    %c0_75 = arith.constant 0 : index
    %c0_76 = arith.constant 0 : index
    %115 = vector.load %arg8[%c7, %c0_75, %c0_76] : memref<9x144x120xbf16, #tpu.memory_space<vmem>>, vector<1x144x120xbf16>
    %116 = vector.shape_cast %115 : vector<1x144x120xbf16> to vector<144x120xbf16>
    %cst_77 = arith.constant dense<0.000000e+00> : vector<1x120xf32>
    %117 = tpu.matmul %114, %116, %cst_77 {dimension_numbers = #tpu.dot_dimension_numbers<[1], [0], [0], [1], [0, 0, 1, 1], [], []>} : vector<1x144xbf16>, vector<144x120xbf16>, vector<1x120xf32> -> vector<1x120xf32>
    %118 = arith.addf %113, %117 : vector<1x120xf32>
    %119 = vector.extract_strided_slice %79 {offsets = [8, 0], sizes = [1, 144], strides = [1, 1]} : vector<9x144xbf16> to vector<1x144xbf16>
    %c8 = arith.constant 8 : index
    %c0_78 = arith.constant 0 : index
    %c0_79 = arith.constant 0 : index
    %120 = vector.load %arg8[%c8, %c0_78, %c0_79] : memref<9x144x120xbf16, #tpu.memory_space<vmem>>, vector<1x144x120xbf16>
    %121 = vector.shape_cast %120 : vector<1x144x120xbf16> to vector<144x120xbf16>
    %cst_80 = arith.constant dense<0.000000e+00> : vector<1x120xf32>
    %122 = tpu.matmul %119, %121, %cst_80 {dimension_numbers = #tpu.dot_dimension_numbers<[1], [0], [0], [1], [0, 0, 1, 1], [], []>} : vector<1x144xbf16>, vector<144x120xbf16>, vector<1x120xf32> -> vector<1x120xf32>
    %123 = arith.addf %118, %122 : vector<1x120xf32>
    %c0_81 = arith.constant 0 : index
    %c0_82 = arith.constant 0 : index
    %124 = vector.load %arg9[%c0_81, %c0_82] : memref<1x120xf32, #tpu.memory_space<vmem>>, vector<1x120xf32>
    %125 = arith.addf %123, %124 : vector<1x120xf32>
    %cst_83 = arith.constant 0.000000e+00 : f32
    %126 = vector.broadcast %cst_83 : f32 to vector<1x120xf32>
    %127 = arith.maximumf %125, %126 : vector<1x120xf32>
    %128 = arith.truncf %127 : vector<1x120xf32> to vector<1x120xbf16>
    %c0_84 = arith.constant 0 : index
    %c0_85 = arith.constant 0 : index
    %129 = vector.load %arg10[%c0_84, %c0_85] : memref<120x84xbf16, #tpu.memory_space<vmem>>, vector<120x84xbf16>
    %cst_86 = arith.constant dense<0.000000e+00> : vector<1x84xf32>
    %130 = tpu.matmul %128, %129, %cst_86 {dimension_numbers = #tpu.dot_dimension_numbers<[1], [0], [0], [1], [0, 0, 1, 1], [], []>} : vector<1x120xbf16>, vector<120x84xbf16>, vector<1x84xf32> -> vector<1x84xf32>
    %c0_87 = arith.constant 0 : index
    %c0_88 = arith.constant 0 : index
    %131 = vector.load %arg11[%c0_87, %c0_88] : memref<1x84xf32, #tpu.memory_space<vmem>>, vector<1x84xf32>
    %132 = arith.addf %130, %131 : vector<1x84xf32>
    %cst_89 = arith.constant 0.000000e+00 : f32
    %133 = vector.broadcast %cst_89 : f32 to vector<1x84xf32>
    %134 = arith.maximumf %132, %133 : vector<1x84xf32>
    %135 = arith.truncf %134 : vector<1x84xf32> to vector<1x84xbf16>
    %c0_90 = arith.constant 0 : index
    %c0_91 = arith.constant 0 : index
    %136 = vector.load %arg12[%c0_90, %c0_91] : memref<84x7xbf16, #tpu.memory_space<vmem>>, vector<84x7xbf16>
    %cst_92 = arith.constant dense<0.000000e+00> : vector<1x7xf32>
    %137 = tpu.matmul %135, %136, %cst_92 {dimension_numbers = #tpu.dot_dimension_numbers<[1], [0], [0], [1], [0, 0, 1, 1], [], []>} : vector<1x84xbf16>, vector<84x7xbf16>, vector<1x7xf32> -> vector<1x7xf32>
    %c0_93 = arith.constant 0 : index
    %c0_94 = arith.constant 0 : index
    %138 = vector.load %arg13[%c0_93, %c0_94] : memref<1x7xf32, #tpu.memory_space<vmem>>, vector<1x7xf32>
    %139 = arith.addf %137, %138 : vector<1x7xf32>
    %c0_95 = arith.constant 0 : index
    %c0_96 = arith.constant 0 : index
    %c0_97 = arith.constant 0 : index
    %140 = vector.load %arg14[%c0_95, %c0_96, %c0_97] : memref<1x1x7xf32, #tpu.memory_space<vmem>>, vector<1x1x7xf32>
    %141 = vector.shape_cast %140 : vector<1x1x7xf32> to vector<1x7xf32>
    %142 = vector.shape_cast %139 : vector<1x7xf32> to vector<1x1x7xf32>
    tpu.vector_store %arg14[%c0_95, %c0_96, %c0_97], %142 {strides = array<i32>} : memref<1x1x7xf32, #tpu.memory_space<vmem>>, vector<1x1x7xf32>,
    return
  }
  func.func @transform_0(%arg0: i32) -> (i32, i32, i32) {
    %c0_i32 = arith.constant 0 : i32
    %c0_i32_0 = arith.constant 0 : i32
    %c0_i32_1 = arith.constant 0 : i32
    return %arg0, %c0_i32, %c0_i32_0 : i32, i32, i32
  }
  func.func @transform_1(%arg0: i32) -> (i32, i32, i32) {
    %c0_i32 = arith.constant 0 : i32
    %c0_i32_0 = arith.constant 0 : i32
    %c0_i32_1 = arith.constant 0 : i32
    %c0_i32_2 = arith.constant 0 : i32
    return %c0_i32, %c0_i32_0, %c0_i32_1 : i32, i32, i32
  }
  func.func @transform_2(%arg0: i32) -> (i32, i32) {
    %c0_i32 = arith.constant 0 : i32
    %c0_i32_0 = arith.constant 0 : i32
    %c0_i32_1 = arith.constant 0 : i32
    return %c0_i32, %c0_i32_0 : i32, i32
  }
  func.func @transform_3(%arg0: i32) -> (i32, i32) {
    %c0_i32 = arith.constant 0 : i32
    %c0_i32_0 = arith.constant 0 : i32
    %c0_i32_1 = arith.constant 0 : i32
    return %c0_i32, %c0_i32_0 : i32, i32
  }
  func.func @transform_4(%arg0: i32) -> (i32, i32, i32) {
    %c0_i32 = arith.constant 0 : i32
    %c0_i32_0 = arith.constant 0 : i32
    %c0_i32_1 = arith.constant 0 : i32
    %c0_i32_2 = arith.constant 0 : i32
    return %c0_i32, %c0_i32_0, %c0_i32_1 : i32, i32, i32
  }
  func.func @transform_5(%arg0: i32) -> (i32, i32) {
    %c0_i32 = arith.constant 0 : i32
    %c0_i32_0 = arith.constant 0 : i32
    %c0_i32_1 = arith.constant 0 : i32
    return %c0_i32, %c0_i32_0 : i32, i32
  }
  func.func @transform_6(%arg0: i32) -> (i32, i32) {
    %c0_i32 = arith.constant 0 : i32
    %c0_i32_0 = arith.constant 0 : i32
    %c0_i32_1 = arith.constant 0 : i32
    return %c0_i32, %c0_i32_0 : i32, i32
  }
  func.func @transform_7(%arg0: i32) -> (i32, i32, i32) {
    %c0_i32 = arith.constant 0 : i32
    %c0_i32_0 = arith.constant 0 : i32
    %c0_i32_1 = arith.constant 0 : i32
    %c0_i32_2 = arith.constant 0 : i32
    return %c0_i32, %c0_i32_0, %c0_i32_1 : i32, i32, i32
  }
  func.func @transform_8(%arg0: i32) -> (i32, i32) {
    %c0_i32 = arith.constant 0 : i32
    %c0_i32_0 = arith.constant 0 : i32
    %c0_i32_1 = arith.constant 0 : i32
    return %c0_i32, %c0_i32_0 : i32, i32
  }
  func.func @transform_9(%arg0: i32) -> (i32, i32) {
    %c0_i32 = arith.constant 0 : i32
    %c0_i32_0 = arith.constant 0 : i32
    %c0_i32_1 = arith.constant 0 : i32
    return %c0_i32, %c0_i32_0 : i32, i32
  }
  func.func @transform_10(%arg0: i32) -> (i32, i32) {
    %c0_i32 = arith.constant 0 : i32
    %c0_i32_0 = arith.constant 0 : i32
    %c0_i32_1 = arith.constant 0 : i32
    return %c0_i32, %c0_i32_0 : i32, i32
  }
  func.func @transform_11(%arg0: i32) -> (i32, i32) {
    %c0_i32 = arith.constant 0 : i32
    %c0_i32_0 = arith.constant 0 : i32
    %c0_i32_1 = arith.constant 0 : i32
    return %c0_i32, %c0_i32_0 : i32, i32
  }
  func.func @transform_12(%arg0: i32) -> (i32, i32) {
    %c0_i32 = arith.constant 0 : i32
    %c0_i32_0 = arith.constant 0 : i32
    %c0_i32_1 = arith.constant 0 : i32
    return %c0_i32, %c0_i32_0 : i32, i32
  }
  func.func @transform_13(%arg0: i32) -> (i32, i32, i32) {
    %c0_i32 = arith.constant 0 : i32
    %c0_i32_0 = arith.constant 0 : i32
    %c0_i32_1 = arith.constant 0 : i32
    return %arg0, %c0_i32, %c0_i32_0 : i32, i32, i32
  }
}

</mosaic_0001>

<llo_original>
// kernel: net_forward.1
$region0: #{net_forward.1}
  #allocation0 [shape = 'u32[]', space=smem, size = 0x4, offset = 0x4, fixed_abs, tag = 'smem constant byte address 0x4 - core index']
  #allocation1 [shape = 'u32[144,128]{1,0:T(1,128)}', space=vmem, size = 0x12000, scoped, tag = 'internal scratch']
  %s0 = inlined_call_operand.vmem [shape: bf16[2,48,144], index: 0, kind: input, shape index: {}]
  %s1 = inlined_call_operand.vmem [shape: bf16[5,144,264], index: 1, kind: input, shape index: {}]
  %s2 = inlined_call_operand.vmem [shape: f32[1,132], index: 2, kind: input, shape index: {}]
  %s3 = inlined_call_operand.hbm [shape: bf16[44,44], index: 3, kind: input, shape index: {}]
  %s4 = inlined_call_operand.hbm [shape: bf16[5,132,288], index: 4, kind: input, shape index: {}]
  %s5 = inlined_call_operand.vmem [shape: f32[1,144], index: 5, kind: input, shape index: {}]
  %s6 = inlined_call_operand.hbm [shape: bf16[18,18], index: 6, kind: input, shape index: {}]
  %s7 = inlined_call_operand.hbm [shape: bf16[9,144,120], index: 7, kind: input, shape index: {}]
  %s8 = inlined_call_operand.vmem [shape: f32[1,120], index: 8, kind: input, shape index: {}]
  %s9 = inlined_call_operand.vmem [shape: bf16[120,84], index: 9, kind: input, shape index: {}]
  %s10 = inlined_call_operand.vmem [shape: f32[1,84], index: 10, kind: input, shape index: {}]
  %s11 = inlined_call_operand.vmem [shape: bf16[84,7], index: 11, kind: input, shape index: {}]
  %s12 = inlined_call_operand.hbm [shape: f32[1,7], index: 12, kind: input, shape index: {}]
  %s13 = inlined_call_operand.hbm [shape: f32[2,1,7], index: 13, kind: output, shape index: {}]
  %s14 = sld [smem:[#allocation0]]
  $region105: #{net_forward.1} parent=0
    _
  %s16 = ssub.s32 1, %s14
  %s17 = scalar_select 0, %s16, %s14
  $region1: #{net_forward.1} parent=0
    #allocation2 [shape = 'u8[12288]{0}', space=vmem, size = 0x3000, scoped, tag = 'input window, operand 3, single buffered']
    #allocation3 [shape = 's32[2]{0}', space=sflag, size = 0x8, scoped, tag = 'scoped memory for net_forward.1']
    #allocation4 [shape = 's32[2]{0}', space=sflag, size = 0x8, scoped, tag = 'scoped memory for net_forward.1']
    #allocation5 [shape = 'u8[522240]{0}', space=vmem, size = 0x7f800, scoped, tag = 'input window, operand 4, single buffered']
    #allocation6 [shape = 's32[1]{0}', space=sflag, size = 0x4, scoped, tag = 'scoped memory for net_forward.1']
    #allocation7 [shape = 'u8[6144]{0}', space=vmem, size = 0x1800, scoped, tag = 'input window, operand 6, single buffered']
    #allocation8 [shape = 'u8[331776]{0}', space=vmem, size = 0x51000, scoped, tag = 'input window, operand 7, single buffered']
    #allocation9 [shape = 's32[1]{0}', space=sflag, size = 0x4, scoped, tag = 'scoped memory for net_forward.1']
    #allocation10 [shape = 'u8[512]{0}', space=vmem, size = 0x400, scoped, tag = 'input window, operand 12, single buffered']
    #allocation11 [shape = 'u8[1024]{0}', space=vmem, size = 0x400, scoped, tag = 'output window, operand 0']
    %18 = vsyncpa [#allocation3], 0
    %19 = vsyncpa [#allocation6], 0
    %20 = vsyncpa [#allocation9], 0
    %21 = vsyncpa [#allocation4], 0
    %s22 = scalar_lea.sflag [#allocation4], 1
    %23 = vsyncpa %s22, 0
    loop: start=0, step=1, limit=4
    $region2: #{net_forward.1} parent=1 // loop_pre_header
      _
    $region3: #{net_forward.1} parent=1 // loop_header
      %s25 = sphi 0, %s29
      %p26 = scmp.ge.s32.totalorder %s25, 4
      %s35 = sphi 0, %s37
      %s38 = sphi 0, %s35
      %s39 = sphi 0, %s38
      %s55 = sphi 0, %s39
      %s59 = sphi 0, %s59
      %s61 = sphi 0, %s59
      %s62 = sphi 0, %s61
      %s76 = sphi 0, %s62
      %s80 = sphi 0, %s80
      %s82 = sphi 0, %s80
      %s83 = sphi 0, %s82
      %s97 = sphi 0, %s83
      %s101 = sphi 0, %s101
      %s103 = sphi 0, %s101
      %s104 = sphi 0, %s103
      %s118 = sphi 0, %s104
      %s122 = sphi 0, %s122
      %s124 = sphi 0, %s122
      %s125 = sphi 0, %s124
      %s139 = sphi 0, %s125
      %s143 = sphi 0, %s143
      %s145 = sphi 0, %s143
      %s146 = sphi 0, %s145
      %s160 = sphi 0, %s146
      %s164 = sphi 0, %s164
      %s166 = sphi 0, %s164
      %s167 = sphi 0, %s166
      %s181 = sphi 0, %s167
      %s185 = sphi 0, %s185
      %s187 = sphi 0, %s185
      %s188 = sphi 0, %s187
      %s202 = sphi 0, %s188
      %s206 = sphi 0, %s206
      %s208 = sphi 0, %s206
      %s209 = sphi 0, %s208
      %s223 = sphi 0, %s209
      %s227 = sphi 0, %s227
      %s229 = sphi 0, %s227
      %s230 = sphi 0, %s229
      %s244 = sphi 0, %s230
      %s248 = sphi 0, %s248
      %s250 = sphi 0, %s248
      %s251 = sphi 0, %s250
      %s265 = sphi 0, %s251
      %s269 = sphi 0, %s269
      %s271 = sphi 0, %s269
      %s272 = sphi 0, %s271
      %s286 = sphi 0, %s272
      %s290 = sphi 0, %s290
      %s292 = sphi 0, %s290
      %s293 = sphi 0, %s292
      %s307 = sphi 0, %s293
      %s313 = sphi 0, %s315
      %s316 = sphi 0, %s313
      %s317 = sphi 0, %s316
      %s333 = sphi 0, %s317
    $region4: #{net_forward.1} parent=1 // loop_header_branch
      %28 = sbr.rel (%p26) target = $region8
    $region5: #{net_forward.1} parent=1 // loop_body
      %s30 = ssub.s32 %s25, 1
      %s31 = ssub.s32 %s25, 2
      %s32 = sadd.s32 %s25, 1
      %s33 = ssub.s32 %s25, %s32
      %p34 = scmp.eq.s32.totalorder %s33, 0
      %s36 = sadd.s32 %s35, 1
      %s37 = scalar_select %p34, %s35, %s36
      %p40 = pneg %p34
      %p41 = scmp.eq.s32.totalorder %s25, 1
      %p42 = por %p40, %p41
      %p43 = scmp.ne.s32.totalorder %s35, %s38
      %p44 = scmp.eq.s32.totalorder %s25, 0
      %p45 = por %p43, %p44
      %p46 = scmp.ne.s32.totalorder %s35, %s38
      %p47 = scmp.eq.s32.totalorder %s30, 1
      %p48 = por %p46, %p47
      %p49 = scmp.ne.s32.totalorder %s38, %s39
      %p50 = scmp.eq.s32.totalorder %s30, 0
      %p51 = por %p49, %p50
      %p52 = scmp.ne.s32.totalorder %s38, %s39
      %p53 = scmp.eq.s32.totalorder %s31, 1
      %p54 = por %p52, %p53
      %p56 = scmp.ne.s32.totalorder %s39, %s55
      %p57 = scmp.eq.s32.totalorder %s31, 0
      %p58 = por %p56, %p57
      %s60 = sadd.s32 %s59, 1
      %p63 = scmp.eq.s32.totalorder %s25, 1
      %p64 = scmp.ne.s32.totalorder %s59, %s61
      %p65 = scmp.eq.s32.totalorder %s25, 0
      %p66 = por %p64, %p65
      %p67 = scmp.ne.s32.totalorder %s59, %s61
      %p68 = scmp.eq.s32.totalorder %s30, 1
      %p69 = por %p67, %p68
      %p70 = scmp.ne.s32.totalorder %s61, %s62
      %p71 = scmp.eq.s32.totalorder %s30, 0
      %p72 = por %p70, %p71
      %p73 = scmp.ne.s32.totalorder %s61, %s62
      %p74 = scmp.eq.s32.totalorder %s31, 1
      %p75 = por %p73, %p74
      %p77 = scmp.ne.s32.totalorder %s62, %s76
      %p78 = scmp.eq.s32.totalorder %s31, 0
      %p79 = por %p77, %p78
      %s81 = sadd.s32 %s80, 1
      %p84 = scmp.eq.s32.totalorder %s25, 1
      %p85 = scmp.ne.s32.totalorder %s80, %s82
      %p86 = scmp.eq.s32.totalorder %s25, 0
      %p87 = por %p85, %p86
      %p88 = scmp.ne.s32.totalorder %s80, %s82
      %p89 = scmp.eq.s32.totalorder %s30, 1
      %p90 = por %p88, %p89
      %p91 = scmp.ne.s32.totalorder %s82, %s83
      %p92 = scmp.eq.s32.totalorder %s30, 0
      %p93 = por %p91, %p92
      %p94 = scmp.ne.s32.totalorder %s82, %s83
      %p95 = scmp.eq.s32.totalorder %s31, 1
      %p96 = por %p94, %p95
      %p98 = scmp.ne.s32.totalorder %s83, %s97
      %p99 = scmp.eq.s32.totalorder %s31, 0
      %p100 = por %p98, %p99
      %s102 = sadd.s32 %s101, 1
      %p105 = scmp.eq.s32.totalorder %s25, 1
      %p106 = scmp.ne.s32.totalorder %s101, %s103
      %p107 = scmp.eq.s32.totalorder %s25, 0
      %p108 = por %p106, %p107
      %p109 = scmp.ne.s32.totalorder %s101, %s103
      %p110 = scmp.eq.s32.totalorder %s30, 1
      %p111 = por %p109, %p110
      %p112 = scmp.ne.s32.totalorder %s103, %s104
      %p113 = scmp.eq.s32.totalorder %s30, 0
      %p114 = por %p112, %p113
      %p115 = scmp.ne.s32.totalorder %s103, %s104
      %p116 = scmp.eq.s32.totalorder %s31, 1
      %p117 = por %p115, %p116
      %p119 = scmp.ne.s32.totalorder %s104, %s118
      %p120 = scmp.eq.s32.totalorder %s31, 0
      %p121 = por %p119, %p120
      %s123 = sadd.s32 %s122, 1
      %p126 = scmp.eq.s32.totalorder %s25, 1
      %p127 = scmp.ne.s32.totalorder %s122, %s124
      %p128 = scmp.eq.s32.totalorder %s25, 0
      %p129 = por %p127, %p128
      %p130 = scmp.ne.s32.totalorder %s122, %s124
      %p131 = scmp.eq.s32.totalorder %s30, 1
      %p132 = por %p130, %p131
      %p133 = scmp.ne.s32.totalorder %s124, %s125
      %p134 = scmp.eq.s32.totalorder %s30, 0
      %p135 = por %p133, %p134
      %p136 = scmp.ne.s32.totalorder %s124, %s125
      %p137 = scmp.eq.s32.totalorder %s31, 1
      %p138 = por %p136, %p137
      %p140 = scmp.ne.s32.totalorder %s125, %s139
      %p141 = scmp.eq.s32.totalorder %s31, 0
      %p142 = por %p140, %p141
      %s144 = sadd.s32 %s143, 1
      %p147 = scmp.eq.s32.totalorder %s25, 1
      %p148 = scmp.ne.s32.totalorder %s143, %s145
      %p149 = scmp.eq.s32.totalorder %s25, 0
      %p150 = por %p148, %p149
      %p151 = scmp.ne.s32.totalorder %s143, %s145
      %p152 = scmp.eq.s32.totalorder %s30, 1
      %p153 = por %p151, %p152
      %p154 = scmp.ne.s32.totalorder %s145, %s146
      %p155 = scmp.eq.s32.totalorder %s30, 0
      %p156 = por %p154, %p155
      %p157 = scmp.ne.s32.totalorder %s145, %s146
      %p158 = scmp.eq.s32.totalorder %s31, 1
      %p159 = por %p157, %p158
      %p161 = scmp.ne.s32.totalorder %s146, %s160
      %p162 = scmp.eq.s32.totalorder %s31, 0
      %p163 = por %p161, %p162
      %s165 = sadd.s32 %s164, 1
      %p168 = scmp.eq.s32.totalorder %s25, 1
      %p169 = scmp.ne.s32.totalorder %s164, %s166
      %p170 = scmp.eq.s32.totalorder %s25, 0
      %p171 = por %p169, %p170
      %p172 = scmp.ne.s32.totalorder %s164, %s166
      %p173 = scmp.eq.s32.totalorder %s30, 1
      %p174 = por %p172, %p173
      %p175 = scmp.ne.s32.totalorder %s166, %s167
      %p176 = scmp.eq.s32.totalorder %s30, 0
      %p177 = por %p175, %p176
      %p178 = scmp.ne.s32.totalorder %s166, %s167
      %p179 = scmp.eq.s32.totalorder %s31, 1
      %p180 = por %p178, %p179
      %p182 = scmp.ne.s32.totalorder %s167, %s181
      %p183 = scmp.eq.s32.totalorder %s31, 0
      %p184 = por %p182, %p183
      %s186 = sadd.s32 %s185, 1
      %p189 = scmp.eq.s32.totalorder %s25, 1
      %p190 = scmp.ne.s32.totalorder %s185, %s187
      %p191 = scmp.eq.s32.totalorder %s25, 0
      %p192 = por %p190, %p191
      %p193 = scmp.ne.s32.totalorder %s185, %s187
      %p194 = scmp.eq.s32.totalorder %s30, 1
      %p195 = por %p193, %p194
      %p196 = scmp.ne.s32.totalorder %s187, %s188
      %p197 = scmp.eq.s32.totalorder %s30, 0
      %p198 = por %p196, %p197
      %p199 = scmp.ne.s32.totalorder %s187, %s188
      %p200 = scmp.eq.s32.totalorder %s31, 1
      %p201 = por %p199, %p200
      %p203 = scmp.ne.s32.totalorder %s188, %s202
      %p204 = scmp.eq.s32.totalorder %s31, 0
      %p205 = por %p203, %p204
      %s207 = sadd.s32 %s206, 1
      %p210 = scmp.eq.s32.totalorder %s25, 1
      %p211 = scmp.ne.s32.totalorder %s206, %s208
      %p212 = scmp.eq.s32.totalorder %s25, 0
      %p213 = por %p211, %p212
      %p214 = scmp.ne.s32.totalorder %s206, %s208
      %p215 = scmp.eq.s32.totalorder %s30, 1
      %p216 = por %p214, %p215
      %p217 = scmp.ne.s32.totalorder %s208, %s209
      %p218 = scmp.eq.s32.totalorder %s30, 0
      %p219 = por %p217, %p218
      %p220 = scmp.ne.s32.totalorder %s208, %s209
      %p221 = scmp.eq.s32.totalorder %s31, 1
      %p222 = por %p220, %p221
      %p224 = scmp.ne.s32.totalorder %s209, %s223
      %p225 = scmp.eq.s32.totalorder %s31, 0
      %p226 = por %p224, %p225
      %s228 = sadd.s32 %s227, 1
      %p231 = scmp.eq.s32.totalorder %s25, 1
      %p232 = scmp.ne.s32.totalorder %s227, %s229
      %p233 = scmp.eq.s32.totalorder %s25, 0
      %p234 = por %p232, %p233
      %p235 = scmp.ne.s32.totalorder %s227, %s229
      %p236 = scmp.eq.s32.totalorder %s30, 1
      %p237 = por %p235, %p236
      %p238 = scmp.ne.s32.totalorder %s229, %s230
      %p239 = scmp.eq.s32.totalorder %s30, 0
      %p240 = por %p238, %p239
      %p241 = scmp.ne.s32.totalorder %s229, %s230
      %p242 = scmp.eq.s32.totalorder %s31, 1
      %p243 = por %p241, %p242
      %p245 = scmp.ne.s32.totalorder %s230, %s244
      %p246 = scmp.eq.s32.totalorder %s31, 0
      %p247 = por %p245, %p246
      %s249 = sadd.s32 %s248, 1
      %p252 = scmp.eq.s32.totalorder %s25, 1
      %p253 = scmp.ne.s32.totalorder %s248, %s250
      %p254 = scmp.eq.s32.totalorder %s25, 0
      %p255 = por %p253, %p254
      %p256 = scmp.ne.s32.totalorder %s248, %s250
      %p257 = scmp.eq.s32.totalorder %s30, 1
      %p258 = por %p256, %p257
      %p259 = scmp.ne.s32.totalorder %s250, %s251
      %p260 = scmp.eq.s32.totalorder %s30, 0
      %p261 = por %p259, %p260
      %p262 = scmp.ne.s32.totalorder %s250, %s251
      %p263 = scmp.eq.s32.totalorder %s31, 1
      %p264 = por %p262, %p263
      %p266 = scmp.ne.s32.totalorder %s251, %s265
      %p267 = scmp.eq.s32.totalorder %s31, 0
      %p268 = por %p266, %p267
      %s270 = sadd.s32 %s269, 1
      %p273 = scmp.eq.s32.totalorder %s25, 1
      %p274 = scmp.ne.s32.totalorder %s269, %s271
      %p275 = scmp.eq.s32.totalorder %s25, 0
      %p276 = por %p274, %p275
      %p277 = scmp.ne.s32.totalorder %s269, %s271
      %p278 = scmp.eq.s32.totalorder %s30, 1
      %p279 = por %p277, %p278
      %p280 = scmp.ne.s32.totalorder %s271, %s272
      %p281 = scmp.eq.s32.totalorder %s30, 0
      %p282 = por %p280, %p281
      %p283 = scmp.ne.s32.totalorder %s271, %s272
      %p284 = scmp.eq.s32.totalorder %s31, 1
      %p285 = por %p283, %p284
      %p287 = scmp.ne.s32.totalorder %s272, %s286
      %p288 = scmp.eq.s32.totalorder %s31, 0
      %p289 = por %p287, %p288
      %s291 = sadd.s32 %s290, 1
      %p294 = scmp.eq.s32.totalorder %s25, 1
      %p295 = scmp.ne.s32.totalorder %s290, %s292
      %p296 = scmp.eq.s32.totalorder %s25, 0
      %p297 = por %p295, %p296
      %p298 = scmp.ne.s32.totalorder %s290, %s292
      %p299 = scmp.eq.s32.totalorder %s30, 1
      %p300 = por %p298, %p299
      %p301 = scmp.ne.s32.totalorder %s292, %s293
      %p302 = scmp.eq.s32.totalorder %s30, 0
      %p303 = por %p301, %p302
      %p304 = scmp.ne.s32.totalorder %s292, %s293
      %p305 = scmp.eq.s32.totalorder %s31, 1
      %p306 = por %p304, %p305
      %p308 = scmp.ne.s32.totalorder %s293, %s307
      %p309 = scmp.eq.s32.totalorder %s31, 0
      %p310 = por %p308, %p309
      %s311 = ssub.s32 %s25, %s32
      %p312 = scmp.eq.s32.totalorder %s311, 0
      %s314 = sadd.s32 %s313, 1
      %s315 = scalar_select %p312, %s313, %s314
      %p318 = pneg %p312
      %p319 = scmp.eq.s32.totalorder %s25, 1
      %p320 = por %p318, %p319
      %p321 = scmp.ne.s32.totalorder %s313, %s316
      %p322 = scmp.eq.s32.totalorder %s25, 0
      %p323 = por %p321, %p322
      %p324 = scmp.ne.s32.totalorder %s313, %s316
      %p325 = scmp.eq.s32.totalorder %s30, 1
      %p326 = por %p324, %p325
      %p327 = scmp.ne.s32.totalorder %s316, %s317
      %p328 = scmp.eq.s32.totalorder %s30, 0
      %p329 = por %p327, %p328
      %p330 = scmp.ne.s32.totalorder %s316, %s317
      %p331 = scmp.eq.s32.totalorder %s31, 1
      %p332 = por %p330, %p331
      %p334 = scmp.ne.s32.totalorder %s317, %s333
      %p335 = scmp.eq.s32.totalorder %s31, 0
      %p336 = por %p334, %p335
      %p337 = scmp.le.s32.totalorder 1, %s25
      %p338 = scmp.lt.s32.totalorder %s25, 3
      %p339 = pnand %p337, %p338
      %p340 = pneg %p339
      // Predicated region
      $region9: #{net_forward.1} parent=5 // pred_check
        _
      $region10: #{net_forward.1} parent=5 // pred_check_branch
        %342 = sbr.rel (%p339) target = $region12
      $region11: #{net_forward.1} parent=5 // pred_region
        %s343 = ssub.s32 %s25, 1
        // Predicated region
        $region13: #{net_forward.1} parent=11 // pred_check
          %p344 = pneg %p72
        $region14: #{net_forward.1} parent=11 // pred_check_branch
          %346 = sbr.rel (%p344) target = $region16
        $region15: #{net_forward.1} parent=11 // pred_region
          _
        $region16: #{net_forward.1} parent=11 // pred_fallthru
          _
        // Predicated region
        $region17: #{net_forward.1} parent=11 // pred_check
          %p347 = pneg %p93
        $region18: #{net_forward.1} parent=11 // pred_check_branch
          %349 = sbr.rel (%p347) target = $region20
        $region19: #{net_forward.1} parent=11 // pred_region
          _
        $region20: #{net_forward.1} parent=11 // pred_fallthru
          _
        // Predicated region
        $region21: #{net_forward.1} parent=11 // pred_check
          %p350 = pneg %p114
        $region22: #{net_forward.1} parent=11 // pred_check_branch
          %352 = sbr.rel (%p350) target = $region24
        $region23: #{net_forward.1} parent=11 // pred_region
          %s354 = ssub.s32 384, 384
          %355 = vsyncadd [#allocation3], %s354
          %s356 = sshll.u32 [#allocation2], 4
          %s357 = int_to_ptr.vmem [resolvable:$true] %s356
          %362 = dma.hbm_to_vmem [thread:$0]  %s3, 384, %s357, [#allocation3], 64, 64, 4
        $region24: #{net_forward.1} parent=11 // pred_fallthru
          _
        // Predicated region
        $region25: #{net_forward.1} parent=11 // pred_check
          %p363 = pneg %p135
        $region26: #{net_forward.1} parent=11 // pred_check_branch
          %365 = sbr.rel (%p363) target = $region28
        $region27: #{net_forward.1} parent=11 // pred_region
          %s367 = ssub.s32 16320, 16320
          %368 = vsyncadd [#allocation6], %s367
          %s369 = sshll.u32 [#allocation5], 4
          %s370 = int_to_ptr.vmem [resolvable:$true] %s369
          %375 = dma.hbm_to_vmem [thread:$0]  %s4, 16320, %s370, [#allocation6], 192, 192, 12
        $region28: #{net_forward.1} parent=11 // pred_fallthru
          _
        // Predicated region
        $region29: #{net_forward.1} parent=11 // pred_check
          %p376 = pneg %p156
        $region30: #{net_forward.1} parent=11 // pred_check_branch
          %378 = sbr.rel (%p376) target = $region32
        $region31: #{net_forward.1} parent=11 // pred_region
          _
        $region32: #{net_forward.1} parent=11 // pred_fallthru
          _
        // Predicated region
        $region33: #{net_forward.1} parent=11 // pred_check
          %p379 = pneg %p177
        $region34: #{net_forward.1} parent=11 // pred_check_branch
          %381 = sbr.rel (%p379) target = $region36
        $region35: #{net_forward.1} parent=11 // pred_region
          %s383 = ssub.s32 192, 192
          %384 = vsyncadd [#allocation6], %s383
          %s385 = sshll.u32 [#allocation7], 4
          %s386 = int_to_ptr.vmem [resolvable:$true] %s385
          %391 = dma.hbm_to_vmem [thread:$0]  %s6, 192, %s386, [#allocation6], 64, 64, 4
        $region36: #{net_forward.1} parent=11 // pred_fallthru
          _
        // Predicated region
        $region37: #{net_forward.1} parent=11 // pred_check
          %p392 = pneg %p198
        $region38: #{net_forward.1} parent=11 // pred_check_branch
          %394 = sbr.rel (%p392) target = $region40
        $region39: #{net_forward.1} parent=11 // pred_region
          %s396 = ssub.s32 10368, 10368
          %397 = vsyncadd [#allocation9], %s396
          %s398 = sshll.u32 [#allocation8], 4
          %s399 = int_to_ptr.vmem [resolvable:$true] %s398
          %404 = dma.hbm_to_vmem [thread:$0]  %s7, 10368, %s399, [#allocation9], 64, 64, 4
        $region40: #{net_forward.1} parent=11 // pred_fallthru
          _
        // Predicated region
        $region41: #{net_forward.1} parent=11 // pred_check
          %p405 = pneg %p219
        $region42: #{net_forward.1} parent=11 // pred_check_branch
          %407 = sbr.rel (%p405) target = $region44
        $region43: #{net_forward.1} parent=11 // pred_region
          _
        $region44: #{net_forward.1} parent=11 // pred_fallthru
          _
        // Predicated region
        $region45: #{net_forward.1} parent=11 // pred_check
          %p408 = pneg %p240
        $region46: #{net_forward.1} parent=11 // pred_check_branch
          %410 = sbr.rel (%p408) target = $region48
        $region47: #{net_forward.1} parent=11 // pred_region
          _
        $region48: #{net_forward.1} parent=11 // pred_fallthru
          _
        // Predicated region
        $region49: #{net_forward.1} parent=11 // pred_check
          %p411 = pneg %p261
        $region50: #{net_forward.1} parent=11 // pred_check_branch
          %413 = sbr.rel (%p411) target = $region52
        $region51: #{net_forward.1} parent=11 // pred_region
          _
        $region52: #{net_forward.1} parent=11 // pred_fallthru
          _
        // Predicated region
        $region53: #{net_forward.1} parent=11 // pred_check
          %p414 = pneg %p282
        $region54: #{net_forward.1} parent=11 // pred_check_branch
          %416 = sbr.rel (%p414) target = $region56
        $region55: #{net_forward.1} parent=11 // pred_region
          _
        $region56: #{net_forward.1} parent=11 // pred_fallthru
          _
        // Predicated region
        $region57: #{net_forward.1} parent=11 // pred_check
          %p417 = pneg %p303
        $region58: #{net_forward.1} parent=11 // pred_check_branch
          %419 = sbr.rel (%p417) target = $region60
        $region59: #{net_forward.1} parent=11 // pred_region
          %s421 = ssub.s32 16, 16
          %422 = vsyncadd [#allocation9], %s421
          %s424 = sshll.u32 [#allocation10], 4
          %s425 = int_to_ptr.vmem [resolvable:$true] %s424
          %427 = dma.hbm_to_vmem [thread:$0]  %s12, 16, %s425, [#allocation9]
        $region60: #{net_forward.1} parent=11 // pred_fallthru
          _
      $region12: #{net_forward.1} parent=5 // pred_fallthru
        _
      %p428 = scmp.lt.s32.totalorder %s25, 2
      // Predicated region
      $region61: #{net_forward.1} parent=5 // pred_check
        %p429 = pneg %p428
      $region62: #{net_forward.1} parent=5 // pred_check_branch
        %431 = sbr.rel (%p429) target = $region64
      $region63: #{net_forward.1} parent=5 // pred_region
        // Predicated region
        $region65: #{net_forward.1} parent=63 // pred_check
          %p432 = pneg %p45
        $region66: #{net_forward.1} parent=63 // pred_check_branch
          %434 = sbr.rel (%p432) target = $region68
        $region67: #{net_forward.1} parent=63 // pred_region
          %p435 = scmp.lt.s32.totalorder %s25, 1
          %s436 = scalar_select %p435, %s25, 1
          %s437 = smul.addr %s436, 12
          %s438 = smul.addr %s437, 4
          %s439 = scalar_lea.vmem %s0, %s438
        $region68: #{net_forward.1} parent=63 // pred_fallthru
          _
      $region64: #{net_forward.1} parent=5 // pred_fallthru
        _
      %p440 = scmp.le.s32.totalorder 1, %s25
      %p441 = scmp.lt.s32.totalorder %s25, 3
      %p442 = pnand %p440, %p441
      %p443 = pneg %p442
      // Predicated region
      $region69: #{net_forward.1} parent=5 // pred_check
        _
      $region70: #{net_forward.1} parent=5 // pred_check_branch
        %445 = sbr.rel (%p442) target = $region72
      $region71: #{net_forward.1} parent=5 // pred_region
        %s446 = ssub.s32 %s25, 1
        // Predicated region
        $region73: #{net_forward.1} parent=71 // pred_check
          %p447 = pneg %p114
        $region74: #{net_forward.1} parent=71 // pred_check_branch
          %449 = sbr.rel (%p447) target = $region76
        $region75: #{net_forward.1} parent=71 // pred_region
          %450 = dma.done [#allocation3], 384
        $region76: #{net_forward.1} parent=71 // pred_fallthru
          _
        // Predicated region
        $region77: #{net_forward.1} parent=71 // pred_check
          %p451 = pneg %p135
        $region78: #{net_forward.1} parent=71 // pred_check_branch
          %453 = sbr.rel (%p451) target = $region80
        $region79: #{net_forward.1} parent=71 // pred_region
          %454 = dma.done [#allocation6], 16320
        $region80: #{net_forward.1} parent=71 // pred_fallthru
          _
        // Predicated region
        $region81: #{net_forward.1} parent=71 // pred_check
          %p455 = pneg %p177
        $region82: #{net_forward.1} parent=71 // pred_check_branch
          %457 = sbr.rel (%p455) target = $region84
        $region83: #{net_forward.1} parent=71 // pred_region
          %458 = dma.done [#allocation6], 192
        $region84: #{net_forward.1} parent=71 // pred_fallthru
          _
        // Predicated region
        $region85: #{net_forward.1} parent=71 // pred_check
          %p459 = pneg %p198
        $region86: #{net_forward.1} parent=71 // pred_check_branch
          %461 = sbr.rel (%p459) target = $region88
        $region87: #{net_forward.1} parent=71 // pred_region
          %462 = dma.done [#allocation9], 10368
        $region88: #{net_forward.1} parent=71 // pred_fallthru
          _
        // Predicated region
        $region89: #{net_forward.1} parent=71 // pred_check
          %p463 = pneg %p303
        $region90: #{net_forward.1} parent=71 // pred_check_branch
          %465 = sbr.rel (%p463) target = $region92
        $region91: #{net_forward.1} parent=71 // pred_region
          %466 = dma.done [#allocation9], 16
        $region92: #{net_forward.1} parent=71 // pred_fallthru
          _
        %p467 = scmp.lt.s32.totalorder %s30, 1
        %s468 = scalar_select %p467, %s30, 1
        %s469 = smul.addr %s468, 12
        %s470 = smul.addr %s469, 4
        %s471 = scalar_lea.vmem %s0, %s470
        %p472 = pneg %p51
        %p473 = pneg %p48
        %p474 = pneg %p72
        %p475 = pneg %p69
        %p476 = pneg %p93
        %p477 = pneg %p90
        %p478 = pneg %p114
        %p479 = pneg %p111
        %p480 = pneg %p135
        %p481 = pneg %p132
        %p482 = pneg %p156
        %p483 = pneg %p153
        %p484 = pneg %p177
        %p485 = pneg %p174
        %p486 = pneg %p198
        %p487 = pneg %p195
        %p488 = pneg %p219
        %p489 = pneg %p216
        %p490 = pneg %p240
        %p491 = pneg %p237
        %p492 = pneg %p261
        %p493 = pneg %p258
        %p494 = pneg %p282
        %p495 = pneg %p279
        %p496 = pneg %p303
        %p497 = pneg %p300
        %p498 = pneg %p329
        %p499 = pneg %p326
        %s500 = sand.u32 %s316, 1
        %s501 = scalar_lea.sflag [#allocation4], %s500
        %s502 = sand.u32 %s316, 1
        %s503 = scalar_lea.vmem [#allocation11], %s502
        %p504 = scmp.lt.s32.totalorder %s30, 1
        %s505 = scalar_select %p504, %s30, 1
        %s506 = smul.addr %s505, 12
        %s507 = smul.addr %s506, 4
        %s508 = scalar_lea.vmem %s0, %s507
        %v510 = vld [vmem:[%s508] sm:$0xff]
        %v511 = vld [vmem:[%s508 + $0x8] sm:$0xff]
        %v512 = vld [vmem:[%s508 + $0x10] sm:$0xff]
        %v513 = vld [vmem:[%s508 + $0x18] sm:$0xff]
        %v514 = vld [vmem:[%s508 + $0x20] sm:$0xff]
        %v515 = vld [vmem:[%s508 + $0x28] sm:$0xff]
        %v516 = vld [vmem:[%s1] sm:$0xff]
        %v517 = vld [vmem:[%s1 + $0x8] sm:$0xf]
        %v518 = vld [vmem:[%s1 + $0xc] sm:$0xff]
        %v519 = vld [vmem:[%s1 + $0x14] sm:$0xf]
        %v520 = vld [vmem:[%s1 + $0x18] sm:$0xff]
        %v521 = vld [vmem:[%s1 + $0x20] sm:$0xf]
        %v522 = vld [vmem:[%s1 + $0x24] sm:$0xff]
        %v523 = vld [vmem:[%s1 + $0x2c] sm:$0xf]
        %v524 = vld [vmem:[%s1 + $0x30] sm:$0xff]
        %v525 = vld [vmem:[%s1 + $0x38] sm:$0xf]
        %v526 = vld [vmem:[%s1 + $0x3c] sm:$0xff]
        %v527 = vld [vmem:[%s1 + $0x44] sm:$0xf]
        %v528 = vld [vmem:[%s1 + $0x48] sm:$0xff]
        %v529 = vld [vmem:[%s1 + $0x50] sm:$0xf]
        %v530 = vld [vmem:[%s1 + $0x54] sm:$0xff]
        %v531 = vld [vmem:[%s1 + $0x5c] sm:$0xf]
        %v532 = vld [vmem:[%s1 + $0x60] sm:$0xff]
        %v533 = vld [vmem:[%s1 + $0x68] sm:$0xf]
        %v534 = vld [vmem:[%s1 + $0x6c] sm:$0xff]
        %v535 = vld [vmem:[%s1 + $0x74] sm:$0xf]
        %v536 = vld [vmem:[%s1 + $0x78] sm:$0xff]
        %v537 = vld [vmem:[%s1 + $0x80] sm:$0xf]
        %v538 = vld [vmem:[%s1 + $0x84] sm:$0xff]
        %v539 = vld [vmem:[%s1 + $0x8c] sm:$0xf]
        %v540 = vld [vmem:[%s1 + $0x90] sm:$0xff]
        %v541 = vld [vmem:[%s1 + $0x98] sm:$0xf]
        %v542 = vld [vmem:[%s1 + $0x9c] sm:$0xff]
        %v543 = vld [vmem:[%s1 + $0xa4] sm:$0xf]
        %v544 = vld [vmem:[%s1 + $0xa8] sm:$0xff]
        %v545 = vld [vmem:[%s1 + $0xb0] sm:$0xf]
        %v546 = vld [vmem:[%s1 + $0xb4] sm:$0xff]
        %v547 = vld [vmem:[%s1 + $0xbc] sm:$0xf]
        %v548 = vld [vmem:[%s1 + $0xc0] sm:$0xff]
        %v549 = vld [vmem:[%s1 + $0xc8] sm:$0xf]
        %v550 = vld [vmem:[%s1 + $0xcc] sm:$0xff]
        %v551 = vld [vmem:[%s1 + $0xd4] sm:$0xf]
        %s552 = scalar_lea.vmem %s1, 216
        %v553 = vld [vmem:[%s552] sm:$0xff]
        %v554 = vld [vmem:[%s552 + $0x8] sm:$0xf]
        %v555 = vld [vmem:[%s552 + $0xc] sm:$0xff]
        %v556 = vld [vmem:[%s552 + $0x14] sm:$0xf]
        %v557 = vld [vmem:[%s552 + $0x18] sm:$0xff]
        %v558 = vld [vmem:[%s552 + $0x20] sm:$0xf]
        %v559 = vld [vmem:[%s552 + $0x24] sm:$0xff]
        %v560 = vld [vmem:[%s552 + $0x2c] sm:$0xf]
        %v561 = vld [vmem:[%s552 + $0x30] sm:$0xff]
        %v562 = vld [vmem:[%s552 + $0x38] sm:$0xf]
        %v563 = vld [vmem:[%s552 + $0x3c] sm:$0xff]
        %v564 = vld [vmem:[%s552 + $0x44] sm:$0xf]
        %v565 = vld [vmem:[%s552 + $0x48] sm:$0xff]
        %v566 = vld [vmem:[%s552 + $0x50] sm:$0xf]
        %v567 = vld [vmem:[%s552 + $0x54] sm:$0xff]
        %v568 = vld [vmem:[%s552 + $0x5c] sm:$0xf]
        %v569 = vld [vmem:[%s552 + $0x60] sm:$0xff]
        %v570 = vld [vmem:[%s552 + $0x68] sm:$0xf]
        %v571 = vld [vmem:[%s552 + $0x6c] sm:$0xff]
        %v572 = vld [vmem:[%s552 + $0x74] sm:$0xf]
        %v573 = vld [vmem:[%s552 + $0x78] sm:$0xff]
        %v574 = vld [vmem:[%s552 + $0x80] sm:$0xf]
        %v575 = vld [vmem:[%s552 + $0x84] sm:$0xff]
        %v576 = vld [vmem:[%s552 + $0x8c] sm:$0xf]
        %v577 = vld [vmem:[%s552 + $0x90] sm:$0xff]
        %v578 = vld [vmem:[%s552 + $0x98] sm:$0xf]
        %v579 = vld [vmem:[%s552 + $0x9c] sm:$0xff]
        %v580 = vld [vmem:[%s552 + $0xa4] sm:$0xf]
        %v581 = vld [vmem:[%s552 + $0xa8] sm:$0xff]
        %v582 = vld [vmem:[%s552 + $0xb0] sm:$0xf]
        %v583 = vld [vmem:[%s552 + $0xb4] sm:$0xff]
        %v584 = vld [vmem:[%s552 + $0xbc] sm:$0xf]
        %v585 = vld [vmem:[%s552 + $0xc0] sm:$0xff]
        %v586 = vld [vmem:[%s552 + $0xc8] sm:$0xf]
        %v587 = vld [vmem:[%s552 + $0xcc] sm:$0xff]
        %v588 = vld [vmem:[%s552 + $0xd4] sm:$0xf]
        %v595 = vunpack.c.l.b16 %v510
        %v596 = vunpack.c.h.b16 %v510
        %v597 = vunpack.c.l.b16 %v511
        %v598 = vunpack.c.h.b16 %v511
        %v599 = vunpack.c.l.b16 %v512
        %v600 = vunpack.c.h.b16 %v512
        %v601 = vunpack.c.l.b16 %v513
        %v602 = vunpack.c.h.b16 %v513
        %v603 = vunpack.c.l.b16 %v514
        %v604 = vunpack.c.h.b16 %v514
        %v605 = vunpack.c.l.b16 %v515
        %v606 = vunpack.c.h.b16 %v515
        %v607 = vpack.c.b16 %v597, %v595
        %v608 = vpack.c.b16 %v598, %v596
        %v609 = vpack.c.b16 %v601, %v599
        %v610 = vpack.c.b16 %v602, %v600
        %v611 = vpack.c.b16 %v605, %v603
        %v612 = vpack.c.b16 %v606, %v604
        %vm613 = vsmask.f32 7424
        %v615 = vshrl.u32 %v607, 16
        %v617 = vshll.u32 %v607, 16
        %v619 = vrot.slane %v617, 1
        %v620 = vor.u32 %v615, %v619
        %v622 = vshll.u32 %v609, 16
        %v624 = vrot.slane %v622, 1
        %v625 = vsel %vm613, %v620, %v624
        %v627 = vshrl.u32 %v608, 16
        %v629 = vshll.u32 %v608, 16
        %v631 = vrot.slane %v629, 1
        %v632 = vor.u32 %v627, %v631
        %v634 = vshll.u32 %v610, 16
        %v636 = vrot.slane %v634, 1
        %v637 = vsel %vm613, %v632, %v636
        %v638 = vshrl.u32 %v609, 16
        %v640 = vor.u32 %v638, %v624
        %v642 = vshll.u32 %v611, 16
        %v644 = vrot.slane %v642, 1
        %v645 = vsel %vm613, %v640, %v644
        %v646 = vshrl.u32 %v610, 16
        %v648 = vor.u32 %v646, %v636
        %v650 = vshll.u32 %v612, 16
        %v652 = vrot.slane %v650, 1
        %v653 = vsel %vm613, %v648, %v652
        %v654 = vshrl.u32 %v611, 16
        %v656 = vor.u32 %v654, %v644
        %v657 = vshrl.u32 %v612, 16
        %v659 = vor.u32 %v657, %v652
        %v699 = vunpack.c.l.b16 %v553
        %v700 = vunpack.c.h.b16 %v553
        %v701 = vunpack.c.l.b16 %v554
        %v702 = vunpack.c.l.b16 %v555
        %v703 = vunpack.c.h.b16 %v555
        %v704 = vunpack.c.l.b16 %v556
        %v705 = vunpack.c.l.b16 %v557
        %v706 = vunpack.c.h.b16 %v557
        %v707 = vunpack.c.l.b16 %v558
        %v708 = vunpack.c.l.b16 %v559
        %v709 = vunpack.c.h.b16 %v559
        %v710 = vunpack.c.l.b16 %v560
        %v711 = vunpack.c.l.b16 %v561
        %v712 = vunpack.c.h.b16 %v561
        %v713 = vunpack.c.l.b16 %v562
        %v714 = vunpack.c.l.b16 %v563
        %v715 = vunpack.c.h.b16 %v563
        %v716 = vunpack.c.l.b16 %v564
        %v717 = vunpack.c.l.b16 %v565
        %v718 = vunpack.c.h.b16 %v565
        %v719 = vunpack.c.l.b16 %v566
        %v720 = vunpack.c.l.b16 %v567
        %v721 = vunpack.c.h.b16 %v567
        %v722 = vunpack.c.l.b16 %v568
        %v723 = vunpack.c.l.b16 %v569
        %v724 = vunpack.c.h.b16 %v569
        %v725 = vunpack.c.l.b16 %v570
        %v726 = vunpack.c.l.b16 %v571
        %v727 = vunpack.c.h.b16 %v571
        %v728 = vunpack.c.l.b16 %v572
        %v729 = vunpack.c.l.b16 %v573
        %v730 = vunpack.c.h.b16 %v573
        %v731 = vunpack.c.l.b16 %v574
        %v732 = vunpack.c.l.b16 %v575
        %v733 = vunpack.c.h.b16 %v575
        %v734 = vunpack.c.l.b16 %v576
        %v735 = vunpack.c.l.b16 %v577
        %v736 = vunpack.c.h.b16 %v577
        %v737 = vunpack.c.l.b16 %v578
        %v738 = vunpack.c.l.b16 %v579
        %v739 = vunpack.c.h.b16 %v579
        %v740 = vunpack.c.l.b16 %v580
        %v741 = vunpack.c.l.b16 %v581
        %v742 = vunpack.c.h.b16 %v581
        %v743 = vunpack.c.l.b16 %v582
        %v744 = vunpack.c.l.b16 %v583
        %v745 = vunpack.c.h.b16 %v583
        %v746 = vunpack.c.l.b16 %v584
        %v747 = vunpack.c.l.b16 %v585
        %v748 = vunpack.c.h.b16 %v585
        %v749 = vunpack.c.l.b16 %v586
        %v750 = vunpack.c.l.b16 %v587
        %v751 = vunpack.c.h.b16 %v587
        %v752 = vunpack.c.l.b16 %v588
        %v753 = vpack.c.b16 %v702, %v699
        %v754 = vpack.c.b16 %v703, %v700
        %v755 = vpack.c.b16 %v704, %v701
        %v756 = vpack.c.b16 %v708, %v705
        %v757 = vpack.c.b16 %v709, %v706
        %v758 = vpack.c.b16 %v710, %v707
        %v759 = vpack.c.b16 %v714, %v711
        %v760 = vpack.c.b16 %v715, %v712
        %v761 = vpack.c.b16 %v716, %v713
        %v762 = vpack.c.b16 %v720, %v717
        %v763 = vpack.c.b16 %v721, %v718
        %v764 = vpack.c.b16 %v722, %v719
        %v765 = vpack.c.b16 %v726, %v723
        %v766 = vpack.c.b16 %v727, %v724
        %v767 = vpack.c.b16 %v728, %v725
        %v768 = vpack.c.b16 %v732, %v729
        %v769 = vpack.c.b16 %v733, %v730
        %v770 = vpack.c.b16 %v734, %v731
        %v771 = vpack.c.b16 %v738, %v735
        %v772 = vpack.c.b16 %v739, %v736
        %v773 = vpack.c.b16 %v740, %v737
        %v774 = vpack.c.b16 %v744, %v741
        %v775 = vpack.c.b16 %v745, %v742
        %v776 = vpack.c.b16 %v746, %v743
        %v777 = vpack.c.b16 %v750, %v747
        %v778 = vpack.c.b16 %v751, %v748
        %v779 = vpack.c.b16 %v752, %v749
        %vm807 = vcmask 130048
        %v809 = vsel %vm807, %v637, 0
        %v812 = vsel %vm807, %v653, 0
        %v815 = vsel %vm807, %v659, 0
        %817 = vmatprep.subr.bf16.mxu0 %v754
        %818 = vmatpush1.bf16.msra.mxu0 %v753
        %819 = vmatprep.subr.bf16.mxu0 %v757
        %820 = vmatpush1.bf16.msra.mxu0 %v756
        %821 = vmatprep.subr.bf16.mxu0 %v760
        %822 = vmatpush1.bf16.msra.mxu0 %v759
        %823 = vmatprep.subr.bf16.mxu0 %v763
        %824 = vmatpush1.bf16.msra.mxu0 %v762
        %825 = vmatprep.subr.bf16.mxu0 %v766
        %826 = vmatpush1.bf16.msra.mxu0 %v765
        %827 = vmatprep.subr.bf16.mxu0 %v769
        %828 = vmatpush1.bf16.msra.mxu0 %v768
        %829 = vmatprep.subr.bf16.mxu0 %v772
        %830 = vmatpush1.bf16.msra.mxu0 %v771
        %831 = vmatprep.subr.bf16.mxu0 %v775
        %832 = vmatpush1.bf16.msra.mxu0 %v774
        %833 = vmatprep.subr.bf16.mxu0 %v778
        %834 = vmatpush1.bf16.msra.mxu0 %v777
        %835 = vmatprep.subr.bf16.mxu0 0
        %836 = vmatpush1.bf16.msra.mxu0 0
        %837 = vmatprep.subr.bf16.mxu0 0
        %838 = vmatpush1.bf16.msra.mxu0 0
        %839 = vmatprep.subr.bf16.mxu0 0
        %840 = vmatpush1.bf16.msra.mxu0 0
        %841 = vmatprep.subr.bf16.mxu0 0
        %842 = vmatpush1.bf16.msra.mxu0 0
        %843 = vmatprep.subr.bf16.mxu0 0
        %844 = vmatpush1.bf16.msra.mxu0 0
        %845 = vmatprep.subr.bf16.mxu0 0
        %846 = vmatpush1.bf16.msra.mxu0 0
        %847 = vmatprep.subr.bf16.mxu0 0
        %848 = vmatpush1.bf16.msra.mxu0 0
        %849 = vmatprep.mubr.bf16.mxu0 %v809
        %850 = vmatmul.mubr.bf16.gmra.mrb[0].mxu0 %v625
        %v851 = vpop.f32.mrb[0].mxu0
        %v852 = vadd.f32 0.0, %v851
        %v853 = vpop.f32.mrb[0].mxu0
        %v854 = vadd.f32 0.0, %v853
        %v855 = vpop.f32.mrb[0].mxu0
        %v856 = vadd.f32 0.0, %v855
        %v857 = vpop.f32.mrb[0].mxu0
        %v858 = vadd.f32 0.0, %v857
        %859 = vmatprep.mubr.bf16.mxu0 %v812
        %860 = vmatmul.mubr.bf16.gmra.mrb[0].mxu0 %v645
        %v861 = vpop.f32.mrb[0].mxu0
        %v862 = vadd.f32 0.0, %v861
        %v863 = vpop.f32.mrb[0].mxu0
        %v864 = vadd.f32 0.0, %v863
        %v865 = vpop.f32.mrb[0].mxu0
        %v866 = vadd.f32 0.0, %v865
        %v867 = vpop.f32.mrb[0].mxu0
        %v868 = vadd.f32 0.0, %v867
        %869 = vmatprep.mubr.bf16.mxu0 %v815
        %870 = vmatmul.mubr.bf16.gmra.mrb[0].mxu0 %v656
        %v871 = vpop.f32.mrb[0].mxu0
        %v872 = vadd.f32 0.0, %v871
        %v873 = vpop.f32.mrb[0].mxu0
        %v874 = vadd.f32 0.0, %v873
        %v875 = vpop.f32.mrb[0].mxu0
        %v876 = vadd.f32 0.0, %v875
        %v877 = vpop.f32.mrb[0].mxu0
        %v878 = vadd.f32 0.0, %v877
        %879 = vdwg.mxu0
        %880 = vmatprep.subr.bf16.mxu0 0
        %881 = vmatpush1.bf16.msra.mxu0 %v755
        %882 = vmatprep.subr.bf16.mxu0 0
        %883 = vmatpush1.bf16.msra.mxu0 %v758
        %884 = vmatprep.subr.bf16.mxu0 0
        %885 = vmatpush1.bf16.msra.mxu0 %v761
        %886 = vmatprep.subr.bf16.mxu0 0
        %887 = vmatpush1.bf16.msra.mxu0 %v764
        %888 = vmatprep.subr.bf16.mxu0 0
        %889 = vmatpush1.bf16.msra.mxu0 %v767
        %890 = vmatprep.subr.bf16.mxu0 0
        %891 = vmatpush1.bf16.msra.mxu0 %v770
        %892 = vmatprep.subr.bf16.mxu0 0
        %893 = vmatpush1.bf16.msra.mxu0 %v773
        %894 = vmatprep.subr.bf16.mxu0 0
        %895 = vmatpush1.bf16.msra.mxu0 %v776
        %896 = vmatprep.subr.bf16.mxu0 0
        %897 = vmatpush1.bf16.msra.mxu0 %v779
        %898 = vmatprep.subr.bf16.mxu0 0
        %899 = vmatpush1.bf16.msra.mxu0 0
        %900 = vmatprep.subr.bf16.mxu0 0
        %901 = vmatpush1.bf16.msra.mxu0 0
        %902 = vmatprep.subr.bf16.mxu0 0
        %903 = vmatpush1.bf16.msra.mxu0 0
        %904 = vmatprep.subr.bf16.mxu0 0
        %905 = vmatpush1.bf16.msra.mxu0 0
        %906 = vmatprep.subr.bf16.mxu0 0
        %907 = vmatpush1.bf16.msra.mxu0 0
        %908 = vmatprep.subr.bf16.mxu0 0
        %909 = vmatpush1.bf16.msra.mxu0 0
        %910 = vmatprep.subr.bf16.mxu0 0
        %911 = vmatpush1.bf16.msra.mxu0 0
        %912 = vmatprep.mubr.bf16.mxu0 %v809
        %913 = vmatmul.mubr.bf16.gmra.mrb[0].mxu0 %v625
        %v914 = vpop.f32.mrb[0].mxu0
        %v915 = vadd.f32 0.0, %v914
        %v916 = vpop.f32.mrb[0].mxu0
        %v917 = vpop.f32.mrb[0].mxu0
        %v918 = vadd.f32 0.0, %v917
        %v919 = vpop.f32.mrb[0].mxu0
        %920 = vmatprep.mubr.bf16.mxu0 %v812
        %921 = vmatmul.mubr.bf16.gmra.mrb[0].mxu0 %v645
        %v922 = vpop.f32.mrb[0].mxu0
        %v923 = vadd.f32 0.0, %v922
        %v924 = vpop.f32.mrb[0].mxu0
        %v925 = vpop.f32.mrb[0].mxu0
        %v926 = vadd.f32 0.0, %v925
        %v927 = vpop.f32.mrb[0].mxu0
        %928 = vmatprep.mubr.bf16.mxu0 %v815
        %929 = vmatmul.mubr.bf16.gmra.mrb[0].mxu0 %v656
        %v930 = vpop.f32.mrb[0].mxu0
        %v931 = vadd.f32 0.0, %v930
        %v932 = vpop.f32.mrb[0].mxu0
        %v933 = vpop.f32.mrb[0].mxu0
        %v934 = vadd.f32 0.0, %v933
        %v935 = vpop.f32.mrb[0].mxu0
        %936 = vdwg.mxu0
        %v976 = vunpack.c.l.b16 %v516
        %v977 = vunpack.c.h.b16 %v516
        %v978 = vunpack.c.l.b16 %v517
        %v979 = vunpack.c.l.b16 %v518
        %v980 = vunpack.c.h.b16 %v518
        %v981 = vunpack.c.l.b16 %v519
        %v982 = vunpack.c.l.b16 %v520
        %v983 = vunpack.c.h.b16 %v520
        %v984 = vunpack.c.l.b16 %v521
        %v985 = vunpack.c.l.b16 %v522
        %v986 = vunpack.c.h.b16 %v522
        %v987 = vunpack.c.l.b16 %v523
        %v988 = vunpack.c.l.b16 %v524
        %v989 = vunpack.c.h.b16 %v524
        %v990 = vunpack.c.l.b16 %v525
        %v991 = vunpack.c.l.b16 %v526
        %v992 = vunpack.c.h.b16 %v526
        %v993 = vunpack.c.l.b16 %v527
        %v994 = vunpack.c.l.b16 %v528
        %v995 = vunpack.c.h.b16 %v528
        %v996 = vunpack.c.l.b16 %v529
        %v997 = vunpack.c.l.b16 %v530
        %v998 = vunpack.c.h.b16 %v530
        %v999 = vunpack.c.l.b16 %v531
        %v1000 = vunpack.c.l.b16 %v532
        %v1001 = vunpack.c.h.b16 %v532
        %v1002 = vunpack.c.l.b16 %v533
        %v1003 = vunpack.c.l.b16 %v534
        %v1004 = vunpack.c.h.b16 %v534
        %v1005 = vunpack.c.l.b16 %v535
        %v1006 = vunpack.c.l.b16 %v536
        %v1007 = vunpack.c.h.b16 %v536
        %v1008 = vunpack.c.l.b16 %v537
        %v1009 = vunpack.c.l.b16 %v538
        %v1010 = vunpack.c.h.b16 %v538
        %v1011 = vunpack.c.l.b16 %v539
        %v1012 = vunpack.c.l.b16 %v540
        %v1013 = vunpack.c.h.b16 %v540
        %v1014 = vunpack.c.l.b16 %v541
        %v1015 = vunpack.c.l.b16 %v542
        %v1016 = vunpack.c.h.b16 %v542
        %v1017 = vunpack.c.l.b16 %v543
        %v1018 = vunpack.c.l.b16 %v544
        %v1019 = vunpack.c.h.b16 %v544
        %v1020 = vunpack.c.l.b16 %v545
        %v1021 = vunpack.c.l.b16 %v546
        %v1022 = vunpack.c.h.b16 %v546
        %v1023 = vunpack.c.l.b16 %v547
        %v1024 = vunpack.c.l.b16 %v548
        %v1025 = vunpack.c.h.b16 %v548
        %v1026 = vunpack.c.l.b16 %v549
        %v1027 = vunpack.c.l.b16 %v550
        %v1028 = vunpack.c.h.b16 %v550
        %v1029 = vunpack.c.l.b16 %v551
        %v1030 = vpack.c.b16 %v979, %v976
        %v1031 = vpack.c.b16 %v980, %v977
        %v1032 = vpack.c.b16 %v981, %v978
        %v1033 = vpack.c.b16 %v985, %v982
        %v1034 = vpack.c.b16 %v986, %v983
        %v1035 = vpack.c.b16 %v987, %v984
        %v1036 = vpack.c.b16 %v991, %v988
        %v1037 = vpack.c.b16 %v992, %v989
        %v1038 = vpack.c.b16 %v993, %v990
        %v1039 = vpack.c.b16 %v997, %v994
        %v1040 = vpack.c.b16 %v998, %v995
        %v1041 = vpack.c.b16 %v999, %v996
        %v1042 = vpack.c.b16 %v1003, %v1000
        %v1043 = vpack.c.b16 %v1004, %v1001
        %v1044 = vpack.c.b16 %v1005, %v1002
        %v1045 = vpack.c.b16 %v1009, %v1006
        %v1046 = vpack.c.b16 %v1010, %v1007
        %v1047 = vpack.c.b16 %v1011, %v1008
        %v1048 = vpack.c.b16 %v1015, %v1012
        %v1049 = vpack.c.b16 %v1016, %v1013
        %v1050 = vpack.c.b16 %v1017, %v1014
        %v1051 = vpack.c.b16 %v1021, %v1018
        %v1052 = vpack.c.b16 %v1022, %v1019
        %v1053 = vpack.c.b16 %v1023, %v1020
        %v1054 = vpack.c.b16 %v1027, %v1024
        %v1055 = vpack.c.b16 %v1028, %v1025
        %v1056 = vpack.c.b16 %v1029, %v1026
        %v1084 = vsel %vm807, %v608, 0
        %v1086 = vsel %vm807, %v610, 0
        %v1088 = vsel %vm807, %v612, 0
        %1090 = vmatprep.subr.bf16.mxu0 %v1031
        %1091 = vmatpush1.bf16.msra.mxu0 %v1030
        %1092 = vmatprep.subr.bf16.mxu0 %v1034
        %1093 = vmatpush1.bf16.msra.mxu0 %v1033
        %1094 = vmatprep.subr.bf16.mxu0 %v1037
        %1095 = vmatpush1.bf16.msra.mxu0 %v1036
        %1096 = vmatprep.subr.bf16.mxu0 %v1040
        %1097 = vmatpush1.bf16.msra.mxu0 %v1039
        %1098 = vmatprep.subr.bf16.mxu0 %v1043
        %1099 = vmatpush1.bf16.msra.mxu0 %v1042
        %1100 = vmatprep.subr.bf16.mxu0 %v1046
        %1101 = vmatpush1.bf16.msra.mxu0 %v1045
        %1102 = vmatprep.subr.bf16.mxu0 %v1049
        %1103 = vmatpush1.bf16.msra.mxu0 %v1048
        %1104 = vmatprep.subr.bf16.mxu0 %v1052
        %1105 = vmatpush1.bf16.msra.mxu0 %v1051
        %1106 = vmatprep.subr.bf16.mxu0 %v1055
        %1107 = vmatpush1.bf16.msra.mxu0 %v1054
        %1108 = vmatprep.subr.bf16.mxu0 0
        %1109 = vmatpush1.bf16.msra.mxu0 0
        %1110 = vmatprep.subr.bf16.mxu0 0
        %1111 = vmatpush1.bf16.msra.mxu0 0
        %1112 = vmatprep.subr.bf16.mxu0 0
        %1113 = vmatpush1.bf16.msra.mxu0 0
        %1114 = vmatprep.subr.bf16.mxu0 0
        %1115 = vmatpush1.bf16.msra.mxu0 0
        %1116 = vmatprep.subr.bf16.mxu0 0
        %1117 = vmatpush1.bf16.msra.mxu0 0
        %1118 = vmatprep.subr.bf16.mxu0 0
        %1119 = vmatpush1.bf16.msra.mxu0 0
        %1120 = vmatprep.subr.bf16.mxu0 0
        %1121 = vmatpush1.bf16.msra.mxu0 0
        %1122 = vmatprep.mubr.bf16.mxu0 %v1084
        %1123 = vmatmul.mubr.bf16.gmra.mrb[0].mxu0 %v607
        %v1124 = vpop.f32.mrb[0].mxu0
        %v1125 = vadd.f32 %v852, %v1124
        %v1126 = vpop.f32.mrb[0].mxu0
        %v1127 = vadd.f32 %v854, %v1126
        %v1128 = vpop.f32.mrb[0].mxu0
        %v1129 = vadd.f32 %v856, %v1128
        %v1130 = vpop.f32.mrb[0].mxu0
        %v1131 = vadd.f32 %v858, %v1130
        %1132 = vmatprep.mubr.bf16.mxu0 %v1086
        %1133 = vmatmul.mubr.bf16.gmra.mrb[0].mxu0 %v609
        %v1134 = vpop.f32.mrb[0].mxu0
        %v1135 = vadd.f32 %v862, %v1134
        %v1136 = vpop.f32.mrb[0].mxu0
        %v1137 = vadd.f32 %v864, %v1136
        %v1138 = vpop.f32.mrb[0].mxu0
        %v1139 = vadd.f32 %v866, %v1138
        %v1140 = vpop.f32.mrb[0].mxu0
        %v1141 = vadd.f32 %v868, %v1140
        %1142 = vmatprep.mubr.bf16.mxu0 %v1088
        %1143 = vmatmul.mubr.bf16.gmra.mrb[0].mxu0 %v611
        %v1144 = vpop.f32.mrb[0].mxu0
        %v1145 = vadd.f32 %v872, %v1144
        %v1146 = vpop.f32.mrb[0].mxu0
        %v1147 = vadd.f32 %v874, %v1146
        %v1148 = vpop.f32.mrb[0].mxu0
        %v1149 = vadd.f32 %v876, %v1148
        %v1150 = vpop.f32.mrb[0].mxu0
        %v1151 = vadd.f32 %v878, %v1150
        %1152 = vdwg.mxu0
        %1153 = vmatprep.subr.bf16.mxu0 0
        %1154 = vmatpush1.bf16.msra.mxu0 %v1032
        %1155 = vmatprep.subr.bf16.mxu0 0
        %1156 = vmatpush1.bf16.msra.mxu0 %v1035
        %1157 = vmatprep.subr.bf16.mxu0 0
        %1158 = vmatpush1.bf16.msra.mxu0 %v1038
        %1159 = vmatprep.subr.bf16.mxu0 0
        %1160 = vmatpush1.bf16.msra.mxu0 %v1041
        %1161 = vmatprep.subr.bf16.mxu0 0
        %1162 = vmatpush1.bf16.msra.mxu0 %v1044
        %1163 = vmatprep.subr.bf16.mxu0 0
        %1164 = vmatpush1.bf16.msra.mxu0 %v1047
        %1165 = vmatprep.subr.bf16.mxu0 0
        %1166 = vmatpush1.bf16.msra.mxu0 %v1050
        %1167 = vmatprep.subr.bf16.mxu0 0
        %1168 = vmatpush1.bf16.msra.mxu0 %v1053
        %1169 = vmatprep.subr.bf16.mxu0 0
        %1170 = vmatpush1.bf16.msra.mxu0 %v1056
        %1171 = vmatprep.subr.bf16.mxu0 0
        %1172 = vmatpush1.bf16.msra.mxu0 0
        %1173 = vmatprep.subr.bf16.mxu0 0
        %1174 = vmatpush1.bf16.msra.mxu0 0
        %1175 = vmatprep.subr.bf16.mxu0 0
        %1176 = vmatpush1.bf16.msra.mxu0 0
        %1177 = vmatprep.subr.bf16.mxu0 0
        %1178 = vmatpush1.bf16.msra.mxu0 0
        %1179 = vmatprep.subr.bf16.mxu0 0
        %1180 = vmatpush1.bf16.msra.mxu0 0
        %1181 = vmatprep.subr.bf16.mxu0 0
        %1182 = vmatpush1.bf16.msra.mxu0 0
        %1183 = vmatprep.subr.bf16.mxu0 0
        %1184 = vmatpush1.bf16.msra.mxu0 0
        %1185 = vmatprep.mubr.bf16.mxu0 %v1084
        %1186 = vmatmul.mubr.bf16.gmra.mrb[0].mxu0 %v607
        %v1187 = vpop.f32.mrb[0].mxu0
        %v1188 = vadd.f32 %v915, %v1187
        %v1189 = vpop.f32.mrb[0].mxu0
        %v1190 = vpop.f32.mrb[0].mxu0
        %v1191 = vadd.f32 %v918, %v1190
        %v1192 = vpop.f32.mrb[0].mxu0
        %1193 = vmatprep.mubr.bf16.mxu0 %v1086
        %1194 = vmatmul.mubr.bf16.gmra.mrb[0].mxu0 %v609
        %v1195 = vpop.f32.mrb[0].mxu0
        %v1196 = vadd.f32 %v923, %v1195
        %v1197 = vpop.f32.mrb[0].mxu0
        %v1198 = vpop.f32.mrb[0].mxu0
        %v1199 = vadd.f32 %v926, %v1198
        %v1200 = vpop.f32.mrb[0].mxu0
        %1201 = vmatprep.mubr.bf16.mxu0 %v1088
        %1202 = vmatmul.mubr.bf16.gmra.mrb[0].mxu0 %v611
        %v1203 = vpop.f32.mrb[0].mxu0
        %v1204 = vadd.f32 %v931, %v1203
        %v1205 = vpop.f32.mrb[0].mxu0
        %v1206 = vpop.f32.mrb[0].mxu0
        %v1207 = vadd.f32 %v934, %v1206
        %v1208 = vpop.f32.mrb[0].mxu0
        %1209 = vdwg.mxu0
        %s1210 = scalar_lea.vmem %s1, 432
        %v1211 = vld [vmem:[%s1210] sm:$0xff]
        %v1212 = vld [vmem:[%s1210 + $0x8] sm:$0xf]
        %v1213 = vld [vmem:[%s1210 + $0xc] sm:$0xff]
        %v1214 = vld [vmem:[%s1210 + $0x14] sm:$0xf]
        %v1215 = vld [vmem:[%s1210 + $0x18] sm:$0xff]
        %v1216 = vld [vmem:[%s1210 + $0x20] sm:$0xf]
        %v1217 = vld [vmem:[%s1210 + $0x24] sm:$0xff]
        %v1218 = vld [vmem:[%s1210 + $0x2c] sm:$0xf]
        %v1219 = vld [vmem:[%s1210 + $0x30] sm:$0xff]
        %v1220 = vld [vmem:[%s1210 + $0x38] sm:$0xf]
        %v1221 = vld [vmem:[%s1210 + $0x3c] sm:$0xff]
        %v1222 = vld [vmem:[%s1210 + $0x44] sm:$0xf]
        %v1223 = vld [vmem:[%s1210 + $0x48] sm:$0xff]
        %v1224 = vld [vmem:[%s1210 + $0x50] sm:$0xf]
        %v1225 = vld [vmem:[%s1210 + $0x54] sm:$0xff]
        %v1226 = vld [vmem:[%s1210 + $0x5c] sm:$0xf]
        %v1227 = vld [vmem:[%s1210 + $0x60] sm:$0xff]
        %v1228 = vld [vmem:[%s1210 + $0x68] sm:$0xf]
        %v1229 = vld [vmem:[%s1210 + $0x6c] sm:$0xff]
        %v1230 = vld [vmem:[%s1210 + $0x74] sm:$0xf]
        %v1231 = vld [vmem:[%s1210 + $0x78] sm:$0xff]
        %v1232 = vld [vmem:[%s1210 + $0x80] sm:$0xf]
        %v1233 = vld [vmem:[%s1210 + $0x84] sm:$0xff]
        %v1234 = vld [vmem:[%s1210 + $0x8c] sm:$0xf]
        %v1235 = vld [vmem:[%s1210 + $0x90] sm:$0xff]
        %v1236 = vld [vmem:[%s1210 + $0x98] sm:$0xf]
        %v1237 = vld [vmem:[%s1210 + $0x9c] sm:$0xff]
        %v1238 = vld [vmem:[%s1210 + $0xa4] sm:$0xf]
        %v1239 = vld [vmem:[%s1210 + $0xa8] sm:$0xff]
        %v1240 = vld [vmem:[%s1210 + $0xb0] sm:$0xf]
        %v1241 = vld [vmem:[%s1210 + $0xb4] sm:$0xff]
        %v1242 = vld [vmem:[%s1210 + $0xbc] sm:$0xf]
        %v1243 = vld [vmem:[%s1210 + $0xc0] sm:$0xff]
        %v1244 = vld [vmem:[%s1210 + $0xc8] sm:$0xf]
        %v1245 = vld [vmem:[%s1210 + $0xcc] sm:$0xff]
        %v1246 = vld [vmem:[%s1210 + $0xd4] sm:$0xf]
        %vm1247 = vcmask 1046528
        %v1248 = vrot.slane %v607, 1
        %v1249 = vrot.slane %v609, 1
        %v1250 = vsel %vm1247, %v1248, %v1249
        %v1251 = vrot.slane %v608, 1
        %v1252 = vrot.slane %v610, 1
        %v1253 = vsel %vm1247, %v1251, %v1252
        %v1254 = vrot.slane %v611, 1
        %v1255 = vsel %vm1247, %v1249, %v1254
        %v1256 = vrot.slane %v612, 1
        %v1257 = vsel %vm1247, %v1252, %v1256
        %v1297 = vunpack.c.l.b16 %v1211
        %v1298 = vunpack.c.h.b16 %v1211
        %v1299 = vunpack.c.l.b16 %v1212
        %v1300 = vunpack.c.l.b16 %v1213
        %v1301 = vunpack.c.h.b16 %v1213
        %v1302 = vunpack.c.l.b16 %v1214
        %v1303 = vunpack.c.l.b16 %v1215
        %v1304 = vunpack.c.h.b16 %v1215
        %v1305 = vunpack.c.l.b16 %v1216
        %v1306 = vunpack.c.l.b16 %v1217
        %v1307 = vunpack.c.h.b16 %v1217
        %v1308 = vunpack.c.l.b16 %v1218
        %v1309 = vunpack.c.l.b16 %v1219
        %v1310 = vunpack.c.h.b16 %v1219
        %v1311 = vunpack.c.l.b16 %v1220
        %v1312 = vunpack.c.l.b16 %v1221
        %v1313 = vunpack.c.h.b16 %v1221
        %v1314 = vunpack.c.l.b16 %v1222
        %v1315 = vunpack.c.l.b16 %v1223
        %v1316 = vunpack.c.h.b16 %v1223
        %v1317 = vunpack.c.l.b16 %v1224
        %v1318 = vunpack.c.l.b16 %v1225
        %v1319 = vunpack.c.h.b16 %v1225
        %v1320 = vunpack.c.l.b16 %v1226
        %v1321 = vunpack.c.l.b16 %v1227
        %v1322 = vunpack.c.h.b16 %v1227
        %v1323 = vunpack.c.l.b16 %v1228
        %v1324 = vunpack.c.l.b16 %v1229
        %v1325 = vunpack.c.h.b16 %v1229
        %v1326 = vunpack.c.l.b16 %v1230
        %v1327 = vunpack.c.l.b16 %v1231
        %v1328 = vunpack.c.h.b16 %v1231
        %v1329 = vunpack.c.l.b16 %v1232
        %v1330 = vunpack.c.l.b16 %v1233
        %v1331 = vunpack.c.h.b16 %v1233
        %v1332 = vunpack.c.l.b16 %v1234
        %v1333 = vunpack.c.l.b16 %v1235
        %v1334 = vunpack.c.h.b16 %v1235
        %v1335 = vunpack.c.l.b16 %v1236
        %v1336 = vunpack.c.l.b16 %v1237
        %v1337 = vunpack.c.h.b16 %v1237
        %v1338 = vunpack.c.l.b16 %v1238
        %v1339 = vunpack.c.l.b16 %v1239
        %v1340 = vunpack.c.h.b16 %v1239
        %v1341 = vunpack.c.l.b16 %v1240
        %v1342 = vunpack.c.l.b16 %v1241
        %v1343 = vunpack.c.h.b16 %v1241
        %v1344 = vunpack.c.l.b16 %v1242
        %v1345 = vunpack.c.l.b16 %v1243
        %v1346 = vunpack.c.h.b16 %v1243
        %v1347 = vunpack.c.l.b16 %v1244
        %v1348 = vunpack.c.l.b16 %v1245
        %v1349 = vunpack.c.h.b16 %v1245
        %v1350 = vunpack.c.l.b16 %v1246
        %v1351 = vpack.c.b16 %v1300, %v1297
        %v1352 = vpack.c.b16 %v1301, %v1298
        %v1353 = vpack.c.b16 %v1302, %v1299
        %v1354 = vpack.c.b16 %v1306, %v1303
        %v1355 = vpack.c.b16 %v1307, %v1304
        %v1356 = vpack.c.b16 %v1308, %v1305
        %v1357 = vpack.c.b16 %v1312, %v1309
        %v1358 = vpack.c.b16 %v1313, %v1310
        %v1359 = vpack.c.b16 %v1314, %v1311
        %v1360 = vpack.c.b16 %v1318, %v1315
        %v1361 = vpack.c.b16 %v1319, %v1316
        %v1362 = vpack.c.b16 %v1320, %v1317
        %v1363 = vpack.c.b16 %v1324, %v1321
        %v1364 = vpack.c.b16 %v1325, %v1322
        %v1365 = vpack.c.b16 %v1326, %v1323
        %v1366 = vpack.c.b16 %v1330, %v1327
        %v1367 = vpack.c.b16 %v1331, %v1328
        %v1368 = vpack.c.b16 %v1332, %v1329
        %v1369 = vpack.c.b16 %v1336, %v1333
        %v1370 = vpack.c.b16 %v1337, %v1334
        %v1371 = vpack.c.b16 %v1338, %v1335
        %v1372 = vpack.c.b16 %v1342, %v1339
        %v1373 = vpack.c.b16 %v1343, %v1340
        %v1374 = vpack.c.b16 %v1344, %v1341
        %v1375 = vpack.c.b16 %v1348, %v1345
        %v1376 = vpack.c.b16 %v1349, %v1346
        %v1377 = vpack.c.b16 %v1350, %v1347
        %v1406 = vsel %vm807, %v1253, 0
        %v1409 = vsel %vm807, %v1257, 0
        %v1412 = vsel %vm807, %v1256, 0
        %1414 = vmatprep.subr.bf16.mxu0 %v1352
        %1415 = vmatpush1.bf16.msra.mxu0 %v1351
        %1416 = vmatprep.subr.bf16.mxu0 %v1355
        %1417 = vmatpush1.bf16.msra.mxu0 %v1354
        %1418 = vmatprep.subr.bf16.mxu0 %v1358
        %1419 = vmatpush1.bf16.msra.mxu0 %v1357
        %1420 = vmatprep.subr.bf16.mxu0 %v1361
        %1421 = vmatpush1.bf16.msra.mxu0 %v1360
        %1422 = vmatprep.subr.bf16.mxu0 %v1364
        %1423 = vmatpush1.bf16.msra.mxu0 %v1363
        %1424 = vmatprep.subr.bf16.mxu0 %v1367
        %1425 = vmatpush1.bf16.msra.mxu0 %v1366
        %1426 = vmatprep.subr.bf16.mxu0 %v1370
        %1427 = vmatpush1.bf16.msra.mxu0 %v1369
        %1428 = vmatprep.subr.bf16.mxu0 %v1373
        %1429 = vmatpush1.bf16.msra.mxu0 %v1372
        %1430 = vmatprep.subr.bf16.mxu0 %v1376
        %1431 = vmatpush1.bf16.msra.mxu0 %v1375
        %1432 = vmatprep.subr.bf16.mxu0 0
        %1433 = vmatpush1.bf16.msra.mxu0 0
        %1434 = vmatprep.subr.bf16.mxu0 0
        %1435 = vmatpush1.bf16.msra.mxu0 0
        %1436 = vmatprep.subr.bf16.mxu0 0
        %1437 = vmatpush1.bf16.msra.mxu0 0
        %1438 = vmatprep.subr.bf16.mxu0 0
        %1439 = vmatpush1.bf16.msra.mxu0 0
        %1440 = vmatprep.subr.bf16.mxu0 0
        %1441 = vmatpush1.bf16.msra.mxu0 0
        %1442 = vmatprep.subr.bf16.mxu0 0
        %1443 = vmatpush1.bf16.msra.mxu0 0
        %1444 = vmatprep.subr.bf16.mxu0 0
        %1445 = vmatpush1.bf16.msra.mxu0 0
        %1446 = vmatprep.mubr.bf16.mxu0 %v1406
        %1447 = vmatmul.mubr.bf16.gmra.mrb[0].mxu0 %v1250
        %v1448 = vpop.f32.mrb[0].mxu0
        %v1449 = vadd.f32 0.0, %v1448
        %v1450 = vpop.f32.mrb[0].mxu0
        %v1451 = vadd.f32 0.0, %v1450
        %v1452 = vpop.f32.mrb[0].mxu0
        %v1453 = vadd.f32 0.0, %v1452
        %v1454 = vpop.f32.mrb[0].mxu0
        %v1455 = vadd.f32 0.0, %v1454
        %1456 = vmatprep.mubr.bf16.mxu0 %v1409
        %1457 = vmatmul.mubr.bf16.gmra.mrb[0].mxu0 %v1255
        %v1458 = vpop.f32.mrb[0].mxu0
        %v1459 = vadd.f32 0.0, %v1458
        %v1460 = vpop.f32.mrb[0].mxu0
        %v1461 = vadd.f32 0.0, %v1460
        %v1462 = vpop.f32.mrb[0].mxu0
        %v1463 = vadd.f32 0.0, %v1462
        %v1464 = vpop.f32.mrb[0].mxu0
        %v1465 = vadd.f32 0.0, %v1464
        %1466 = vmatprep.mubr.bf16.mxu0 %v1412
        %1467 = vmatmul.mubr.bf16.gmra.mrb[0].mxu0 %v1254
        %v1468 = vpop.f32.mrb[0].mxu0
        %v1469 = vadd.f32 0.0, %v1468
        %v1470 = vpop.f32.mrb[0].mxu0
        %v1471 = vadd.f32 0.0, %v1470
        %v1472 = vpop.f32.mrb[0].mxu0
        %v1473 = vadd.f32 0.0, %v1472
        %v1474 = vpop.f32.mrb[0].mxu0
        %v1475 = vadd.f32 0.0, %v1474
        %1476 = vdwg.mxu0
        %1477 = vmatprep.subr.bf16.mxu0 0
        %1478 = vmatpush1.bf16.msra.mxu0 %v1353
        %1479 = vmatprep.subr.bf16.mxu0 0
        %1480 = vmatpush1.bf16.msra.mxu0 %v1356
        %1481 = vmatprep.subr.bf16.mxu0 0
        %1482 = vmatpush1.bf16.msra.mxu0 %v1359
        %1483 = vmatprep.subr.bf16.mxu0 0
        %1484 = vmatpush1.bf16.msra.mxu0 %v1362
        %1485 = vmatprep.subr.bf16.mxu0 0
        %1486 = vmatpush1.bf16.msra.mxu0 %v1365
        %1487 = vmatprep.subr.bf16.mxu0 0
        %1488 = vmatpush1.bf16.msra.mxu0 %v1368
        %1489 = vmatprep.subr.bf16.mxu0 0
        %1490 = vmatpush1.bf16.msra.mxu0 %v1371
        %1491 = vmatprep.subr.bf16.mxu0 0
        %1492 = vmatpush1.bf16.msra.mxu0 %v1374
        %1493 = vmatprep.subr.bf16.mxu0 0
        %1494 = vmatpush1.bf16.msra.mxu0 %v1377
        %1495 = vmatprep.subr.bf16.mxu0 0
        %1496 = vmatpush1.bf16.msra.mxu0 0
        %1497 = vmatprep.subr.bf16.mxu0 0
        %1498 = vmatpush1.bf16.msra.mxu0 0
        %1499 = vmatprep.subr.bf16.mxu0 0
        %1500 = vmatpush1.bf16.msra.mxu0 0
        %1501 = vmatprep.subr.bf16.mxu0 0
        %1502 = vmatpush1.bf16.msra.mxu0 0
        %1503 = vmatprep.subr.bf16.mxu0 0
        %1504 = vmatpush1.bf16.msra.mxu0 0
        %1505 = vmatprep.subr.bf16.mxu0 0
        %1506 = vmatpush1.bf16.msra.mxu0 0
        %1507 = vmatprep.subr.bf16.mxu0 0
        %1508 = vmatpush1.bf16.msra.mxu0 0
        %1509 = vmatprep.mubr.bf16.mxu0 %v1406
        %1510 = vmatmul.mubr.bf16.gmra.mrb[0].mxu0 %v1250
        %v1511 = vpop.f32.mrb[0].mxu0
        %v1512 = vadd.f32 0.0, %v1511
        %v1513 = vpop.f32.mrb[0].mxu0
        %v1514 = vpop.f32.mrb[0].mxu0
        %v1515 = vadd.f32 0.0, %v1514
        %v1516 = vpop.f32.mrb[0].mxu0
        %1517 = vmatprep.mubr.bf16.mxu0 %v1409
        %1518 = vmatmul.mubr.bf16.gmra.mrb[0].mxu0 %v1255
        %v1519 = vpop.f32.mrb[0].mxu0
        %v1520 = vadd.f32 0.0, %v1519
        %v1521 = vpop.f32.mrb[0].mxu0
        %v1522 = vpop.f32.mrb[0].mxu0
        %v1523 = vadd.f32 0.0, %v1522
        %v1524 = vpop.f32.mrb[0].mxu0
        %1525 = vmatprep.mubr.bf16.mxu0 %v1412
        %1526 = vmatmul.mubr.bf16.gmra.mrb[0].mxu0 %v1254
        %v1527 = vpop.f32.mrb[0].mxu0
        %v1528 = vadd.f32 0.0, %v1527
        %v1529 = vpop.f32.mrb[0].mxu0
        %v1530 = vpop.f32.mrb[0].mxu0
        %v1531 = vadd.f32 0.0, %v1530
        %v1532 = vpop.f32.mrb[0].mxu0
        %1533 = vdwg.mxu0
        %v1534 = vadd.f32 %v1125, %v1449
        %v1535 = vadd.f32 %v1127, %v1451
        %v1536 = vadd.f32 %v1188, %v1512
        %v1537 = vadd.f32 %v1129, %v1453
        %v1538 = vadd.f32 %v1131, %v1455
        %v1539 = vadd.f32 %v1191, %v1515
        %v1540 = vadd.f32 %v1135, %v1459
        %v1541 = vadd.f32 %v1137, %v1461
        %v1542 = vadd.f32 %v1196, %v1520
        %v1543 = vadd.f32 %v1139, %v1463
        %v1544 = vadd.f32 %v1141, %v1465
        %v1545 = vadd.f32 %v1199, %v1523
        %v1546 = vadd.f32 %v1145, %v1469
        %v1547 = vadd.f32 %v1147, %v1471
        %v1548 = vadd.f32 %v1204, %v1528
        %v1549 = vadd.f32 %v1149, %v1473
        %v1550 = vadd.f32 %v1151, %v1475
        %v1551 = vadd.f32 %v1207, %v1531
        %s1552 = scalar_lea.vmem %s1, 648
        %v1553 = vld [vmem:[%s1552] sm:$0xff]
        %v1554 = vld [vmem:[%s1552 + $0x8] sm:$0xf]
        %v1555 = vld [vmem:[%s1552 + $0xc] sm:$0xff]
        %v1556 = vld [vmem:[%s1552 + $0x14] sm:$0xf]
        %v1557 = vld [vmem:[%s1552 + $0x18] sm:$0xff]
        %v1558 = vld [vmem:[%s1552 + $0x20] sm:$0xf]
        %v1559 = vld [vmem:[%s1552 + $0x24] sm:$0xff]
        %v1560 = vld [vmem:[%s1552 + $0x2c] sm:$0xf]
        %v1561 = vld [vmem:[%s1552 + $0x30] sm:$0xff]
        %v1562 = vld [vmem:[%s1552 + $0x38] sm:$0xf]
        %v1563 = vld [vmem:[%s1552 + $0x3c] sm:$0xff]
        %v1564 = vld [vmem:[%s1552 + $0x44] sm:$0xf]
        %v1565 = vld [vmem:[%s1552 + $0x48] sm:$0xff]
        %v1566 = vld [vmem:[%s1552 + $0x50] sm:$0xf]
        %v1567 = vld [vmem:[%s1552 + $0x54] sm:$0xff]
        %v1568 = vld [vmem:[%s1552 + $0x5c] sm:$0xf]
        %v1569 = vld [vmem:[%s1552 + $0x60] sm:$0xff]
        %v1570 = vld [vmem:[%s1552 + $0x68] sm:$0xf]
        %v1571 = vld [vmem:[%s1552 + $0x6c] sm:$0xff]
        %v1572 = vld [vmem:[%s1552 + $0x74] sm:$0xf]
        %v1573 = vld [vmem:[%s1552 + $0x78] sm:$0xff]
        %v1574 = vld [vmem:[%s1552 + $0x80] sm:$0xf]
        %v1575 = vld [vmem:[%s1552 + $0x84] sm:$0xff]
        %v1576 = vld [vmem:[%s1552 + $0x8c] sm:$0xf]
        %v1577 = vld [vmem:[%s1552 + $0x90] sm:$0xff]
        %v1578 = vld [vmem:[%s1552 + $0x98] sm:$0xf]
        %v1579 = vld [vmem:[%s1552 + $0x9c] sm:$0xff]
        %v1580 = vld [vmem:[%s1552 + $0xa4] sm:$0xf]
        %v1581 = vld [vmem:[%s1552 + $0xa8] sm:$0xff]
        %v1582 = vld [vmem:[%s1552 + $0xb0] sm:$0xf]
        %v1583 = vld [vmem:[%s1552 + $0xb4] sm:$0xff]
        %v1584 = vld [vmem:[%s1552 + $0xbc] sm:$0xf]
        %v1585 = vld [vmem:[%s1552 + $0xc0] sm:$0xff]
        %v1586 = vld [vmem:[%s1552 + $0xc8] sm:$0xf]
        %v1587 = vld [vmem:[%s1552 + $0xcc] sm:$0xff]
        %v1588 = vld [vmem:[%s1552 + $0xd4] sm:$0xf]
        %vm1589 = vsmask.f32 6400
        %v1590 = vrot.slane %v615, 1
        %v1591 = vrot.slane %v617, 2
        %v1592 = vor.u32 %v1590, %v1591
        %v1593 = vrot.slane %v638, 1
        %v1594 = vrot.slane %v622, 2
        %v1595 = vor.u32 %v1593, %v1594
        %v1596 = vsel %vm1589, %v1592, %v1595
        %v1597 = vrot.slane %v627, 1
        %v1598 = vrot.slane %v629, 2
        %v1599 = vor.u32 %v1597, %v1598
        %v1600 = vrot.slane %v646, 1
        %v1601 = vrot.slane %v634, 2
        %v1602 = vor.u32 %v1600, %v1601
        %v1603 = vsel %vm1589, %v1599, %v1602
        %v1604 = vrot.slane %v654, 1
        %v1605 = vrot.slane %v642, 2
        %v1606 = vor.u32 %v1604, %v1605
        %v1607 = vsel %vm1589, %v1595, %v1606
        %v1608 = vrot.slane %v657, 1
        %v1609 = vrot.slane %v650, 2
        %v1610 = vor.u32 %v1608, %v1609
        %v1611 = vsel %vm1589, %v1602, %v1610
        %v1651 = vunpack.c.l.b16 %v1553
        %v1652 = vunpack.c.h.b16 %v1553
        %v1653 = vunpack.c.l.b16 %v1554
        %v1654 = vunpack.c.l.b16 %v1555
        %v1655 = vunpack.c.h.b16 %v1555
        %v1656 = vunpack.c.l.b16 %v1556
        %v1657 = vunpack.c.l.b16 %v1557
        %v1658 = vunpack.c.h.b16 %v1557
        %v1659 = vunpack.c.l.b16 %v1558
        %v1660 = vunpack.c.l.b16 %v1559
        %v1661 = vunpack.c.h.b16 %v1559
        %v1662 = vunpack.c.l.b16 %v1560
        %v1663 = vunpack.c.l.b16 %v1561
        %v1664 = vunpack.c.h.b16 %v1561
        %v1665 = vunpack.c.l.b16 %v1562
        %v1666 = vunpack.c.l.b16 %v1563
        %v1667 = vunpack.c.h.b16 %v1563
        %v1668 = vunpack.c.l.b16 %v1564
        %v1669 = vunpack.c.l.b16 %v1565
        %v1670 = vunpack.c.h.b16 %v1565
        %v1671 = vunpack.c.l.b16 %v1566
        %v1672 = vunpack.c.l.b16 %v1567
        %v1673 = vunpack.c.h.b16 %v1567
        %v1674 = vunpack.c.l.b16 %v1568
        %v1675 = vunpack.c.l.b16 %v1569
        %v1676 = vunpack.c.h.b16 %v1569
        %v1677 = vunpack.c.l.b16 %v1570
        %v1678 = vunpack.c.l.b16 %v1571
        %v1679 = vunpack.c.h.b16 %v1571
        %v1680 = vunpack.c.l.b16 %v1572
        %v1681 = vunpack.c.l.b16 %v1573
        %v1682 = vunpack.c.h.b16 %v1573
        %v1683 = vunpack.c.l.b16 %v1574
        %v1684 = vunpack.c.l.b16 %v1575
        %v1685 = vunpack.c.h.b16 %v1575
        %v1686 = vunpack.c.l.b16 %v1576
        %v1687 = vunpack.c.l.b16 %v1577
        %v1688 = vunpack.c.h.b16 %v1577
        %v1689 = vunpack.c.l.b16 %v1578
        %v1690 = vunpack.c.l.b16 %v1579
        %v1691 = vunpack.c.h.b16 %v1579
        %v1692 = vunpack.c.l.b16 %v1580
        %v1693 = vunpack.c.l.b16 %v1581
        %v1694 = vunpack.c.h.b16 %v1581
        %v1695 = vunpack.c.l.b16 %v1582
        %v1696 = vunpack.c.l.b16 %v1583
        %v1697 = vunpack.c.h.b16 %v1583
        %v1698 = vunpack.c.l.b16 %v1584
        %v1699 = vunpack.c.l.b16 %v1585
        %v1700 = vunpack.c.h.b16 %v1585
        %v1701 = vunpack.c.l.b16 %v1586
        %v1702 = vunpack.c.l.b16 %v1587
        %v1703 = vunpack.c.h.b16 %v1587
        %v1704 = vunpack.c.l.b16 %v1588
        %v1705 = vpack.c.b16 %v1654, %v1651
        %v1706 = vpack.c.b16 %v1655, %v1652
        %v1707 = vpack.c.b16 %v1656, %v1653
        %v1708 = vpack.c.b16 %v1660, %v1657
        %v1709 = vpack.c.b16 %v1661, %v1658
        %v1710 = vpack.c.b16 %v1662, %v1659
        %v1711 = vpack.c.b16 %v1666, %v1663
        %v1712 = vpack.c.b16 %v1667, %v1664
        %v1713 = vpack.c.b16 %v1668, %v1665
        %v1714 = vpack.c.b16 %v1672, %v1669
        %v1715 = vpack.c.b16 %v1673, %v1670
        %v1716 = vpack.c.b16 %v1674, %v1671
        %v1717 = vpack.c.b16 %v1678, %v1675
        %v1718 = vpack.c.b16 %v1679, %v1676
        %v1719 = vpack.c.b16 %v1680, %v1677
        %v1720 = vpack.c.b16 %v1684, %v1681
        %v1721 = vpack.c.b16 %v1685, %v1682
        %v1722 = vpack.c.b16 %v1686, %v1683
        %v1723 = vpack.c.b16 %v1690, %v1687
        %v1724 = vpack.c.b16 %v1691, %v1688
        %v1725 = vpack.c.b16 %v1692, %v1689
        %v1726 = vpack.c.b16 %v1696, %v1693
        %v1727 = vpack.c.b16 %v1697, %v1694
        %v1728 = vpack.c.b16 %v1698, %v1695
        %v1729 = vpack.c.b16 %v1702, %v1699
        %v1730 = vpack.c.b16 %v1703, %v1700
        %v1731 = vpack.c.b16 %v1704, %v1701
        %v1760 = vsel %vm807, %v1603, 0
        %v1763 = vsel %vm807, %v1611, 0
        %v1766 = vsel %vm807, %v1610, 0
        %1768 = vmatprep.subr.bf16.mxu0 %v1706
        %1769 = vmatpush1.bf16.msra.mxu0 %v1705
        %1770 = vmatprep.subr.bf16.mxu0 %v1709
        %1771 = vmatpush1.bf16.msra.mxu0 %v1708
        %1772 = vmatprep.subr.bf16.mxu0 %v1712
        %1773 = vmatpush1.bf16.msra.mxu0 %v1711
        %1774 = vmatprep.subr.bf16.mxu0 %v1715
        %1775 = vmatpush1.bf16.msra.mxu0 %v1714
        %1776 = vmatprep.subr.bf16.mxu0 %v1718
        %1777 = vmatpush1.bf16.msra.mxu0 %v1717
        %1778 = vmatprep.subr.bf16.mxu0 %v1721
        %1779 = vmatpush1.bf16.msra.mxu0 %v1720
        %1780 = vmatprep.subr.bf16.mxu0 %v1724
        %1781 = vmatpush1.bf16.msra.mxu0 %v1723
        %1782 = vmatprep.subr.bf16.mxu0 %v1727
        %1783 = vmatpush1.bf16.msra.mxu0 %v1726
        %1784 = vmatprep.subr.bf16.mxu0 %v1730
        %1785 = vmatpush1.bf16.msra.mxu0 %v1729
        %1786 = vmatprep.subr.bf16.mxu0 0
        %1787 = vmatpush1.bf16.msra.mxu0 0
        %1788 = vmatprep.subr.bf16.mxu0 0
        %1789 = vmatpush1.bf16.msra.mxu0 0
        %1790 = vmatprep.subr.bf16.mxu0 0
        %1791 = vmatpush1.bf16.msra.mxu0 0
        %1792 = vmatprep.subr.bf16.mxu0 0
        %1793 = vmatpush1.bf16.msra.mxu0 0
        %1794 = vmatprep.subr.bf16.mxu0 0
        %1795 = vmatpush1.bf16.msra.mxu0 0
        %1796 = vmatprep.subr.bf16.mxu0 0
        %1797 = vmatpush1.bf16.msra.mxu0 0
        %1798 = vmatprep.subr.bf16.mxu0 0
        %1799 = vmatpush1.bf16.msra.mxu0 0
        %1800 = vmatprep.mubr.bf16.mxu0 %v1760
        %1801 = vmatmul.mubr.bf16.gmra.mrb[0].mxu0 %v1596
        %v1802 = vpop.f32.mrb[0].mxu0
        %v1803 = vadd.f32 0.0, %v1802
        %v1804 = vpop.f32.mrb[0].mxu0
        %v1805 = vadd.f32 0.0, %v1804
        %v1806 = vpop.f32.mrb[0].mxu0
        %v1807 = vadd.f32 0.0, %v1806
        %v1808 = vpop.f32.mrb[0].mxu0
        %v1809 = vadd.f32 0.0, %v1808
        %1810 = vmatprep.mubr.bf16.mxu0 %v1763
        %1811 = vmatmul.mubr.bf16.gmra.mrb[0].mxu0 %v1607
        %v1812 = vpop.f32.mrb[0].mxu0
        %v1813 = vadd.f32 0.0, %v1812
        %v1814 = vpop.f32.mrb[0].mxu0
        %v1815 = vadd.f32 0.0, %v1814
        %v1816 = vpop.f32.mrb[0].mxu0
        %v1817 = vadd.f32 0.0, %v1816
        %v1818 = vpop.f32.mrb[0].mxu0
        %v1819 = vadd.f32 0.0, %v1818
        %1820 = vmatprep.mubr.bf16.mxu0 %v1766
        %1821 = vmatmul.mubr.bf16.gmra.mrb[0].mxu0 %v1606
        %v1822 = vpop.f32.mrb[0].mxu0
        %v1823 = vadd.f32 0.0, %v1822
        %v1824 = vpop.f32.mrb[0].mxu0
        %v1825 = vadd.f32 0.0, %v1824
        %v1826 = vpop.f32.mrb[0].mxu0
        %v1827 = vadd.f32 0.0, %v1826
        %v1828 = vpop.f32.mrb[0].mxu0
        %v1829 = vadd.f32 0.0, %v1828
        %1830 = vdwg.mxu0
        %1831 = vmatprep.subr.bf16.mxu0 0
        %1832 = vmatpush1.bf16.msra.mxu0 %v1707
        %1833 = vmatprep.subr.bf16.mxu0 0
        %1834 = vmatpush1.bf16.msra.mxu0 %v1710
        %1835 = vmatprep.subr.bf16.mxu0 0
        %1836 = vmatpush1.bf16.msra.mxu0 %v1713
        %1837 = vmatprep.subr.bf16.mxu0 0
        %1838 = vmatpush1.bf16.msra.mxu0 %v1716
        %1839 = vmatprep.subr.bf16.mxu0 0
        %1840 = vmatpush1.bf16.msra.mxu0 %v1719
        %1841 = vmatprep.subr.bf16.mxu0 0
        %1842 = vmatpush1.bf16.msra.mxu0 %v1722
        %1843 = vmatprep.subr.bf16.mxu0 0
        %1844 = vmatpush1.bf16.msra.mxu0 %v1725
        %1845 = vmatprep.subr.bf16.mxu0 0
        %1846 = vmatpush1.bf16.msra.mxu0 %v1728
        %1847 = vmatprep.subr.bf16.mxu0 0
        %1848 = vmatpush1.bf16.msra.mxu0 %v1731
        %1849 = vmatprep.subr.bf16.mxu0 0
        %1850 = vmatpush1.bf16.msra.mxu0 0
        %1851 = vmatprep.subr.bf16.mxu0 0
        %1852 = vmatpush1.bf16.msra.mxu0 0
        %1853 = vmatprep.subr.bf16.mxu0 0
        %1854 = vmatpush1.bf16.msra.mxu0 0
        %1855 = vmatprep.subr.bf16.mxu0 0
        %1856 = vmatpush1.bf16.msra.mxu0 0
        %1857 = vmatprep.subr.bf16.mxu0 0
        %1858 = vmatpush1.bf16.msra.mxu0 0
        %1859 = vmatprep.subr.bf16.mxu0 0
        %1860 = vmatpush1.bf16.msra.mxu0 0
        %1861 = vmatprep.subr.bf16.mxu0 0
        %1862 = vmatpush1.bf16.msra.mxu0 0
        %1863 = vmatprep.mubr.bf16.mxu0 %v1760
        %1864 = vmatmul.mubr.bf16.gmra.mrb[0].mxu0 %v1596
        %v1865 = vpop.f32.mrb[0].mxu0
        %v1866 = vadd.f32 0.0, %v1865
        %v1867 = vpop.f32.mrb[0].mxu0
        %v1868 = vpop.f32.mrb[0].mxu0
        %v1869 = vadd.f32 0.0, %v1868
        %v1870 = vpop.f32.mrb[0].mxu0
        %1871 = vmatprep.mubr.bf16.mxu0 %v1763
        %1872 = vmatmul.mubr.bf16.gmra.mrb[0].mxu0 %v1607
        %v1873 = vpop.f32.mrb[0].mxu0
        %v1874 = vadd.f32 0.0, %v1873
        %v1875 = vpop.f32.mrb[0].mxu0
        %v1876 = vpop.f32.mrb[0].mxu0
        %v1877 = vadd.f32 0.0, %v1876
        %v1878 = vpop.f32.mrb[0].mxu0
        %1879 = vmatprep.mubr.bf16.mxu0 %v1766
        %1880 = vmatmul.mubr.bf16.gmra.mrb[0].mxu0 %v1606
        %v1881 = vpop.f32.mrb[0].mxu0
        %v1882 = vadd.f32 0.0, %v1881
        %v1883 = vpop.f32.mrb[0].mxu0
        %v1884 = vpop.f32.mrb[0].mxu0
        %v1885 = vadd.f32 0.0, %v1884
        %v1886 = vpop.f32.mrb[0].mxu0
        %1887 = vdwg.mxu0
        %v1888 = vadd.f32 %v1534, %v1803
        %v1889 = vadd.f32 %v1535, %v1805
        %v1890 = vadd.f32 %v1536, %v1866
        %v1891 = vadd.f32 %v1537, %v1807
        %v1892 = vadd.f32 %v1538, %v1809
        %v1893 = vadd.f32 %v1539, %v1869
        %v1894 = vadd.f32 %v1540, %v1813
        %v1895 = vadd.f32 %v1541, %v1815
        %v1896 = vadd.f32 %v1542, %v1874
        %v1897 = vadd.f32 %v1543, %v1817
        %v1898 = vadd.f32 %v1544, %v1819
        %v1899 = vadd.f32 %v1545, %v1877
        %v1900 = vadd.f32 %v1546, %v1823
        %v1901 = vadd.f32 %v1547, %v1825
        %v1902 = vadd.f32 %v1548, %v1882
        %v1903 = vadd.f32 %v1549, %v1827
        %v1904 = vadd.f32 %v1550, %v1829
        %v1905 = vadd.f32 %v1551, %v1885
        %s1906 = scalar_lea.vmem %s1, 864
        %v1907 = vld [vmem:[%s1906] sm:$0xff]
        %v1908 = vld [vmem:[%s1906 + $0x8] sm:$0xf]
        %v1909 = vld [vmem:[%s1906 + $0xc] sm:$0xff]
        %v1910 = vld [vmem:[%s1906 + $0x14] sm:$0xf]
        %v1911 = vld [vmem:[%s1906 + $0x18] sm:$0xff]
        %v1912 = vld [vmem:[%s1906 + $0x20] sm:$0xf]
        %v1913 = vld [vmem:[%s1906 + $0x24] sm:$0xff]
        %v1914 = vld [vmem:[%s1906 + $0x2c] sm:$0xf]
        %v1915 = vld [vmem:[%s1906 + $0x30] sm:$0xff]
        %v1916 = vld [vmem:[%s1906 + $0x38] sm:$0xf]
        %v1917 = vld [vmem:[%s1906 + $0x3c] sm:$0xff]
        %v1918 = vld [vmem:[%s1906 + $0x44] sm:$0xf]
        %v1919 = vld [vmem:[%s1906 + $0x48] sm:$0xff]
        %v1920 = vld [vmem:[%s1906 + $0x50] sm:$0xf]
        %v1921 = vld [vmem:[%s1906 + $0x54] sm:$0xff]
        %v1922 = vld [vmem:[%s1906 + $0x5c] sm:$0xf]
        %v1923 = vld [vmem:[%s1906 + $0x60] sm:$0xff]
        %v1924 = vld [vmem:[%s1906 + $0x68] sm:$0xf]
        %v1925 = vld [vmem:[%s1906 + $0x6c] sm:$0xff]
        %v1926 = vld [vmem:[%s1906 + $0x74] sm:$0xf]
        %v1927 = vld [vmem:[%s1906 + $0x78] sm:$0xff]
        %v1928 = vld [vmem:[%s1906 + $0x80] sm:$0xf]
        %v1929 = vld [vmem:[%s1906 + $0x84] sm:$0xff]
        %v1930 = vld [vmem:[%s1906 + $0x8c] sm:$0xf]
        %v1931 = vld [vmem:[%s1906 + $0x90] sm:$0xff]
        %v1932 = vld [vmem:[%s1906 + $0x98] sm:$0xf]
        %v1933 = vld [vmem:[%s1906 + $0x9c] sm:$0xff]
        %v1934 = vld [vmem:[%s1906 + $0xa4] sm:$0xf]
        %v1935 = vld [vmem:[%s1906 + $0xa8] sm:$0xff]
        %v1936 = vld [vmem:[%s1906 + $0xb0] sm:$0xf]
        %v1937 = vld [vmem:[%s1906 + $0xb4] sm:$0xff]
        %v1938 = vld [vmem:[%s1906 + $0xbc] sm:$0xf]
        %v1939 = vld [vmem:[%s1906 + $0xc0] sm:$0xff]
        %v1940 = vld [vmem:[%s1906 + $0xc8] sm:$0xf]
        %v1941 = vld [vmem:[%s1906 + $0xcc] sm:$0xff]
        %v1942 = vld [vmem:[%s1906 + $0xd4] sm:$0xf]
        %vm1943 = vcmask 1045504
        %v1944 = vrot.slane %v607, 2
        %v1945 = vrot.slane %v609, 2
        %v1946 = vsel %vm1943, %v1944, %v1945
        %v1947 = vrot.slane %v608, 2
        %v1948 = vrot.slane %v610, 2
        %v1949 = vsel %vm1943, %v1947, %v1948
        %v1950 = vrot.slane %v611, 2
        %v1951 = vsel %vm1943, %v1945, %v1950
        %v1952 = vrot.slane %v612, 2
        %v1953 = vsel %vm1943, %v1948, %v1952
        %v1993 = vunpack.c.l.b16 %v1907
        %v1994 = vunpack.c.h.b16 %v1907
        %v1995 = vunpack.c.l.b16 %v1908
        %v1996 = vunpack.c.l.b16 %v1909
        %v1997 = vunpack.c.h.b16 %v1909
        %v1998 = vunpack.c.l.b16 %v1910
        %v1999 = vunpack.c.l.b16 %v1911
        %v2000 = vunpack.c.h.b16 %v1911
        %v2001 = vunpack.c.l.b16 %v1912
        %v2002 = vunpack.c.l.b16 %v1913
        %v2003 = vunpack.c.h.b16 %v1913
        %v2004 = vunpack.c.l.b16 %v1914
        %v2005 = vunpack.c.l.b16 %v1915
        %v2006 = vunpack.c.h.b16 %v1915
        %v2007 = vunpack.c.l.b16 %v1916
        %v2008 = vunpack.c.l.b16 %v1917
        %v2009 = vunpack.c.h.b16 %v1917
        %v2010 = vunpack.c.l.b16 %v1918
        %v2011 = vunpack.c.l.b16 %v1919
        %v2012 = vunpack.c.h.b16 %v1919
        %v2013 = vunpack.c.l.b16 %v1920
        %v2014 = vunpack.c.l.b16 %v1921
        %v2015 = vunpack.c.h.b16 %v1921
        %v2016 = vunpack.c.l.b16 %v1922
        %v2017 = vunpack.c.l.b16 %v1923
        %v2018 = vunpack.c.h.b16 %v1923
        %v2019 = vunpack.c.l.b16 %v1924
        %v2020 = vunpack.c.l.b16 %v1925
        %v2021 = vunpack.c.h.b16 %v1925
        %v2022 = vunpack.c.l.b16 %v1926
        %v2023 = vunpack.c.l.b16 %v1927
        %v2024 = vunpack.c.h.b16 %v1927
        %v2025 = vunpack.c.l.b16 %v1928
        %v2026 = vunpack.c.l.b16 %v1929
        %v2027 = vunpack.c.h.b16 %v1929
        %v2028 = vunpack.c.l.b16 %v1930
        %v2029 = vunpack.c.l.b16 %v1931
        %v2030 = vunpack.c.h.b16 %v1931
        %v2031 = vunpack.c.l.b16 %v1932
        %v2032 = vunpack.c.l.b16 %v1933
        %v2033 = vunpack.c.h.b16 %v1933
        %v2034 = vunpack.c.l.b16 %v1934
        %v2035 = vunpack.c.l.b16 %v1935
        %v2036 = vunpack.c.h.b16 %v1935
        %v2037 = vunpack.c.l.b16 %v1936
        %v2038 = vunpack.c.l.b16 %v1937
        %v2039 = vunpack.c.h.b16 %v1937
        %v2040 = vunpack.c.l.b16 %v1938
        %v2041 = vunpack.c.l.b16 %v1939
        %v2042 = vunpack.c.h.b16 %v1939
        %v2043 = vunpack.c.l.b16 %v1940
        %v2044 = vunpack.c.l.b16 %v1941
        %v2045 = vunpack.c.h.b16 %v1941
        %v2046 = vunpack.c.l.b16 %v1942
        %v2047 = vpack.c.b16 %v1996, %v1993
        %v2048 = vpack.c.b16 %v1997, %v1994
        %v2049 = vpack.c.b16 %v1998, %v1995
        %v2050 = vpack.c.b16 %v2002, %v1999
        %v2051 = vpack.c.b16 %v2003, %v2000
        %v2052 = vpack.c.b16 %v2004, %v2001
        %v2053 = vpack.c.b16 %v2008, %v2005
        %v2054 = vpack.c.b16 %v2009, %v2006
        %v2055 = vpack.c.b16 %v2010, %v2007
        %v2056 = vpack.c.b16 %v2014, %v2011
        %v2057 = vpack.c.b16 %v2015, %v2012
        %v2058 = vpack.c.b16 %v2016, %v2013
        %v2059 = vpack.c.b16 %v2020, %v2017
        %v2060 = vpack.c.b16 %v2021, %v2018
        %v2061 = vpack.c.b16 %v2022, %v2019
        %v2062 = vpack.c.b16 %v2026, %v2023
        %v2063 = vpack.c.b16 %v2027, %v2024
        %v2064 = vpack.c.b16 %v2028, %v2025
        %v2065 = vpack.c.b16 %v2032, %v2029
        %v2066 = vpack.c.b16 %v2033, %v2030
        %v2067 = vpack.c.b16 %v2034, %v2031
        %v2068 = vpack.c.b16 %v2038, %v2035
        %v2069 = vpack.c.b16 %v2039, %v2036
        %v2070 = vpack.c.b16 %v2040, %v2037
        %v2071 = vpack.c.b16 %v2044, %v2041
        %v2072 = vpack.c.b16 %v2045, %v2042
        %v2073 = vpack.c.b16 %v2046, %v2043
        %v2102 = vsel %vm807, %v1949, 0
        %v2105 = vsel %vm807, %v1953, 0
        %v2108 = vsel %vm807, %v1952, 0
        %2110 = vmatprep.subr.bf16.mxu0 %v2048
        %2111 = vmatpush1.bf16.msra.mxu0 %v2047
        %2112 = vmatprep.subr.bf16.mxu0 %v2051
        %2113 = vmatpush1.bf16.msra.mxu0 %v2050
        %2114 = vmatprep.subr.bf16.mxu0 %v2054
        %2115 = vmatpush1.bf16.msra.mxu0 %v2053
        %2116 = vmatprep.subr.bf16.mxu0 %v2057
        %2117 = vmatpush1.bf16.msra.mxu0 %v2056
        %2118 = vmatprep.subr.bf16.mxu0 %v2060
        %2119 = vmatpush1.bf16.msra.mxu0 %v2059
        %2120 = vmatprep.subr.bf16.mxu0 %v2063
        %2121 = vmatpush1.bf16.msra.mxu0 %v2062
        %2122 = vmatprep.subr.bf16.mxu0 %v2066
        %2123 = vmatpush1.bf16.msra.mxu0 %v2065
        %2124 = vmatprep.subr.bf16.mxu0 %v2069
        %2125 = vmatpush1.bf16.msra.mxu0 %v2068
        %2126 = vmatprep.subr.bf16.mxu0 %v2072
        %2127 = vmatpush1.bf16.msra.mxu0 %v2071
        %2128 = vmatprep.subr.bf16.mxu0 0
        %2129 = vmatpush1.bf16.msra.mxu0 0
        %2130 = vmatprep.subr.bf16.mxu0 0
        %2131 = vmatpush1.bf16.msra.mxu0 0
        %2132 = vmatprep.subr.bf16.mxu0 0
        %2133 = vmatpush1.bf16.msra.mxu0 0
        %2134 = vmatprep.subr.bf16.mxu0 0
        %2135 = vmatpush1.bf16.msra.mxu0 0
        %2136 = vmatprep.subr.bf16.mxu0 0
        %2137 = vmatpush1.bf16.msra.mxu0 0
        %2138 = vmatprep.subr.bf16.mxu0 0
        %2139 = vmatpush1.bf16.msra.mxu0 0
        %2140 = vmatprep.subr.bf16.mxu0 0
        %2141 = vmatpush1.bf16.msra.mxu0 0
        %2142 = vmatprep.mubr.bf16.mxu0 %v2102
        %2143 = vmatmul.mubr.bf16.gmra.mrb[0].mxu0 %v1946
        %v2144 = vpop.f32.mrb[0].mxu0
        %v2145 = vadd.f32 0.0, %v2144
        %v2146 = vpop.f32.mrb[0].mxu0
        %v2147 = vadd.f32 0.0, %v2146
        %v2148 = vpop.f32.mrb[0].mxu0
        %v2149 = vadd.f32 0.0, %v2148
        %v2150 = vpop.f32.mrb[0].mxu0
        %v2151 = vadd.f32 0.0, %v2150
        %2152 = vmatprep.mubr.bf16.mxu0 %v2105
        %2153 = vmatmul.mubr.bf16.gmra.mrb[0].mxu0 %v1951
        %v2154 = vpop.f32.mrb[0].mxu0
        %v2155 = vadd.f32 0.0, %v2154
        %v2156 = vpop.f32.mrb[0].mxu0
        %v2157 = vadd.f32 0.0, %v2156
        %v2158 = vpop.f32.mrb[0].mxu0
        %v2159 = vadd.f32 0.0, %v2158
        %v2160 = vpop.f32.mrb[0].mxu0
        %v2161 = vadd.f32 0.0, %v2160
        %2162 = vmatprep.mubr.bf16.mxu0 %v2108
        %2163 = vmatmul.mubr.bf16.gmra.mrb[0].mxu0 %v1950
        %v2164 = vpop.f32.mrb[0].mxu0
        %v2165 = vadd.f32 0.0, %v2164
        %v2166 = vpop.f32.mrb[0].mxu0
        %v2167 = vadd.f32 0.0, %v2166
        %v2168 = vpop.f32.mrb[0].mxu0
        %v2169 = vadd.f32 0.0, %v2168
        %v2170 = vpop.f32.mrb[0].mxu0
        %v2171 = vadd.f32 0.0, %v2170
        %2172 = vdwg.mxu0
        %2173 = vmatprep.subr.bf16.mxu0 0
        %2174 = vmatpush1.bf16.msra.mxu0 %v2049
        %2175 = vmatprep.subr.bf16.mxu0 0
        %2176 = vmatpush1.bf16.msra.mxu0 %v2052
        %2177 = vmatprep.subr.bf16.mxu0 0
        %2178 = vmatpush1.bf16.msra.mxu0 %v2055
        %2179 = vmatprep.subr.bf16.mxu0 0
        %2180 = vmatpush1.bf16.msra.mxu0 %v2058
        %2181 = vmatprep.subr.bf16.mxu0 0
        %2182 = vmatpush1.bf16.msra.mxu0 %v2061
        %2183 = vmatprep.subr.bf16.mxu0 0
        %2184 = vmatpush1.bf16.msra.mxu0 %v2064
        %2185 = vmatprep.subr.bf16.mxu0 0
        %2186 = vmatpush1.bf16.msra.mxu0 %v2067
        %2187 = vmatprep.subr.bf16.mxu0 0
        %2188 = vmatpush1.bf16.msra.mxu0 %v2070
        %2189 = vmatprep.subr.bf16.mxu0 0
        %2190 = vmatpush1.bf16.msra.mxu0 %v2073
        %2191 = vmatprep.subr.bf16.mxu0 0
        %2192 = vmatpush1.bf16.msra.mxu0 0
        %2193 = vmatprep.subr.bf16.mxu0 0
        %2194 = vmatpush1.bf16.msra.mxu0 0
        %2195 = vmatprep.subr.bf16.mxu0 0
        %2196 = vmatpush1.bf16.msra.mxu0 0
        %2197 = vmatprep.subr.bf16.mxu0 0
        %2198 = vmatpush1.bf16.msra.mxu0 0
        %2199 = vmatprep.subr.bf16.mxu0 0
        %2200 = vmatpush1.bf16.msra.mxu0 0
        %2201 = vmatprep.subr.bf16.mxu0 0
        %2202 = vmatpush1.bf16.msra.mxu0 0
        %2203 = vmatprep.subr.bf16.mxu0 0
        %2204 = vmatpush1.bf16.msra.mxu0 0
        %2205 = vmatprep.mubr.bf16.mxu0 %v2102
        %2206 = vmatmul.mubr.bf16.gmra.mrb[0].mxu0 %v1946
        %v2207 = vpop.f32.mrb[0].mxu0
        %v2208 = vadd.f32 0.0, %v2207
        %v2209 = vpop.f32.mrb[0].mxu0
        %v2210 = vpop.f32.mrb[0].mxu0
        %v2211 = vadd.f32 0.0, %v2210
        %v2212 = vpop.f32.mrb[0].mxu0
        %2213 = vmatprep.mubr.bf16.mxu0 %v2105
        %2214 = vmatmul.mubr.bf16.gmra.mrb[0].mxu0 %v1951
        %v2215 = vpop.f32.mrb[0].mxu0
        %v2216 = vadd.f32 0.0, %v2215
        %v2217 = vpop.f32.mrb[0].mxu0
        %v2218 = vpop.f32.mrb[0].mxu0
        %v2219 = vadd.f32 0.0, %v2218
        %v2220 = vpop.f32.mrb[0].mxu0
        %2221 = vmatprep.mubr.bf16.mxu0 %v2108
        %2222 = vmatmul.mubr.bf16.gmra.mrb[0].mxu0 %v1950
        %v2223 = vpop.f32.mrb[0].mxu0
        %v2224 = vadd.f32 0.0, %v2223
        %v2225 = vpop.f32.mrb[0].mxu0
        %v2226 = vpop.f32.mrb[0].mxu0
        %v2227 = vadd.f32 0.0, %v2226
        %v2228 = vpop.f32.mrb[0].mxu0
        %2229 = vdwg.mxu0
        %v2230 = vadd.f32 %v1888, %v2145
        %v2231 = vadd.f32 %v1889, %v2147
        %v2232 = vadd.f32 %v1890, %v2208
        %v2233 = vadd.f32 %v1891, %v2149
        %v2234 = vadd.f32 %v1892, %v2151
        %v2235 = vadd.f32 %v1893, %v2211
        %v2236 = vadd.f32 %v1894, %v2155
        %v2237 = vadd.f32 %v1895, %v2157
        %v2238 = vadd.f32 %v1896, %v2216
        %v2239 = vadd.f32 %v1897, %v2159
        %v2240 = vadd.f32 %v1898, %v2161
        %v2241 = vadd.f32 %v1899, %v2219
        %v2242 = vadd.f32 %v1900, %v2165
        %v2243 = vadd.f32 %v1901, %v2167
        %v2244 = vadd.f32 %v1902, %v2224
        %v2245 = vadd.f32 %v1903, %v2169
        %v2246 = vadd.f32 %v1904, %v2171
        %v2247 = vadd.f32 %v1905, %v2227
        %v2248 = vld [vmem:[#allocation2] sm:$0xf]
        %v2249 = vld [vmem:[#allocation2 + $0x4] sm:$0xf]
        %v2250 = vld [vmem:[#allocation2 + $0x8] sm:$0xf]
        %v2251 = vld [vmem:[#allocation2 + $0xc] sm:$0xf]
        %v2252 = vld [vmem:[#allocation2 + $0x10] sm:$0xf]
        %v2253 = vld [vmem:[#allocation2 + $0x14] sm:$0x3]
        %v2254 = vpack.c.bf16 %v2233, %v2230
        %v2255 = vpack.c.bf16 %v2234, %v2231
        %v2256 = vpack.c.bf16 %v2235, %v2232
        %v2257 = vpack.c.bf16 %v2239, %v2236
        %v2258 = vpack.c.bf16 %v2240, %v2237
        %v2259 = vpack.c.bf16 %v2241, %v2238
        %v2260 = vpack.c.bf16 %v2245, %v2242
        %v2261 = vpack.c.bf16 %v2246, %v2243
        %v2262 = vpack.c.bf16 %v2247, %v2244
        %v2269 = vunpack.c.l.b16 %v2248
        %v2270 = vunpack.c.l.b16 %v2249
        %v2271 = vunpack.c.l.b16 %v2250
        %v2272 = vunpack.c.l.b16 %v2251
        %v2273 = vunpack.c.l.b16 %v2252
        %v2274 = vunpack.c.l.b16 %v2253
        %v2275 = vpack.c.b16 %v2270, %v2269
        %v2276 = vpack.c.b16 %v2272, %v2271
        %v2277 = vpack.c.b16 %v2274, %v2273
        %vm2278 = vcmask 359424
        %v2280 = vsel %vm2278, %v2275, 0
        %v2283 = vsel %vm2278, %v2276, 0
        %v2286 = vsel %vm2278, %v2277, 0
        %vm2288 = vcmask 1045504
        %v2290 = vsel %vm2288, %v2260, 0
        %v2293 = vsel %vm2288, %v2261, 0
        %v2296 = vsel %vm2288, %v2262, 0
        %2298 = vmatprep.subr.bf16.mxu0 %v2255
        %2299 = vmatpush1.bf16.msra.mxu0 %v2254
        %2300 = vmatprep.subr.bf16.mxu0 %v2258
        %2301 = vmatpush1.bf16.msra.mxu0 %v2257
        %2302 = vmatprep.subr.bf16.mxu0 %v2293
        %2303 = vmatpush1.bf16.msra.mxu0 %v2290
        %2304 = vmatprep.subr.bf16.mxu0 0
        %2305 = vmatpush1.bf16.msra.mxu0 0
        %2306 = vmatprep.subr.bf16.mxu0 0
        %2307 = vmatpush1.bf16.msra.mxu0 0
        %2308 = vmatprep.subr.bf16.mxu0 0
        %2309 = vmatpush1.bf16.msra.mxu0 0
        %2310 = vmatprep.subr.bf16.mxu0 0
        %2311 = vmatpush1.bf16.msra.mxu0 0
        %2312 = vmatprep.subr.bf16.mxu0 0
        %2313 = vmatpush1.bf16.msra.mxu0 0
        %2314 = vmatprep.subr.bf16.mxu0 0
        %2315 = vmatpush1.bf16.msra.mxu0 0
        %2316 = vmatprep.subr.bf16.mxu0 0
        %2317 = vmatpush1.bf16.msra.mxu0 0
        %2318 = vmatprep.subr.bf16.mxu0 0
        %2319 = vmatpush1.bf16.msra.mxu0 0
        %2320 = vmatprep.subr.bf16.mxu0 0
        %2321 = vmatpush1.bf16.msra.mxu0 0
        %2322 = vmatprep.subr.bf16.mxu0 0
        %2323 = vmatpush1.bf16.msra.mxu0 0
        %2324 = vmatprep.subr.bf16.mxu0 0
        %2325 = vmatpush1.bf16.msra.mxu0 0
        %2326 = vmatprep.subr.bf16.mxu0 0
        %2327 = vmatpush1.bf16.msra.mxu0 0
        %2328 = vmatprep.subr.bf16.mxu0 0
        %2329 = vmatpush1.bf16.msra.mxu0 0
        %2330 = vmatprep.mubr.bf16.mxu0 0
        %2331 = vmatmul.mubr.bf16.gmra.mrb[0].mxu0 %v2280
        %v2332 = vpop.f32.mrb[0].mxu0
        %v2333 = vadd.f32 0.0, %v2332
        %v2334 = vpop.f32.mrb[0].mxu0
        %v2335 = vadd.f32 0.0, %v2334
        %v2336 = vpop.f32.mrb[0].mxu0
        %v2337 = vadd.f32 0.0, %v2336
        %v2338 = vpop.f32.mrb[0].mxu0
        %v2339 = vadd.f32 0.0, %v2338
        %2340 = vmatprep.mubr.bf16.mxu0 0
        %2341 = vmatmul.mubr.bf16.gmra.mrb[0].mxu0 %v2283
        %v2342 = vpop.f32.mrb[0].mxu0
        %v2343 = vadd.f32 0.0, %v2342
        %v2344 = vpop.f32.mrb[0].mxu0
        %v2345 = vadd.f32 0.0, %v2344
        %v2346 = vpop.f32.mrb[0].mxu0
        %v2347 = vadd.f32 0.0, %v2346
        %v2348 = vpop.f32.mrb[0].mxu0
        %v2349 = vadd.f32 0.0, %v2348
        %2350 = vmatprep.mubr.bf16.mxu0 0
        %2351 = vmatmul.mubr.bf16.gmra.mrb[0].mxu0 %v2286
        %v2352 = vpop.f32.mrb[0].mxu0
        %v2353 = vadd.f32 0.0, %v2352
        %v2354 = vpop.f32.mrb[0].mxu0
        %v2355 = vadd.f32 0.0, %v2354
        %v2356 = vpop.f32.mrb[0].mxu0
        %v2357 = vadd.f32 0.0, %v2356
        %v2358 = vpop.f32.mrb[0].mxu0
        %v2359 = vadd.f32 0.0, %v2358
        %2360 = vdwg.mxu0
        %2361 = vmatprep.subr.bf16.mxu0 0
        %2362 = vmatpush1.bf16.msra.mxu0 %v2256
        %2363 = vmatprep.subr.bf16.mxu0 0
        %2364 = vmatpush1.bf16.msra.mxu0 %v2259
        %2365 = vmatprep.subr.bf16.mxu0 0
        %2366 = vmatpush1.bf16.msra.mxu0 %v2296
        %2367 = vmatprep.subr.bf16.mxu0 0
        %2368 = vmatpush1.bf16.msra.mxu0 0
        %2369 = vmatprep.subr.bf16.mxu0 0
        %2370 = vmatpush1.bf16.msra.mxu0 0
        %2371 = vmatprep.subr.bf16.mxu0 0
        %2372 = vmatpush1.bf16.msra.mxu0 0
        %2373 = vmatprep.subr.bf16.mxu0 0
        %2374 = vmatpush1.bf16.msra.mxu0 0
        %2375 = vmatprep.subr.bf16.mxu0 0
        %2376 = vmatpush1.bf16.msra.mxu0 0
        %2377 = vmatprep.subr.bf16.mxu0 0
        %2378 = vmatpush1.bf16.msra.mxu0 0
        %2379 = vmatprep.subr.bf16.mxu0 0
        %2380 = vmatpush1.bf16.msra.mxu0 0
        %2381 = vmatprep.subr.bf16.mxu0 0
        %2382 = vmatpush1.bf16.msra.mxu0 0
        %2383 = vmatprep.subr.bf16.mxu0 0
        %2384 = vmatpush1.bf16.msra.mxu0 0
        %2385 = vmatprep.subr.bf16.mxu0 0
        %2386 = vmatpush1.bf16.msra.mxu0 0
        %2387 = vmatprep.subr.bf16.mxu0 0
        %2388 = vmatpush1.bf16.msra.mxu0 0
        %2389 = vmatprep.subr.bf16.mxu0 0
        %2390 = vmatpush1.bf16.msra.mxu0 0
        %2391 = vmatprep.subr.bf16.mxu0 0
        %2392 = vmatpush1.bf16.msra.mxu0 0
        %2393 = vmatprep.mubr.bf16.mxu0 0
        %2394 = vmatmul.mubr.bf16.gmra.mrb[0].mxu0 %v2280
        %v2395 = vpop.f32.mrb[0].mxu0
        %v2396 = vadd.f32 0.0, %v2395
        %v2397 = vpop.f32.mrb[0].mxu0
        %v2398 = vpop.f32.mrb[0].mxu0
        %v2399 = vadd.f32 0.0, %v2398
        %v2400 = vpop.f32.mrb[0].mxu0
        %2401 = vmatprep.mubr.bf16.mxu0 0
        %2402 = vmatmul.mubr.bf16.gmra.mrb[0].mxu0 %v2283
        %v2403 = vpop.f32.mrb[0].mxu0
        %v2404 = vadd.f32 0.0, %v2403
        %v2405 = vpop.f32.mrb[0].mxu0
        %v2406 = vpop.f32.mrb[0].mxu0
        %v2407 = vadd.f32 0.0, %v2406
        %v2408 = vpop.f32.mrb[0].mxu0
        %2409 = vmatprep.mubr.bf16.mxu0 0
        %2410 = vmatmul.mubr.bf16.gmra.mrb[0].mxu0 %v2286
        %v2411 = vpop.f32.mrb[0].mxu0
        %v2412 = vadd.f32 0.0, %v2411
        %v2413 = vpop.f32.mrb[0].mxu0
        %v2414 = vpop.f32.mrb[0].mxu0
        %v2415 = vadd.f32 0.0, %v2414
        %v2416 = vpop.f32.mrb[0].mxu0
        %2417 = vdwg.mxu0
        %vm2430 = vcmask 1041408
        %v2431 = vrot.slane %v2343, 6
        %v2432 = vrot.slane %v2347, 6
        %v2433 = vsel %vm2430, %v2431, %v2432
        %v2434 = vrot.slane %v2345, 6
        %v2435 = vrot.slane %v2349, 6
        %v2436 = vsel %vm2430, %v2434, %v2435
        %v2437 = vrot.slane %v2404, 6
        %v2438 = vrot.slane %v2407, 6
        %v2439 = vsel %vm2430, %v2437, %v2438
        %v2440 = vrot.slane %v2353, 6
        %v2441 = vsel %vm2430, %v2432, %v2440
        %v2442 = vrot.slane %v2355, 6
        %v2443 = vsel %vm2430, %v2435, %v2442
        %v2444 = vrot.slane %v2412, 6
        %v2445 = vsel %vm2430, %v2438, %v2444
        %v2446 = vrot.slane %v2357, 6
        %v2447 = vsel %vm2430, %v2440, %v2446
        %v2448 = vrot.slane %v2359, 6
        %v2449 = vsel %vm2430, %v2442, %v2448
        %v2450 = vrot.slane %v2415, 6
        %v2451 = vsel %vm2430, %v2444, %v2450
        %v2461 = vmax.f32 %v2333, %v2433
        %v2462 = vmax.f32 %v2335, %v2436
        %v2463 = vmax.f32 %v2396, %v2439
        %v2464 = vmax.f32 %v2337, %v2441
        %v2465 = vmax.f32 %v2339, %v2443
        %v2466 = vmax.f32 %v2399, %v2445
        %v2467 = vmax.f32 %v2343, %v2447
        %v2468 = vmax.f32 %v2345, %v2449
        %v2469 = vmax.f32 %v2404, %v2451
        %2476 = vrot.lane.b32.xlu0 %v2462, 124
        %v2477 = vpop.permute.xlu0 %2476
        %2478 = vrot.lane.b32.xlu0 %v2463, 124
        %v2479 = vpop.permute.xlu0 %2478
        %2480 = vrot.lane.b32.xlu0 %v2465, 124
        %v2481 = vpop.permute.xlu0 %2480
        %2482 = vrot.lane.b32.xlu0 %v2466, 124
        %v2483 = vpop.permute.xlu0 %2482
        %2484 = vrot.lane.b32.xlu0 %v2468, 124
        %v2485 = vpop.permute.xlu0 %2484
        %2486 = vrot.lane.b32.xlu0 %v2469, 124
        %v2487 = vpop.permute.xlu0 %2486
        %vm2488 = vcmask 1014784
        %v2489 = vsel %vm2488, %v2477, %v2479
        %v2490 = vsel %vm2488, %v2481, %v2483
        %v2491 = vsel %vm2488, %v2485, %v2487
        %v2498 = vmax.f32 %v2461, %v2489
        %v2499 = vmax.f32 %v2462, %v2479
        %v2500 = vmax.f32 %v2464, %v2490
        %v2501 = vmax.f32 %v2465, %v2483
        %v2502 = vmax.f32 %v2467, %v2491
        %v2503 = vmax.f32 %v2468, %v2487
        %v2504 = vld [vmem:[%s2] sm:$0x3]
        %v2506 = vlaneseq
        %v2507 = vshrl.u32 %v2506, 7
        %v2508 = vsub.s32 0, %v2507
        %v2509 = vrot.slane %v2504, %v2508
        %v2510 = vlaneseq
        %v2511 = vshrl.u32 %v2510, 7
        %v2512 = vsub.s32 1, %v2511
        %v2513 = vrot.slane %v2504, %v2512
        %v2516 = vadd.f32 %v2498, %v2509
        %v2517 = vadd.f32 %v2499, %v2513
        %v2518 = vadd.f32 %v2500, %v2509
        %v2519 = vadd.f32 %v2501, %v2513
        %v2520 = vadd.f32 %v2502, %v2509
        %v2521 = vadd.f32 %v2503, %v2513
        %v2522 = vmax.f32 %v2516, 0.0
        %v2523 = vmax.f32 %v2517, 0.0
        %v2524 = vmax.f32 %v2518, 0.0
        %v2525 = vmax.f32 %v2519, 0.0
        %v2526 = vmax.f32 %v2520, 0.0
        %v2527 = vmax.f32 %v2521, 0.0
        %v2528 = vpack.c.bf16 %v2524, %v2522
        %v2529 = vpack.c.bf16 %v2525, %v2523
        %v2530 = vpack.c.bf16 %v2526, %v2526
        %v2531 = vpack.c.bf16 %v2527, %v2527
        %v2532 = vld [vmem:[#allocation5] sm:$0xff]
        %v2533 = vld [vmem:[#allocation5 + $0x8] sm:$0xf]
        %v2534 = vld [vmem:[#allocation5 + $0xc] sm:$0xff]
        %v2535 = vld [vmem:[#allocation5 + $0x14] sm:$0xf]
        %v2536 = vld [vmem:[#allocation5 + $0x18] sm:$0xff]
        %v2537 = vld [vmem:[#allocation5 + $0x20] sm:$0xf]
        %v2538 = vld [vmem:[#allocation5 + $0x24] sm:$0xff]
        %v2539 = vld [vmem:[#allocation5 + $0x2c] sm:$0xf]
        %v2540 = vld [vmem:[#allocation5 + $0x30] sm:$0xff]
        %v2541 = vld [vmem:[#allocation5 + $0x38] sm:$0xf]
        %v2542 = vld [vmem:[#allocation5 + $0x3c] sm:$0xff]
        %v2543 = vld [vmem:[#allocation5 + $0x44] sm:$0xf]
        %v2544 = vld [vmem:[#allocation5 + $0x48] sm:$0xff]
        %v2545 = vld [vmem:[#allocation5 + $0x50] sm:$0xf]
        %v2546 = vld [vmem:[#allocation5 + $0x54] sm:$0xff]
        %v2547 = vld [vmem:[#allocation5 + $0x5c] sm:$0xf]
        %v2548 = vld [vmem:[#allocation5 + $0x60] sm:$0xff]
        %v2549 = vld [vmem:[#allocation5 + $0x68] sm:$0xf]
        %v2550 = vld [vmem:[#allocation5 + $0x6c] sm:$0xff]
        %v2551 = vld [vmem:[#allocation5 + $0x74] sm:$0xf]
        %v2552 = vld [vmem:[#allocation5 + $0x78] sm:$0xff]
        %v2553 = vld [vmem:[#allocation5 + $0x80] sm:$0xf]
        %v2554 = vld [vmem:[#allocation5 + $0x84] sm:$0xff]
        %v2555 = vld [vmem:[#allocation5 + $0x8c] sm:$0xf]
        %v2556 = vld [vmem:[#allocation5 + $0x90] sm:$0xff]
        %v2557 = vld [vmem:[#allocation5 + $0x98] sm:$0xf]
        %v2558 = vld [vmem:[#allocation5 + $0x9c] sm:$0xff]
        %v2559 = vld [vmem:[#allocation5 + $0xa4] sm:$0xf]
        %v2560 = vld [vmem:[#allocation5 + $0xa8] sm:$0xff]
        %v2561 = vld [vmem:[#allocation5 + $0xb0] sm:$0xf]
        %v2562 = vld [vmem:[#allocation5 + $0xb4] sm:$0xff]
        %v2563 = vld [vmem:[#allocation5 + $0xbc] sm:$0xf]
        %v2564 = vld [vmem:[#allocation5 + $0xc0] sm:$0x33]
        %v2565 = vld [vmem:[#allocation5 + $0xc8] sm:$0x3]
        %s2566 = scalar_lea.vmem [#allocation5], 204
        %v2567 = vld [vmem:[%s2566] sm:$0xff]
        %v2568 = vld [vmem:[%s2566 + $0x8] sm:$0xf]
        %v2569 = vld [vmem:[%s2566 + $0xc] sm:$0xff]
        %v2570 = vld [vmem:[%s2566 + $0x14] sm:$0xf]
        %v2571 = vld [vmem:[%s2566 + $0x18] sm:$0xff]
        %v2572 = vld [vmem:[%s2566 + $0x20] sm:$0xf]
        %v2573 = vld [vmem:[%s2566 + $0x24] sm:$0xff]
        %v2574 = vld [vmem:[%s2566 + $0x2c] sm:$0xf]
        %v2575 = vld [vmem:[%s2566 + $0x30] sm:$0xff]
        %v2576 = vld [vmem:[%s2566 + $0x38] sm:$0xf]
        %v2577 = vld [vmem:[%s2566 + $0x3c] sm:$0xff]
        %v2578 = vld [vmem:[%s2566 + $0x44] sm:$0xf]
        %v2579 = vld [vmem:[%s2566 + $0x48] sm:$0xff]
        %v2580 = vld [vmem:[%s2566 + $0x50] sm:$0xf]
        %v2581 = vld [vmem:[%s2566 + $0x54] sm:$0xff]
        %v2582 = vld [vmem:[%s2566 + $0x5c] sm:$0xf]
        %v2583 = vld [vmem:[%s2566 + $0x60] sm:$0xff]
        %v2584 = vld [vmem:[%s2566 + $0x68] sm:$0xf]
        %v2585 = vld [vmem:[%s2566 + $0x6c] sm:$0xff]
        %v2586 = vld [vmem:[%s2566 + $0x74] sm:$0xf]
        %v2587 = vld [vmem:[%s2566 + $0x78] sm:$0xff]
        %v2588 = vld [vmem:[%s2566 + $0x80] sm:$0xf]
        %v2589 = vld [vmem:[%s2566 + $0x84] sm:$0xff]
        %v2590 = vld [vmem:[%s2566 + $0x8c] sm:$0xf]
        %v2591 = vld [vmem:[%s2566 + $0x90] sm:$0xff]
        %v2592 = vld [vmem:[%s2566 + $0x98] sm:$0xf]
        %v2593 = vld [vmem:[%s2566 + $0x9c] sm:$0xff]
        %v2594 = vld [vmem:[%s2566 + $0xa4] sm:$0xf]
        %v2595 = vld [vmem:[%s2566 + $0xa8] sm:$0xff]
        %v2596 = vld [vmem:[%s2566 + $0xb0] sm:$0xf]
        %v2597 = vld [vmem:[%s2566 + $0xb4] sm:$0xff]
        %v2598 = vld [vmem:[%s2566 + $0xbc] sm:$0xf]
        %v2599 = vld [vmem:[%s2566 + $0xc0] sm:$0x33]
        %v2600 = vld [vmem:[%s2566 + $0xc8] sm:$0x3]
        %v2602 = vshrl.u32 %v2528, 16
        %v2604 = vshll.u32 %v2528, 16
        %v2606 = vrot.slane %v2604, 1
        %v2607 = vor.u32 %v2602, %v2606
        %v2609 = vshll.u32 %v2530, 16
        %v2611 = vrot.slane %v2609, 1
        %v2612 = vsel %vm613, %v2607, %v2611
        %v2614 = vshrl.u32 %v2529, 16
        %v2616 = vshll.u32 %v2529, 16
        %v2618 = vrot.slane %v2616, 1
        %v2619 = vor.u32 %v2614, %v2618
        %v2621 = vshll.u32 %v2531, 16
        %v2623 = vrot.slane %v2621, 1
        %v2624 = vsel %vm613, %v2619, %v2623
        %v2625 = vshrl.u32 %v2530, 16
        %v2627 = vor.u32 %v2625, %v2611
        %v2628 = vshrl.u32 %v2531, 16
        %v2630 = vor.u32 %v2628, %v2623
        %v2667 = vunpack.c.l.b16 %v2567
        %v2668 = vunpack.c.h.b16 %v2567
        %v2669 = vunpack.c.l.b16 %v2568
        %v2670 = vunpack.c.l.b16 %v2569
        %v2671 = vunpack.c.h.b16 %v2569
        %v2672 = vunpack.c.l.b16 %v2570
        %v2673 = vunpack.c.l.b16 %v2571
        %v2674 = vunpack.c.h.b16 %v2571
        %v2675 = vunpack.c.l.b16 %v2572
        %v2676 = vunpack.c.l.b16 %v2573
        %v2677 = vunpack.c.h.b16 %v2573
        %v2678 = vunpack.c.l.b16 %v2574
        %v2679 = vunpack.c.l.b16 %v2575
        %v2680 = vunpack.c.h.b16 %v2575
        %v2681 = vunpack.c.l.b16 %v2576
        %v2682 = vunpack.c.l.b16 %v2577
        %v2683 = vunpack.c.h.b16 %v2577
        %v2684 = vunpack.c.l.b16 %v2578
        %v2685 = vunpack.c.l.b16 %v2579
        %v2686 = vunpack.c.h.b16 %v2579
        %v2687 = vunpack.c.l.b16 %v2580
        %v2688 = vunpack.c.l.b16 %v2581
        %v2689 = vunpack.c.h.b16 %v2581
        %v2690 = vunpack.c.l.b16 %v2582
        %v2691 = vunpack.c.l.b16 %v2583
        %v2692 = vunpack.c.h.b16 %v2583
        %v2693 = vunpack.c.l.b16 %v2584
        %v2694 = vunpack.c.l.b16 %v2585
        %v2695 = vunpack.c.h.b16 %v2585
        %v2696 = vunpack.c.l.b16 %v2586
        %v2697 = vunpack.c.l.b16 %v2587
        %v2698 = vunpack.c.h.b16 %v2587
        %v2699 = vunpack.c.l.b16 %v2588
        %v2700 = vunpack.c.l.b16 %v2589
        %v2701 = vunpack.c.h.b16 %v2589
        %v2702 = vunpack.c.l.b16 %v2590
        %v2703 = vunpack.c.l.b16 %v2591
        %v2704 = vunpack.c.h.b16 %v2591
        %v2705 = vunpack.c.l.b16 %v2592
        %v2706 = vunpack.c.l.b16 %v2593
        %v2707 = vunpack.c.h.b16 %v2593
        %v2708 = vunpack.c.l.b16 %v2594
        %v2709 = vunpack.c.l.b16 %v2595
        %v2710 = vunpack.c.h.b16 %v2595
        %v2711 = vunpack.c.l.b16 %v2596
        %v2712 = vunpack.c.l.b16 %v2597
        %v2713 = vunpack.c.h.b16 %v2597
        %v2714 = vunpack.c.l.b16 %v2598
        %v2715 = vunpack.c.l.b16 %v2599
        %v2716 = vunpack.c.h.b16 %v2599
        %v2717 = vunpack.c.l.b16 %v2600
        %v2718 = vpack.c.b16 %v2670, %v2667
        %v2719 = vpack.c.b16 %v2671, %v2668
        %v2720 = vpack.c.b16 %v2672, %v2669
        %v2721 = vpack.c.b16 %v2676, %v2673
        %v2722 = vpack.c.b16 %v2677, %v2674
        %v2723 = vpack.c.b16 %v2678, %v2675
        %v2724 = vpack.c.b16 %v2682, %v2679
        %v2725 = vpack.c.b16 %v2683, %v2680
        %v2726 = vpack.c.b16 %v2684, %v2681
        %v2727 = vpack.c.b16 %v2688, %v2685
        %v2728 = vpack.c.b16 %v2689, %v2686
        %v2729 = vpack.c.b16 %v2690, %v2687
        %v2730 = vpack.c.b16 %v2694, %v2691
        %v2731 = vpack.c.b16 %v2695, %v2692
        %v2732 = vpack.c.b16 %v2696, %v2693
        %v2733 = vpack.c.b16 %v2700, %v2697
        %v2734 = vpack.c.b16 %v2701, %v2698
        %v2735 = vpack.c.b16 %v2702, %v2699
        %v2736 = vpack.c.b16 %v2706, %v2703
        %v2737 = vpack.c.b16 %v2707, %v2704
        %v2738 = vpack.c.b16 %v2708, %v2705
        %v2739 = vpack.c.b16 %v2712, %v2709
        %v2740 = vpack.c.b16 %v2713, %v2710
        %v2741 = vpack.c.b16 %v2714, %v2711
        %v2742 = vpack.c.b16 %v2715, %v2715
        %v2743 = vpack.c.b16 %v2716, %v2716
        %v2744 = vpack.c.b16 %v2717, %v2717
        %vm2769 = vcmask 31744
        %v2771 = vsel %vm2769, %v2624, 0
        %v2774 = vsel %vm2769, %v2630, 0
        %v2777 = vsel %vm2430, %v2742, 0
        %v2780 = vsel %vm2430, %v2743, 0
        %v2783 = vsel %vm2430, %v2744, 0
        %2785 = vmatprep.subr.bf16.mxu0 %v2719
        %2786 = vmatpush1.bf16.msra.mxu0 %v2718
        %2787 = vmatprep.subr.bf16.mxu0 %v2722
        %2788 = vmatpush1.bf16.msra.mxu0 %v2721
        %2789 = vmatprep.subr.bf16.mxu0 %v2725
        %2790 = vmatpush1.bf16.msra.mxu0 %v2724
        %2791 = vmatprep.subr.bf16.mxu0 %v2728
        %2792 = vmatpush1.bf16.msra.mxu0 %v2727
        %2793 = vmatprep.subr.bf16.mxu0 %v2731
        %2794 = vmatpush1.bf16.msra.mxu0 %v2730
        %2795 = vmatprep.subr.bf16.mxu0 %v2734
        %2796 = vmatpush1.bf16.msra.mxu0 %v2733
        %2797 = vmatprep.subr.bf16.mxu0 %v2737
        %2798 = vmatpush1.bf16.msra.mxu0 %v2736
        %2799 = vmatprep.subr.bf16.mxu0 %v2740
        %2800 = vmatpush1.bf16.msra.mxu0 %v2739
        %2801 = vmatprep.subr.bf16.mxu0 %v2780
        %2802 = vmatpush1.bf16.msra.mxu0 %v2777
        %2803 = vmatprep.subr.bf16.mxu0 0
        %2804 = vmatpush1.bf16.msra.mxu0 0
        %2805 = vmatprep.subr.bf16.mxu0 0
        %2806 = vmatpush1.bf16.msra.mxu0 0
        %2807 = vmatprep.subr.bf16.mxu0 0
        %2808 = vmatpush1.bf16.msra.mxu0 0
        %2809 = vmatprep.subr.bf16.mxu0 0
        %2810 = vmatpush1.bf16.msra.mxu0 0
        %2811 = vmatprep.subr.bf16.mxu0 0
        %2812 = vmatpush1.bf16.msra.mxu0 0
        %2813 = vmatprep.subr.bf16.mxu0 0
        %2814 = vmatpush1.bf16.msra.mxu0 0
        %2815 = vmatprep.subr.bf16.mxu0 0
        %2816 = vmatpush1.bf16.msra.mxu0 0
        %2817 = vmatprep.mubr.bf16.mxu0 %v2771
        %2818 = vmatmul.mubr.bf16.gmra.mrb[0].mxu0 %v2612
        %v2819 = vpop.f32.mrb[0].mxu0
        %v2820 = vadd.f32 0.0, %v2819
        %v2821 = vpop.f32.mrb[0].mxu0
        %v2822 = vadd.f32 0.0, %v2821
        %v2823 = vpop.f32.mrb[0].mxu0
        %v2824 = vadd.f32 0.0, %v2823
        %v2825 = vpop.f32.mrb[0].mxu0
        %v2826 = vadd.f32 0.0, %v2825
        %2827 = vmatprep.mubr.bf16.mxu0 %v2774
        %2828 = vmatmul.mubr.bf16.gmra.mrb[0].mxu0 %v2627
        %v2829 = vpop.f32.mrb[0].mxu0
        %v2830 = vadd.f32 0.0, %v2829
        %v2831 = vpop.f32.mrb[0].mxu0
        %v2832 = vadd.f32 0.0, %v2831
        %v2833 = vpop.f32.mrb[0].mxu0
        %v2834 = vpop.f32.mrb[0].mxu0
        %2835 = vdwg.mxu0
        %2836 = vmatprep.subr.bf16.mxu0 0
        %2837 = vmatpush1.bf16.msra.mxu0 %v2720
        %2838 = vmatprep.subr.bf16.mxu0 0
        %2839 = vmatpush1.bf16.msra.mxu0 %v2723
        %2840 = vmatprep.subr.bf16.mxu0 0
        %2841 = vmatpush1.bf16.msra.mxu0 %v2726
        %2842 = vmatprep.subr.bf16.mxu0 0
        %2843 = vmatpush1.bf16.msra.mxu0 %v2729
        %2844 = vmatprep.subr.bf16.mxu0 0
        %2845 = vmatpush1.bf16.msra.mxu0 %v2732
        %2846 = vmatprep.subr.bf16.mxu0 0
        %2847 = vmatpush1.bf16.msra.mxu0 %v2735
        %2848 = vmatprep.subr.bf16.mxu0 0
        %2849 = vmatpush1.bf16.msra.mxu0 %v2738
        %2850 = vmatprep.subr.bf16.mxu0 0
        %2851 = vmatpush1.bf16.msra.mxu0 %v2741
        %2852 = vmatprep.subr.bf16.mxu0 0
        %2853 = vmatpush1.bf16.msra.mxu0 %v2783
        %2854 = vmatprep.subr.bf16.mxu0 0
        %2855 = vmatpush1.bf16.msra.mxu0 0
        %2856 = vmatprep.subr.bf16.mxu0 0
        %2857 = vmatpush1.bf16.msra.mxu0 0
        %2858 = vmatprep.subr.bf16.mxu0 0
        %2859 = vmatpush1.bf16.msra.mxu0 0
        %2860 = vmatprep.subr.bf16.mxu0 0
        %2861 = vmatpush1.bf16.msra.mxu0 0
        %2862 = vmatprep.subr.bf16.mxu0 0
        %2863 = vmatpush1.bf16.msra.mxu0 0
        %2864 = vmatprep.subr.bf16.mxu0 0
        %2865 = vmatpush1.bf16.msra.mxu0 0
        %2866 = vmatprep.subr.bf16.mxu0 0
        %2867 = vmatpush1.bf16.msra.mxu0 0
        %2868 = vmatprep.mubr.bf16.mxu0 %v2771
        %2869 = vmatmul.mubr.bf16.gmra.mrb[0].mxu0 %v2612
        %v2870 = vpop.f32.mrb[0].mxu0
        %v2871 = vadd.f32 0.0, %v2870
        %v2872 = vpop.f32.mrb[0].mxu0
        %v2873 = vpop.f32.mrb[0].mxu0
        %v2874 = vadd.f32 0.0, %v2873
        %v2875 = vpop.f32.mrb[0].mxu0
        %2876 = vmatprep.mubr.bf16.mxu0 %v2774
        %2877 = vmatmul.mubr.bf16.gmra.mrb[0].mxu0 %v2627
        %v2878 = vpop.f32.mrb[0].mxu0
        %v2879 = vadd.f32 0.0, %v2878
        %v2880 = vpop.f32.mrb[0].mxu0
        %v2881 = vpop.f32.mrb[0].mxu0
        %v2882 = vpop.f32.mrb[0].mxu0
        %2883 = vdwg.mxu0
        %v2918 = vunpack.c.l.b16 %v2532
        %v2919 = vunpack.c.h.b16 %v2532
        %v2920 = vunpack.c.l.b16 %v2533
        %v2921 = vunpack.c.l.b16 %v2534
        %v2922 = vunpack.c.h.b16 %v2534
        %v2923 = vunpack.c.l.b16 %v2535
        %v2924 = vunpack.c.l.b16 %v2536
        %v2925 = vunpack.c.h.b16 %v2536
        %v2926 = vunpack.c.l.b16 %v2537
        %v2927 = vunpack.c.l.b16 %v2538
        %v2928 = vunpack.c.h.b16 %v2538
        %v2929 = vunpack.c.l.b16 %v2539
        %v2930 = vunpack.c.l.b16 %v2540
        %v2931 = vunpack.c.h.b16 %v2540
        %v2932 = vunpack.c.l.b16 %v2541
        %v2933 = vunpack.c.l.b16 %v2542
        %v2934 = vunpack.c.h.b16 %v2542
        %v2935 = vunpack.c.l.b16 %v2543
        %v2936 = vunpack.c.l.b16 %v2544
        %v2937 = vunpack.c.h.b16 %v2544
        %v2938 = vunpack.c.l.b16 %v2545
        %v2939 = vunpack.c.l.b16 %v2546
        %v2940 = vunpack.c.h.b16 %v2546
        %v2941 = vunpack.c.l.b16 %v2547
        %v2942 = vunpack.c.l.b16 %v2548
        %v2943 = vunpack.c.h.b16 %v2548
        %v2944 = vunpack.c.l.b16 %v2549
        %v2945 = vunpack.c.l.b16 %v2550
        %v2946 = vunpack.c.h.b16 %v2550
        %v2947 = vunpack.c.l.b16 %v2551
        %v2948 = vunpack.c.l.b16 %v2552
        %v2949 = vunpack.c.h.b16 %v2552
        %v2950 = vunpack.c.l.b16 %v2553
        %v2951 = vunpack.c.l.b16 %v2554
        %v2952 = vunpack.c.h.b16 %v2554
        %v2953 = vunpack.c.l.b16 %v2555
        %v2954 = vunpack.c.l.b16 %v2556
        %v2955 = vunpack.c.h.b16 %v2556
        %v2956 = vunpack.c.l.b16 %v2557
        %v2957 = vunpack.c.l.b16 %v2558
        %v2958 = vunpack.c.h.b16 %v2558
        %v2959 = vunpack.c.l.b16 %v2559
        %v2960 = vunpack.c.l.b16 %v2560
        %v2961 = vunpack.c.h.b16 %v2560
        %v2962 = vunpack.c.l.b16 %v2561
        %v2963 = vunpack.c.l.b16 %v2562
        %v2964 = vunpack.c.h.b16 %v2562
        %v2965 = vunpack.c.l.b16 %v2563
        %v2966 = vunpack.c.l.b16 %v2564
        %v2967 = vunpack.c.h.b16 %v2564
        %v2968 = vunpack.c.l.b16 %v2565
        %v2969 = vpack.c.b16 %v2921, %v2918
        %v2970 = vpack.c.b16 %v2922, %v2919
        %v2971 = vpack.c.b16 %v2923, %v2920
        %v2972 = vpack.c.b16 %v2927, %v2924
        %v2973 = vpack.c.b16 %v2928, %v2925
        %v2974 = vpack.c.b16 %v2929, %v2926
        %v2975 = vpack.c.b16 %v2933, %v2930
        %v2976 = vpack.c.b16 %v2934, %v2931
        %v2977 = vpack.c.b16 %v2935, %v2932
        %v2978 = vpack.c.b16 %v2939, %v2936
        %v2979 = vpack.c.b16 %v2940, %v2937
        %v2980 = vpack.c.b16 %v2941, %v2938
        %v2981 = vpack.c.b16 %v2945, %v2942
        %v2982 = vpack.c.b16 %v2946, %v2943
        %v2983 = vpack.c.b16 %v2947, %v2944
        %v2984 = vpack.c.b16 %v2951, %v2948
        %v2985 = vpack.c.b16 %v2952, %v2949
        %v2986 = vpack.c.b16 %v2953, %v2950
        %v2987 = vpack.c.b16 %v2957, %v2954
        %v2988 = vpack.c.b16 %v2958, %v2955
        %v2989 = vpack.c.b16 %v2959, %v2956
        %v2990 = vpack.c.b16 %v2963, %v2960
        %v2991 = vpack.c.b16 %v2964, %v2961
        %v2992 = vpack.c.b16 %v2965, %v2962
        %v2993 = vpack.c.b16 %v2966, %v2966
        %v2994 = vpack.c.b16 %v2967, %v2967
        %v2995 = vpack.c.b16 %v2968, %v2968
        %v3020 = vsel %vm2769, %v2529, 0
        %v3022 = vsel %vm2769, %v2531, 0
        %v3025 = vsel %vm2430, %v2993, 0
        %v3028 = vsel %vm2430, %v2994, 0
        %v3031 = vsel %vm2430, %v2995, 0
        %3033 = vmatprep.subr.bf16.mxu0 %v2970
        %3034 = vmatpush1.bf16.msra.mxu0 %v2969
        %3035 = vmatprep.subr.bf16.mxu0 %v2973
        %3036 = vmatpush1.bf16.msra.mxu0 %v2972
        %3037 = vmatprep.subr.bf16.mxu0 %v2976
        %3038 = vmatpush1.bf16.msra.mxu0 %v2975
        %3039 = vmatprep.subr.bf16.mxu0 %v2979
        %3040 = vmatpush1.bf16.msra.mxu0 %v2978
        %3041 = vmatprep.subr.bf16.mxu0 %v2982
        %3042 = vmatpush1.bf16.msra.mxu0 %v2981
        %3043 = vmatprep.subr.bf16.mxu0 %v2985
        %3044 = vmatpush1.bf16.msra.mxu0 %v2984
        %3045 = vmatprep.subr.bf16.mxu0 %v2988
        %3046 = vmatpush1.bf16.msra.mxu0 %v2987
        %3047 = vmatprep.subr.bf16.mxu0 %v2991
        %3048 = vmatpush1.bf16.msra.mxu0 %v2990
        %3049 = vmatprep.subr.bf16.mxu0 %v3028
        %3050 = vmatpush1.bf16.msra.mxu0 %v3025
        %3051 = vmatprep.subr.bf16.mxu0 0
        %3052 = vmatpush1.bf16.msra.mxu0 0
        %3053 = vmatprep.subr.bf16.mxu0 0
        %3054 = vmatpush1.bf16.msra.mxu0 0
        %3055 = vmatprep.subr.bf16.mxu0 0
        %3056 = vmatpush1.bf16.msra.mxu0 0
        %3057 = vmatprep.subr.bf16.mxu0 0
        %3058 = vmatpush1.bf16.msra.mxu0 0
        %3059 = vmatprep.subr.bf16.mxu0 0
        %3060 = vmatpush1.bf16.msra.mxu0 0
        %3061 = vmatprep.subr.bf16.mxu0 0
        %3062 = vmatpush1.bf16.msra.mxu0 0
        %3063 = vmatprep.subr.bf16.mxu0 0
        %3064 = vmatpush1.bf16.msra.mxu0 0
        %3065 = vmatprep.mubr.bf16.mxu0 %v3020
        %3066 = vmatmul.mubr.bf16.gmra.mrb[0].mxu0 %v2528
        %v3067 = vpop.f32.mrb[0].mxu0
        %v3068 = vadd.f32 %v2820, %v3067
        %v3069 = vpop.f32.mrb[0].mxu0
        %v3070 = vadd.f32 %v2822, %v3069
        %v3071 = vpop.f32.mrb[0].mxu0
        %v3072 = vadd.f32 %v2824, %v3071
        %v3073 = vpop.f32.mrb[0].mxu0
        %v3074 = vadd.f32 %v2826, %v3073
        %3075 = vmatprep.mubr.bf16.mxu0 %v3022
        %3076 = vmatmul.mubr.bf16.gmra.mrb[0].mxu0 %v2530
        %v3077 = vpop.f32.mrb[0].mxu0
        %v3078 = vadd.f32 %v2830, %v3077
        %v3079 = vpop.f32.mrb[0].mxu0
        %v3080 = vadd.f32 %v2832, %v3079
        %v3081 = vpop.f32.mrb[0].mxu0
        %v3082 = vpop.f32.mrb[0].mxu0
        %3083 = vdwg.mxu0
        %3084 = vmatprep.subr.bf16.mxu0 0
        %3085 = vmatpush1.bf16.msra.mxu0 %v2971
        %3086 = vmatprep.subr.bf16.mxu0 0
        %3087 = vmatpush1.bf16.msra.mxu0 %v2974
        %3088 = vmatprep.subr.bf16.mxu0 0
        %3089 = vmatpush1.bf16.msra.mxu0 %v2977
        %3090 = vmatprep.subr.bf16.mxu0 0
        %3091 = vmatpush1.bf16.msra.mxu0 %v2980
        %3092 = vmatprep.subr.bf16.mxu0 0
        %3093 = vmatpush1.bf16.msra.mxu0 %v2983
        %3094 = vmatprep.subr.bf16.mxu0 0
        %3095 = vmatpush1.bf16.msra.mxu0 %v2986
        %3096 = vmatprep.subr.bf16.mxu0 0
        %3097 = vmatpush1.bf16.msra.mxu0 %v2989
        %3098 = vmatprep.subr.bf16.mxu0 0
        %3099 = vmatpush1.bf16.msra.mxu0 %v2992
        %3100 = vmatprep.subr.bf16.mxu0 0
        %3101 = vmatpush1.bf16.msra.mxu0 %v3031
        %3102 = vmatprep.subr.bf16.mxu0 0
        %3103 = vmatpush1.bf16.msra.mxu0 0
        %3104 = vmatprep.subr.bf16.mxu0 0
        %3105 = vmatpush1.bf16.msra.mxu0 0
        %3106 = vmatprep.subr.bf16.mxu0 0
        %3107 = vmatpush1.bf16.msra.mxu0 0
        %3108 = vmatprep.subr.bf16.mxu0 0
        %3109 = vmatpush1.bf16.msra.mxu0 0
        %3110 = vmatprep.subr.bf16.mxu0 0
        %3111 = vmatpush1.bf16.msra.mxu0 0
        %3112 = vmatprep.subr.bf16.mxu0 0
        %3113 = vmatpush1.bf16.msra.mxu0 0
        %3114 = vmatprep.subr.bf16.mxu0 0
        %3115 = vmatpush1.bf16.msra.mxu0 0
        %3116 = vmatprep.mubr.bf16.mxu0 %v3020
        %3117 = vmatmul.mubr.bf16.gmra.mrb[0].mxu0 %v2528
        %v3118 = vpop.f32.mrb[0].mxu0
        %v3119 = vadd.f32 %v2871, %v3118
        %v3120 = vpop.f32.mrb[0].mxu0
        %v3121 = vpop.f32.mrb[0].mxu0
        %v3122 = vadd.f32 %v2874, %v3121
        %v3123 = vpop.f32.mrb[0].mxu0
        %3124 = vmatprep.mubr.bf16.mxu0 %v3022
        %3125 = vmatmul.mubr.bf16.gmra.mrb[0].mxu0 %v2530
        %v3126 = vpop.f32.mrb[0].mxu0
        %v3127 = vadd.f32 %v2879, %v3126
        %v3128 = vpop.f32.mrb[0].mxu0
        %v3129 = vpop.f32.mrb[0].mxu0
        %v3130 = vpop.f32.mrb[0].mxu0
        %3131 = vdwg.mxu0
        %s3132 = scalar_lea.vmem [#allocation5], 408
        %v3133 = vld [vmem:[%s3132] sm:$0xff]
        %v3134 = vld [vmem:[%s3132 + $0x8] sm:$0xf]
        %v3135 = vld [vmem:[%s3132 + $0xc] sm:$0xff]
        %v3136 = vld [vmem:[%s3132 + $0x14] sm:$0xf]
        %v3137 = vld [vmem:[%s3132 + $0x18] sm:$0xff]
        %v3138 = vld [vmem:[%s3132 + $0x20] sm:$0xf]
        %v3139 = vld [vmem:[%s3132 + $0x24] sm:$0xff]
        %v3140 = vld [vmem:[%s3132 + $0x2c] sm:$0xf]
        %v3141 = vld [vmem:[%s3132 + $0x30] sm:$0xff]
        %v3142 = vld [vmem:[%s3132 + $0x38] sm:$0xf]
        %v3143 = vld [vmem:[%s3132 + $0x3c] sm:$0xff]
        %v3144 = vld [vmem:[%s3132 + $0x44] sm:$0xf]
        %v3145 = vld [vmem:[%s3132 + $0x48] sm:$0xff]
        %v3146 = vld [vmem:[%s3132 + $0x50] sm:$0xf]
        %v3147 = vld [vmem:[%s3132 + $0x54] sm:$0xff]
        %v3148 = vld [vmem:[%s3132 + $0x5c] sm:$0xf]
        %v3149 = vld [vmem:[%s3132 + $0x60] sm:$0xff]
        %v3150 = vld [vmem:[%s3132 + $0x68] sm:$0xf]
        %v3151 = vld [vmem:[%s3132 + $0x6c] sm:$0xff]
        %v3152 = vld [vmem:[%s3132 + $0x74] sm:$0xf]
        %v3153 = vld [vmem:[%s3132 + $0x78] sm:$0xff]
        %v3154 = vld [vmem:[%s3132 + $0x80] sm:$0xf]
        %v3155 = vld [vmem:[%s3132 + $0x84] sm:$0xff]
        %v3156 = vld [vmem:[%s3132 + $0x8c] sm:$0xf]
        %v3157 = vld [vmem:[%s3132 + $0x90] sm:$0xff]
        %v3158 = vld [vmem:[%s3132 + $0x98] sm:$0xf]
        %v3159 = vld [vmem:[%s3132 + $0x9c] sm:$0xff]
        %v3160 = vld [vmem:[%s3132 + $0xa4] sm:$0xf]
        %v3161 = vld [vmem:[%s3132 + $0xa8] sm:$0xff]
        %v3162 = vld [vmem:[%s3132 + $0xb0] sm:$0xf]
        %v3163 = vld [vmem:[%s3132 + $0xb4] sm:$0xff]
        %v3164 = vld [vmem:[%s3132 + $0xbc] sm:$0xf]
        %v3165 = vld [vmem:[%s3132 + $0xc0] sm:$0x33]
        %v3166 = vld [vmem:[%s3132 + $0xc8] sm:$0x3]
        %v3171 = vrot.slane %v2528, 1
        %v3172 = vrot.slane %v2530, 1
        %v3173 = vsel %vm1247, %v3171, %v3172
        %v3174 = vrot.slane %v2529, 1
        %v3175 = vrot.slane %v2531, 1
        %v3176 = vsel %vm1247, %v3174, %v3175
        %v3213 = vunpack.c.l.b16 %v3133
        %v3214 = vunpack.c.h.b16 %v3133
        %v3215 = vunpack.c.l.b16 %v3134
        %v3216 = vunpack.c.l.b16 %v3135
        %v3217 = vunpack.c.h.b16 %v3135
        %v3218 = vunpack.c.l.b16 %v3136
        %v3219 = vunpack.c.l.b16 %v3137
        %v3220 = vunpack.c.h.b16 %v3137
        %v3221 = vunpack.c.l.b16 %v3138
        %v3222 = vunpack.c.l.b16 %v3139
        %v3223 = vunpack.c.h.b16 %v3139
        %v3224 = vunpack.c.l.b16 %v3140
        %v3225 = vunpack.c.l.b16 %v3141
        %v3226 = vunpack.c.h.b16 %v3141
        %v3227 = vunpack.c.l.b16 %v3142
        %v3228 = vunpack.c.l.b16 %v3143
        %v3229 = vunpack.c.h.b16 %v3143
        %v3230 = vunpack.c.l.b16 %v3144
        %v3231 = vunpack.c.l.b16 %v3145
        %v3232 = vunpack.c.h.b16 %v3145
        %v3233 = vunpack.c.l.b16 %v3146
        %v3234 = vunpack.c.l.b16 %v3147
        %v3235 = vunpack.c.h.b16 %v3147
        %v3236 = vunpack.c.l.b16 %v3148
        %v3237 = vunpack.c.l.b16 %v3149
        %v3238 = vunpack.c.h.b16 %v3149
        %v3239 = vunpack.c.l.b16 %v3150
        %v3240 = vunpack.c.l.b16 %v3151
        %v3241 = vunpack.c.h.b16 %v3151
        %v3242 = vunpack.c.l.b16 %v3152
        %v3243 = vunpack.c.l.b16 %v3153
        %v3244 = vunpack.c.h.b16 %v3153
        %v3245 = vunpack.c.l.b16 %v3154
        %v3246 = vunpack.c.l.b16 %v3155
        %v3247 = vunpack.c.h.b16 %v3155
        %v3248 = vunpack.c.l.b16 %v3156
        %v3249 = vunpack.c.l.b16 %v3157
        %v3250 = vunpack.c.h.b16 %v3157
        %v3251 = vunpack.c.l.b16 %v3158
        %v3252 = vunpack.c.l.b16 %v3159
        %v3253 = vunpack.c.h.b16 %v3159
        %v3254 = vunpack.c.l.b16 %v3160
        %v3255 = vunpack.c.l.b16 %v3161
        %v3256 = vunpack.c.h.b16 %v3161
        %v3257 = vunpack.c.l.b16 %v3162
        %v3258 = vunpack.c.l.b16 %v3163
        %v3259 = vunpack.c.h.b16 %v3163
        %v3260 = vunpack.c.l.b16 %v3164
        %v3261 = vunpack.c.l.b16 %v3165
        %v3262 = vunpack.c.h.b16 %v3165
        %v3263 = vunpack.c.l.b16 %v3166
        %v3264 = vpack.c.b16 %v3216, %v3213
        %v3265 = vpack.c.b16 %v3217, %v3214
        %v3266 = vpack.c.b16 %v3218, %v3215
        %v3267 = vpack.c.b16 %v3222, %v3219
        %v3268 = vpack.c.b16 %v3223, %v3220
        %v3269 = vpack.c.b16 %v3224, %v3221
        %v3270 = vpack.c.b16 %v3228, %v3225
        %v3271 = vpack.c.b16 %v3229, %v3226
        %v3272 = vpack.c.b16 %v3230, %v3227
        %v3273 = vpack.c.b16 %v3234, %v3231
        %v3274 = vpack.c.b16 %v3235, %v3232
        %v3275 = vpack.c.b16 %v3236, %v3233
        %v3276 = vpack.c.b16 %v3240, %v3237
        %v3277 = vpack.c.b16 %v3241, %v3238
        %v3278 = vpack.c.b16 %v3242, %v3239
        %v3279 = vpack.c.b16 %v3246, %v3243
        %v3280 = vpack.c.b16 %v3247, %v3244
        %v3281 = vpack.c.b16 %v3248, %v3245
        %v3282 = vpack.c.b16 %v3252, %v3249
        %v3283 = vpack.c.b16 %v3253, %v3250
        %v3284 = vpack.c.b16 %v3254, %v3251
        %v3285 = vpack.c.b16 %v3258, %v3255
        %v3286 = vpack.c.b16 %v3259, %v3256
        %v3287 = vpack.c.b16 %v3260, %v3257
        %v3288 = vpack.c.b16 %v3261, %v3261
        %v3289 = vpack.c.b16 %v3262, %v3262
        %v3290 = vpack.c.b16 %v3263, %v3263
        %v3316 = vsel %vm2769, %v3176, 0
        %v3319 = vsel %vm2769, %v3175, 0
        %v3322 = vsel %vm2430, %v3288, 0
        %v3325 = vsel %vm2430, %v3289, 0
        %v3328 = vsel %vm2430, %v3290, 0
        %3330 = vmatprep.subr.bf16.mxu0 %v3265
        %3331 = vmatpush1.bf16.msra.mxu0 %v3264
        %3332 = vmatprep.subr.bf16.mxu0 %v3268
        %3333 = vmatpush1.bf16.msra.mxu0 %v3267
        %3334 = vmatprep.subr.bf16.mxu0 %v3271
        %3335 = vmatpush1.bf16.msra.mxu0 %v3270
        %3336 = vmatprep.subr.bf16.mxu0 %v3274
        %3337 = vmatpush1.bf16.msra.mxu0 %v3273
        %3338 = vmatprep.subr.bf16.mxu0 %v3277
        %3339 = vmatpush1.bf16.msra.mxu0 %v3276
        %3340 = vmatprep.subr.bf16.mxu0 %v3280
        %3341 = vmatpush1.bf16.msra.mxu0 %v3279
        %3342 = vmatprep.subr.bf16.mxu0 %v3283
        %3343 = vmatpush1.bf16.msra.mxu0 %v3282
        %3344 = vmatprep.subr.bf16.mxu0 %v3286
        %3345 = vmatpush1.bf16.msra.mxu0 %v3285
        %3346 = vmatprep.subr.bf16.mxu0 %v3325
        %3347 = vmatpush1.bf16.msra.mxu0 %v3322
        %3348 = vmatprep.subr.bf16.mxu0 0
        %3349 = vmatpush1.bf16.msra.mxu0 0
        %3350 = vmatprep.subr.bf16.mxu0 0
        %3351 = vmatpush1.bf16.msra.mxu0 0
        %3352 = vmatprep.subr.bf16.mxu0 0
        %3353 = vmatpush1.bf16.msra.mxu0 0
        %3354 = vmatprep.subr.bf16.mxu0 0
        %3355 = vmatpush1.bf16.msra.mxu0 0
        %3356 = vmatprep.subr.bf16.mxu0 0
        %3357 = vmatpush1.bf16.msra.mxu0 0
        %3358 = vmatprep.subr.bf16.mxu0 0
        %3359 = vmatpush1.bf16.msra.mxu0 0
        %3360 = vmatprep.subr.bf16.mxu0 0
        %3361 = vmatpush1.bf16.msra.mxu0 0
        %3362 = vmatprep.mubr.bf16.mxu0 %v3316
        %3363 = vmatmul.mubr.bf16.gmra.mrb[0].mxu0 %v3173
        %v3364 = vpop.f32.mrb[0].mxu0
        %v3365 = vadd.f32 0.0, %v3364
        %v3366 = vpop.f32.mrb[0].mxu0
        %v3367 = vadd.f32 0.0, %v3366
        %v3368 = vpop.f32.mrb[0].mxu0
        %v3369 = vadd.f32 0.0, %v3368
        %v3370 = vpop.f32.mrb[0].mxu0
        %v3371 = vadd.f32 0.0, %v3370
        %3372 = vmatprep.mubr.bf16.mxu0 %v3319
        %3373 = vmatmul.mubr.bf16.gmra.mrb[0].mxu0 %v3172
        %v3374 = vpop.f32.mrb[0].mxu0
        %v3375 = vadd.f32 0.0, %v3374
        %v3376 = vpop.f32.mrb[0].mxu0
        %v3377 = vadd.f32 0.0, %v3376
        %v3378 = vpop.f32.mrb[0].mxu0
        %v3379 = vpop.f32.mrb[0].mxu0
        %3380 = vdwg.mxu0
        %3381 = vmatprep.subr.bf16.mxu0 0
        %3382 = vmatpush1.bf16.msra.mxu0 %v3266
        %3383 = vmatprep.subr.bf16.mxu0 0
        %3384 = vmatpush1.bf16.msra.mxu0 %v3269
        %3385 = vmatprep.subr.bf16.mxu0 0
        %3386 = vmatpush1.bf16.msra.mxu0 %v3272
        %3387 = vmatprep.subr.bf16.mxu0 0
        %3388 = vmatpush1.bf16.msra.mxu0 %v3275
        %3389 = vmatprep.subr.bf16.mxu0 0
        %3390 = vmatpush1.bf16.msra.mxu0 %v3278
        %3391 = vmatprep.subr.bf16.mxu0 0
        %3392 = vmatpush1.bf16.msra.mxu0 %v3281
        %3393 = vmatprep.subr.bf16.mxu0 0
        %3394 = vmatpush1.bf16.msra.mxu0 %v3284
        %3395 = vmatprep.subr.bf16.mxu0 0
        %3396 = vmatpush1.bf16.msra.mxu0 %v3287
        %3397 = vmatprep.subr.bf16.mxu0 0
        %3398 = vmatpush1.bf16.msra.mxu0 %v3328
        %3399 = vmatprep.subr.bf16.mxu0 0
        %3400 = vmatpush1.bf16.msra.mxu0 0
        %3401 = vmatprep.subr.bf16.mxu0 0
        %3402 = vmatpush1.bf16.msra.mxu0 0
        %3403 = vmatprep.subr.bf16.mxu0 0
        %3404 = vmatpush1.bf16.msra.mxu0 0
        %3405 = vmatprep.subr.bf16.mxu0 0
        %3406 = vmatpush1.bf16.msra.mxu0 0
        %3407 = vmatprep.subr.bf16.mxu0 0
        %3408 = vmatpush1.bf16.msra.mxu0 0
        %3409 = vmatprep.subr.bf16.mxu0 0
        %3410 = vmatpush1.bf16.msra.mxu0 0
        %3411 = vmatprep.subr.bf16.mxu0 0
        %3412 = vmatpush1.bf16.msra.mxu0 0
        %3413 = vmatprep.mubr.bf16.mxu0 %v3316
        %3414 = vmatmul.mubr.bf16.gmra.mrb[0].mxu0 %v3173
        %v3415 = vpop.f32.mrb[0].mxu0
        %v3416 = vadd.f32 0.0, %v3415
        %v3417 = vpop.f32.mrb[0].mxu0
        %v3418 = vpop.f32.mrb[0].mxu0
        %v3419 = vadd.f32 0.0, %v3418
        %v3420 = vpop.f32.mrb[0].mxu0
        %3421 = vmatprep.mubr.bf16.mxu0 %v3319
        %3422 = vmatmul.mubr.bf16.gmra.mrb[0].mxu0 %v3172
        %v3423 = vpop.f32.mrb[0].mxu0
        %v3424 = vadd.f32 0.0, %v3423
        %v3425 = vpop.f32.mrb[0].mxu0
        %v3426 = vpop.f32.mrb[0].mxu0
        %v3427 = vpop.f32.mrb[0].mxu0
        %3428 = vdwg.mxu0
        %v3429 = vadd.f32 %v3068, %v3365
        %v3430 = vadd.f32 %v3070, %v3367
        %v3431 = vadd.f32 %v3119, %v3416
        %v3432 = vadd.f32 %v3072, %v3369
        %v3433 = vadd.f32 %v3074, %v3371
        %v3434 = vadd.f32 %v3122, %v3419
        %v3435 = vadd.f32 %v3078, %v3375
        %v3436 = vadd.f32 %v3080, %v3377
        %v3437 = vadd.f32 %v3127, %v3424
        %s3438 = scalar_lea.vmem [#allocation5], 612
        %v3439 = vld [vmem:[%s3438] sm:$0xff]
        %v3440 = vld [vmem:[%s3438 + $0x8] sm:$0xf]
        %v3441 = vld [vmem:[%s3438 + $0xc] sm:$0xff]
        %v3442 = vld [vmem:[%s3438 + $0x14] sm:$0xf]
        %v3443 = vld [vmem:[%s3438 + $0x18] sm:$0xff]
        %v3444 = vld [vmem:[%s3438 + $0x20] sm:$0xf]
        %v3445 = vld [vmem:[%s3438 + $0x24] sm:$0xff]
        %v3446 = vld [vmem:[%s3438 + $0x2c] sm:$0xf]
        %v3447 = vld [vmem:[%s3438 + $0x30] sm:$0xff]
        %v3448 = vld [vmem:[%s3438 + $0x38] sm:$0xf]
        %v3449 = vld [vmem:[%s3438 + $0x3c] sm:$0xff]
        %v3450 = vld [vmem:[%s3438 + $0x44] sm:$0xf]
        %v3451 = vld [vmem:[%s3438 + $0x48] sm:$0xff]
        %v3452 = vld [vmem:[%s3438 + $0x50] sm:$0xf]
        %v3453 = vld [vmem:[%s3438 + $0x54] sm:$0xff]
        %v3454 = vld [vmem:[%s3438 + $0x5c] sm:$0xf]
        %v3455 = vld [vmem:[%s3438 + $0x60] sm:$0xff]
        %v3456 = vld [vmem:[%s3438 + $0x68] sm:$0xf]
        %v3457 = vld [vmem:[%s3438 + $0x6c] sm:$0xff]
        %v3458 = vld [vmem:[%s3438 + $0x74] sm:$0xf]
        %v3459 = vld [vmem:[%s3438 + $0x78] sm:$0xff]
        %v3460 = vld [vmem:[%s3438 + $0x80] sm:$0xf]
        %v3461 = vld [vmem:[%s3438 + $0x84] sm:$0xff]
        %v3462 = vld [vmem:[%s3438 + $0x8c] sm:$0xf]
        %v3463 = vld [vmem:[%s3438 + $0x90] sm:$0xff]
        %v3464 = vld [vmem:[%s3438 + $0x98] sm:$0xf]
        %v3465 = vld [vmem:[%s3438 + $0x9c] sm:$0xff]
        %v3466 = vld [vmem:[%s3438 + $0xa4] sm:$0xf]
        %v3467 = vld [vmem:[%s3438 + $0xa8] sm:$0xff]
        %v3468 = vld [vmem:[%s3438 + $0xb0] sm:$0xf]
        %v3469 = vld [vmem:[%s3438 + $0xb4] sm:$0xff]
        %v3470 = vld [vmem:[%s3438 + $0xbc] sm:$0xf]
        %v3471 = vld [vmem:[%s3438 + $0xc0] sm:$0x33]
        %v3472 = vld [vmem:[%s3438 + $0xc8] sm:$0x3]
        %v3473 = vrot.slane %v2602, 1
        %v3474 = vrot.slane %v2604, 2
        %v3475 = vor.u32 %v3473, %v3474
        %v3476 = vrot.slane %v2625, 1
        %v3477 = vrot.slane %v2609, 2
        %v3478 = vor.u32 %v3476, %v3477
        %v3479 = vsel %vm1589, %v3475, %v3478
        %v3480 = vrot.slane %v2614, 1
        %v3481 = vrot.slane %v2616, 2
        %v3482 = vor.u32 %v3480, %v3481
        %v3483 = vrot.slane %v2628, 1
        %v3484 = vrot.slane %v2621, 2
        %v3485 = vor.u32 %v3483, %v3484
        %v3486 = vsel %vm1589, %v3482, %v3485
        %v3523 = vunpack.c.l.b16 %v3439
        %v3524 = vunpack.c.h.b16 %v3439
        %v3525 = vunpack.c.l.b16 %v3440
        %v3526 = vunpack.c.l.b16 %v3441
        %v3527 = vunpack.c.h.b16 %v3441
        %v3528 = vunpack.c.l.b16 %v3442
        %v3529 = vunpack.c.l.b16 %v3443
        %v3530 = vunpack.c.h.b16 %v3443
        %v3531 = vunpack.c.l.b16 %v3444
        %v3532 = vunpack.c.l.b16 %v3445
        %v3533 = vunpack.c.h.b16 %v3445
        %v3534 = vunpack.c.l.b16 %v3446
        %v3535 = vunpack.c.l.b16 %v3447
        %v3536 = vunpack.c.h.b16 %v3447
        %v3537 = vunpack.c.l.b16 %v3448
        %v3538 = vunpack.c.l.b16 %v3449
        %v3539 = vunpack.c.h.b16 %v3449
        %v3540 = vunpack.c.l.b16 %v3450
        %v3541 = vunpack.c.l.b16 %v3451
        %v3542 = vunpack.c.h.b16 %v3451
        %v3543 = vunpack.c.l.b16 %v3452
        %v3544 = vunpack.c.l.b16 %v3453
        %v3545 = vunpack.c.h.b16 %v3453
        %v3546 = vunpack.c.l.b16 %v3454
        %v3547 = vunpack.c.l.b16 %v3455
        %v3548 = vunpack.c.h.b16 %v3455
        %v3549 = vunpack.c.l.b16 %v3456
        %v3550 = vunpack.c.l.b16 %v3457
        %v3551 = vunpack.c.h.b16 %v3457
        %v3552 = vunpack.c.l.b16 %v3458
        %v3553 = vunpack.c.l.b16 %v3459
        %v3554 = vunpack.c.h.b16 %v3459
        %v3555 = vunpack.c.l.b16 %v3460
        %v3556 = vunpack.c.l.b16 %v3461
        %v3557 = vunpack.c.h.b16 %v3461
        %v3558 = vunpack.c.l.b16 %v3462
        %v3559 = vunpack.c.l.b16 %v3463
        %v3560 = vunpack.c.h.b16 %v3463
        %v3561 = vunpack.c.l.b16 %v3464
        %v3562 = vunpack.c.l.b16 %v3465
        %v3563 = vunpack.c.h.b16 %v3465
        %v3564 = vunpack.c.l.b16 %v3466
        %v3565 = vunpack.c.l.b16 %v3467
        %v3566 = vunpack.c.h.b16 %v3467
        %v3567 = vunpack.c.l.b16 %v3468
        %v3568 = vunpack.c.l.b16 %v3469
        %v3569 = vunpack.c.h.b16 %v3469
        %v3570 = vunpack.c.l.b16 %v3470
        %v3571 = vunpack.c.l.b16 %v3471
        %v3572 = vunpack.c.h.b16 %v3471
        %v3573 = vunpack.c.l.b16 %v3472
        %v3574 = vpack.c.b16 %v3526, %v3523
        %v3575 = vpack.c.b16 %v3527, %v3524
        %v3576 = vpack.c.b16 %v3528, %v3525
        %v3577 = vpack.c.b16 %v3532, %v3529
        %v3578 = vpack.c.b16 %v3533, %v3530
        %v3579 = vpack.c.b16 %v3534, %v3531
        %v3580 = vpack.c.b16 %v3538, %v3535
        %v3581 = vpack.c.b16 %v3539, %v3536
        %v3582 = vpack.c.b16 %v3540, %v3537
        %v3583 = vpack.c.b16 %v3544, %v3541
        %v3584 = vpack.c.b16 %v3545, %v3542
        %v3585 = vpack.c.b16 %v3546, %v3543
        %v3586 = vpack.c.b16 %v3550, %v3547
        %v3587 = vpack.c.b16 %v3551, %v3548
        %v3588 = vpack.c.b16 %v3552, %v3549
        %v3589 = vpack.c.b16 %v3556, %v3553
        %v3590 = vpack.c.b16 %v3557, %v3554
        %v3591 = vpack.c.b16 %v3558, %v3555
        %v3592 = vpack.c.b16 %v3562, %v3559
        %v3593 = vpack.c.b16 %v3563, %v3560
        %v3594 = vpack.c.b16 %v3564, %v3561
        %v3595 = vpack.c.b16 %v3568, %v3565
        %v3596 = vpack.c.b16 %v3569, %v3566
        %v3597 = vpack.c.b16 %v3570, %v3567
        %v3598 = vpack.c.b16 %v3571, %v3571
        %v3599 = vpack.c.b16 %v3572, %v3572
        %v3600 = vpack.c.b16 %v3573, %v3573
        %v3626 = vsel %vm2769, %v3486, 0
        %v3629 = vsel %vm2769, %v3485, 0
        %v3632 = vsel %vm2430, %v3598, 0
        %v3635 = vsel %vm2430, %v3599, 0
        %v3638 = vsel %vm2430, %v3600, 0
        %3640 = vmatprep.subr.bf16.mxu0 %v3575
        %3641 = vmatpush1.bf16.msra.mxu0 %v3574
        %3642 = vmatprep.subr.bf16.mxu0 %v3578
        %3643 = vmatpush1.bf16.msra.mxu0 %v3577
        %3644 = vmatprep.subr.bf16.mxu0 %v3581
        %3645 = vmatpush1.bf16.msra.mxu0 %v3580
        %3646 = vmatprep.subr.bf16.mxu0 %v3584
        %3647 = vmatpush1.bf16.msra.mxu0 %v3583
        %3648 = vmatprep.subr.bf16.mxu0 %v3587
        %3649 = vmatpush1.bf16.msra.mxu0 %v3586
        %3650 = vmatprep.subr.bf16.mxu0 %v3590
        %3651 = vmatpush1.bf16.msra.mxu0 %v3589
        %3652 = vmatprep.subr.bf16.mxu0 %v3593
        %3653 = vmatpush1.bf16.msra.mxu0 %v3592
        %3654 = vmatprep.subr.bf16.mxu0 %v3596
        %3655 = vmatpush1.bf16.msra.mxu0 %v3595
        %3656 = vmatprep.subr.bf16.mxu0 %v3635
        %3657 = vmatpush1.bf16.msra.mxu0 %v3632
        %3658 = vmatprep.subr.bf16.mxu0 0
        %3659 = vmatpush1.bf16.msra.mxu0 0
        %3660 = vmatprep.subr.bf16.mxu0 0
        %3661 = vmatpush1.bf16.msra.mxu0 0
        %3662 = vmatprep.subr.bf16.mxu0 0
        %3663 = vmatpush1.bf16.msra.mxu0 0
        %3664 = vmatprep.subr.bf16.mxu0 0
        %3665 = vmatpush1.bf16.msra.mxu0 0
        %3666 = vmatprep.subr.bf16.mxu0 0
        %3667 = vmatpush1.bf16.msra.mxu0 0
        %3668 = vmatprep.subr.bf16.mxu0 0
        %3669 = vmatpush1.bf16.msra.mxu0 0
        %3670 = vmatprep.subr.bf16.mxu0 0
        %3671 = vmatpush1.bf16.msra.mxu0 0
        %3672 = vmatprep.mubr.bf16.mxu0 %v3626
        %3673 = vmatmul.mubr.bf16.gmra.mrb[0].mxu0 %v3479
        %v3674 = vpop.f32.mrb[0].mxu0
        %v3675 = vadd.f32 0.0, %v3674
        %v3676 = vpop.f32.mrb[0].mxu0
        %v3677 = vadd.f32 0.0, %v3676
        %v3678 = vpop.f32.mrb[0].mxu0
        %v3679 = vadd.f32 0.0, %v3678
        %v3680 = vpop.f32.mrb[0].mxu0
        %v3681 = vadd.f32 0.0, %v3680
        %3682 = vmatprep.mubr.bf16.mxu0 %v3629
        %3683 = vmatmul.mubr.bf16.gmra.mrb[0].mxu0 %v3478
        %v3684 = vpop.f32.mrb[0].mxu0
        %v3685 = vadd.f32 0.0, %v3684
        %v3686 = vpop.f32.mrb[0].mxu0
        %v3687 = vadd.f32 0.0, %v3686
        %v3688 = vpop.f32.mrb[0].mxu0
        %v3689 = vpop.f32.mrb[0].mxu0
        %3690 = vdwg.mxu0
        %3691 = vmatprep.subr.bf16.mxu0 0
        %3692 = vmatpush1.bf16.msra.mxu0 %v3576
        %3693 = vmatprep.subr.bf16.mxu0 0
        %3694 = vmatpush1.bf16.msra.mxu0 %v3579
        %3695 = vmatprep.subr.bf16.mxu0 0
        %3696 = vmatpush1.bf16.msra.mxu0 %v3582
        %3697 = vmatprep.subr.bf16.mxu0 0
        %3698 = vmatpush1.bf16.msra.mxu0 %v3585
        %3699 = vmatprep.subr.bf16.mxu0 0
        %3700 = vmatpush1.bf16.msra.mxu0 %v3588
        %3701 = vmatprep.subr.bf16.mxu0 0
        %3702 = vmatpush1.bf16.msra.mxu0 %v3591
        %3703 = vmatprep.subr.bf16.mxu0 0
        %3704 = vmatpush1.bf16.msra.mxu0 %v3594
        %3705 = vmatprep.subr.bf16.mxu0 0
        %3706 = vmatpush1.bf16.msra.mxu0 %v3597
        %3707 = vmatprep.subr.bf16.mxu0 0
        %3708 = vmatpush1.bf16.msra.mxu0 %v3638
        %3709 = vmatprep.subr.bf16.mxu0 0
        %3710 = vmatpush1.bf16.msra.mxu0 0
        %3711 = vmatprep.subr.bf16.mxu0 0
        %3712 = vmatpush1.bf16.msra.mxu0 0
        %3713 = vmatprep.subr.bf16.mxu0 0
        %3714 = vmatpush1.bf16.msra.mxu0 0
        %3715 = vmatprep.subr.bf16.mxu0 0
        %3716 = vmatpush1.bf16.msra.mxu0 0
        %3717 = vmatprep.subr.bf16.mxu0 0
        %3718 = vmatpush1.bf16.msra.mxu0 0
        %3719 = vmatprep.subr.bf16.mxu0 0
        %3720 = vmatpush1.bf16.msra.mxu0 0
        %3721 = vmatprep.subr.bf16.mxu0 0
        %3722 = vmatpush1.bf16.msra.mxu0 0
        %3723 = vmatprep.mubr.bf16.mxu0 %v3626
        %3724 = vmatmul.mubr.bf16.gmra.mrb[0].mxu0 %v3479
        %v3725 = vpop.f32.mrb[0].mxu0
        %v3726 = vadd.f32 0.0, %v3725
        %v3727 = vpop.f32.mrb[0].mxu0
        %v3728 = vpop.f32.mrb[0].mxu0
        %v3729 = vadd.f32 0.0, %v3728
        %v3730 = vpop.f32.mrb[0].mxu0
        %3731 = vmatprep.mubr.bf16.mxu0 %v3629
        %3732 = vmatmul.mubr.bf16.gmra.mrb[0].mxu0 %v3478
        %v3733 = vpop.f32.mrb[0].mxu0
        %v3734 = vadd.f32 0.0, %v3733
        %v3735 = vpop.f32.mrb[0].mxu0
        %v3736 = vpop.f32.mrb[0].mxu0
        %v3737 = vpop.f32.mrb[0].mxu0
        %3738 = vdwg.mxu0
        %v3739 = vadd.f32 %v3429, %v3675
        %v3740 = vadd.f32 %v3430, %v3677
        %v3741 = vadd.f32 %v3431, %v3726
        %v3742 = vadd.f32 %v3432, %v3679
        %v3743 = vadd.f32 %v3433, %v3681
        %v3744 = vadd.f32 %v3434, %v3729
        %v3745 = vadd.f32 %v3435, %v3685
        %v3746 = vadd.f32 %v3436, %v3687
        %v3747 = vadd.f32 %v3437, %v3734
        %s3748 = scalar_lea.vmem [#allocation5], 816
        %v3749 = vld [vmem:[%s3748] sm:$0xff]
        %v3750 = vld [vmem:[%s3748 + $0x8] sm:$0xf]
        %v3751 = vld [vmem:[%s3748 + $0xc] sm:$0xff]
        %v3752 = vld [vmem:[%s3748 + $0x14] sm:$0xf]
        %v3753 = vld [vmem:[%s3748 + $0x18] sm:$0xff]
        %v3754 = vld [vmem:[%s3748 + $0x20] sm:$0xf]
        %v3755 = vld [vmem:[%s3748 + $0x24] sm:$0xff]
        %v3756 = vld [vmem:[%s3748 + $0x2c] sm:$0xf]
        %v3757 = vld [vmem:[%s3748 + $0x30] sm:$0xff]
        %v3758 = vld [vmem:[%s3748 + $0x38] sm:$0xf]
        %v3759 = vld [vmem:[%s3748 + $0x3c] sm:$0xff]
        %v3760 = vld [vmem:[%s3748 + $0x44] sm:$0xf]
        %v3761 = vld [vmem:[%s3748 + $0x48] sm:$0xff]
        %v3762 = vld [vmem:[%s3748 + $0x50] sm:$0xf]
        %v3763 = vld [vmem:[%s3748 + $0x54] sm:$0xff]
        %v3764 = vld [vmem:[%s3748 + $0x5c] sm:$0xf]
        %v3765 = vld [vmem:[%s3748 + $0x60] sm:$0xff]
        %v3766 = vld [vmem:[%s3748 + $0x68] sm:$0xf]
        %v3767 = vld [vmem:[%s3748 + $0x6c] sm:$0xff]
        %v3768 = vld [vmem:[%s3748 + $0x74] sm:$0xf]
        %v3769 = vld [vmem:[%s3748 + $0x78] sm:$0xff]
        %v3770 = vld [vmem:[%s3748 + $0x80] sm:$0xf]
        %v3771 = vld [vmem:[%s3748 + $0x84] sm:$0xff]
        %v3772 = vld [vmem:[%s3748 + $0x8c] sm:$0xf]
        %v3773 = vld [vmem:[%s3748 + $0x90] sm:$0xff]
        %v3774 = vld [vmem:[%s3748 + $0x98] sm:$0xf]
        %v3775 = vld [vmem:[%s3748 + $0x9c] sm:$0xff]
        %v3776 = vld [vmem:[%s3748 + $0xa4] sm:$0xf]
        %v3777 = vld [vmem:[%s3748 + $0xa8] sm:$0xff]
        %v3778 = vld [vmem:[%s3748 + $0xb0] sm:$0xf]
        %v3779 = vld [vmem:[%s3748 + $0xb4] sm:$0xff]
        %v3780 = vld [vmem:[%s3748 + $0xbc] sm:$0xf]
        %v3781 = vld [vmem:[%s3748 + $0xc0] sm:$0x33]
        %v3782 = vld [vmem:[%s3748 + $0xc8] sm:$0x3]
        %v3783 = vrot.slane %v2528, 2
        %v3784 = vrot.slane %v2530, 2
        %v3785 = vsel %vm1943, %v3783, %v3784
        %v3786 = vrot.slane %v2529, 2
        %v3787 = vrot.slane %v2531, 2
        %v3788 = vsel %vm1943, %v3786, %v3787
        %v3825 = vunpack.c.l.b16 %v3749
        %v3826 = vunpack.c.h.b16 %v3749
        %v3827 = vunpack.c.l.b16 %v3750
        %v3828 = vunpack.c.l.b16 %v3751
        %v3829 = vunpack.c.h.b16 %v3751
        %v3830 = vunpack.c.l.b16 %v3752
        %v3831 = vunpack.c.l.b16 %v3753
        %v3832 = vunpack.c.h.b16 %v3753
        %v3833 = vunpack.c.l.b16 %v3754
        %v3834 = vunpack.c.l.b16 %v3755
        %v3835 = vunpack.c.h.b16 %v3755
        %v3836 = vunpack.c.l.b16 %v3756
        %v3837 = vunpack.c.l.b16 %v3757
        %v3838 = vunpack.c.h.b16 %v3757
        %v3839 = vunpack.c.l.b16 %v3758
        %v3840 = vunpack.c.l.b16 %v3759
        %v3841 = vunpack.c.h.b16 %v3759
        %v3842 = vunpack.c.l.b16 %v3760
        %v3843 = vunpack.c.l.b16 %v3761
        %v3844 = vunpack.c.h.b16 %v3761
        %v3845 = vunpack.c.l.b16 %v3762
        %v3846 = vunpack.c.l.b16 %v3763
        %v3847 = vunpack.c.h.b16 %v3763
        %v3848 = vunpack.c.l.b16 %v3764
        %v3849 = vunpack.c.l.b16 %v3765
        %v3850 = vunpack.c.h.b16 %v3765
        %v3851 = vunpack.c.l.b16 %v3766
        %v3852 = vunpack.c.l.b16 %v3767
        %v3853 = vunpack.c.h.b16 %v3767
        %v3854 = vunpack.c.l.b16 %v3768
        %v3855 = vunpack.c.l.b16 %v3769
        %v3856 = vunpack.c.h.b16 %v3769
        %v3857 = vunpack.c.l.b16 %v3770
        %v3858 = vunpack.c.l.b16 %v3771
        %v3859 = vunpack.c.h.b16 %v3771
        %v3860 = vunpack.c.l.b16 %v3772
        %v3861 = vunpack.c.l.b16 %v3773
        %v3862 = vunpack.c.h.b16 %v3773
        %v3863 = vunpack.c.l.b16 %v3774
        %v3864 = vunpack.c.l.b16 %v3775
        %v3865 = vunpack.c.h.b16 %v3775
        %v3866 = vunpack.c.l.b16 %v3776
        %v3867 = vunpack.c.l.b16 %v3777
        %v3868 = vunpack.c.h.b16 %v3777
        %v3869 = vunpack.c.l.b16 %v3778
        %v3870 = vunpack.c.l.b16 %v3779
        %v3871 = vunpack.c.h.b16 %v3779
        %v3872 = vunpack.c.l.b16 %v3780
        %v3873 = vunpack.c.l.b16 %v3781
        %v3874 = vunpack.c.h.b16 %v3781
        %v3875 = vunpack.c.l.b16 %v3782
        %v3876 = vpack.c.b16 %v3828, %v3825
        %v3877 = vpack.c.b16 %v3829, %v3826
        %v3878 = vpack.c.b16 %v3830, %v3827
        %v3879 = vpack.c.b16 %v3834, %v3831
        %v3880 = vpack.c.b16 %v3835, %v3832
        %v3881 = vpack.c.b16 %v3836, %v3833
        %v3882 = vpack.c.b16 %v3840, %v3837
        %v3883 = vpack.c.b16 %v3841, %v3838
        %v3884 = vpack.c.b16 %v3842, %v3839
        %v3885 = vpack.c.b16 %v3846, %v3843
        %v3886 = vpack.c.b16 %v3847, %v3844
        %v3887 = vpack.c.b16 %v3848, %v3845
        %v3888 = vpack.c.b16 %v3852, %v3849
        %v3889 = vpack.c.b16 %v3853, %v3850
        %v3890 = vpack.c.b16 %v3854, %v3851
        %v3891 = vpack.c.b16 %v3858, %v3855
        %v3892 = vpack.c.b16 %v3859, %v3856
        %v3893 = vpack.c.b16 %v3860, %v3857
        %v3894 = vpack.c.b16 %v3864, %v3861
        %v3895 = vpack.c.b16 %v3865, %v3862
        %v3896 = vpack.c.b16 %v3866, %v3863
        %v3897 = vpack.c.b16 %v3870, %v3867
        %v3898 = vpack.c.b16 %v3871, %v3868
        %v3899 = vpack.c.b16 %v3872, %v3869
        %v3900 = vpack.c.b16 %v3873, %v3873
        %v3901 = vpack.c.b16 %v3874, %v3874
        %v3902 = vpack.c.b16 %v3875, %v3875
        %v3928 = vsel %vm2769, %v3788, 0
        %v3931 = vsel %vm2769, %v3787, 0
        %v3934 = vsel %vm2430, %v3900, 0
        %v3937 = vsel %vm2430, %v3901, 0
        %v3940 = vsel %vm2430, %v3902, 0
        %3942 = vmatprep.subr.bf16.mxu0 %v3877
        %3943 = vmatpush1.bf16.msra.mxu0 %v3876
        %3944 = vmatprep.subr.bf16.mxu0 %v3880
        %3945 = vmatpush1.bf16.msra.mxu0 %v3879
        %3946 = vmatprep.subr.bf16.mxu0 %v3883
        %3947 = vmatpush1.bf16.msra.mxu0 %v3882
        %3948 = vmatprep.subr.bf16.mxu0 %v3886
        %3949 = vmatpush1.bf16.msra.mxu0 %v3885
        %3950 = vmatprep.subr.bf16.mxu0 %v3889
        %3951 = vmatpush1.bf16.msra.mxu0 %v3888
        %3952 = vmatprep.subr.bf16.mxu0 %v3892
        %3953 = vmatpush1.bf16.msra.mxu0 %v3891
        %3954 = vmatprep.subr.bf16.mxu0 %v3895
        %3955 = vmatpush1.bf16.msra.mxu0 %v3894
        %3956 = vmatprep.subr.bf16.mxu0 %v3898
        %3957 = vmatpush1.bf16.msra.mxu0 %v3897
        %3958 = vmatprep.subr.bf16.mxu0 %v3937
        %3959 = vmatpush1.bf16.msra.mxu0 %v3934
        %3960 = vmatprep.subr.bf16.mxu0 0
        %3961 = vmatpush1.bf16.msra.mxu0 0
        %3962 = vmatprep.subr.bf16.mxu0 0
        %3963 = vmatpush1.bf16.msra.mxu0 0
        %3964 = vmatprep.subr.bf16.mxu0 0
        %3965 = vmatpush1.bf16.msra.mxu0 0
        %3966 = vmatprep.subr.bf16.mxu0 0
        %3967 = vmatpush1.bf16.msra.mxu0 0
        %3968 = vmatprep.subr.bf16.mxu0 0
        %3969 = vmatpush1.bf16.msra.mxu0 0
        %3970 = vmatprep.subr.bf16.mxu0 0
        %3971 = vmatpush1.bf16.msra.mxu0 0
        %3972 = vmatprep.subr.bf16.mxu0 0
        %3973 = vmatpush1.bf16.msra.mxu0 0
        %3974 = vmatprep.mubr.bf16.mxu0 %v3928
        %3975 = vmatmul.mubr.bf16.gmra.mrb[0].mxu0 %v3785
        %v3976 = vpop.f32.mrb[0].mxu0
        %v3977 = vadd.f32 0.0, %v3976
        %v3978 = vpop.f32.mrb[0].mxu0
        %v3979 = vadd.f32 0.0, %v3978
        %v3980 = vpop.f32.mrb[0].mxu0
        %v3981 = vadd.f32 0.0, %v3980
        %v3982 = vpop.f32.mrb[0].mxu0
        %v3983 = vadd.f32 0.0, %v3982
        %3984 = vmatprep.mubr.bf16.mxu0 %v3931
        %3985 = vmatmul.mubr.bf16.gmra.mrb[0].mxu0 %v3784
        %v3986 = vpop.f32.mrb[0].mxu0
        %v3987 = vadd.f32 0.0, %v3986
        %v3988 = vpop.f32.mrb[0].mxu0
        %v3989 = vadd.f32 0.0, %v3988
        %v3990 = vpop.f32.mrb[0].mxu0
        %v3991 = vpop.f32.mrb[0].mxu0
        %3992 = vdwg.mxu0
        %3993 = vmatprep.subr.bf16.mxu0 0
        %3994 = vmatpush1.bf16.msra.mxu0 %v3878
        %3995 = vmatprep.subr.bf16.mxu0 0
        %3996 = vmatpush1.bf16.msra.mxu0 %v3881
        %3997 = vmatprep.subr.bf16.mxu0 0
        %3998 = vmatpush1.bf16.msra.mxu0 %v3884
        %3999 = vmatprep.subr.bf16.mxu0 0
        %4000 = vmatpush1.bf16.msra.mxu0 %v3887
        %4001 = vmatprep.subr.bf16.mxu0 0
        %4002 = vmatpush1.bf16.msra.mxu0 %v3890
        %4003 = vmatprep.subr.bf16.mxu0 0
        %4004 = vmatpush1.bf16.msra.mxu0 %v3893
        %4005 = vmatprep.subr.bf16.mxu0 0
        %4006 = vmatpush1.bf16.msra.mxu0 %v3896
        %4007 = vmatprep.subr.bf16.mxu0 0
        %4008 = vmatpush1.bf16.msra.mxu0 %v3899
        %4009 = vmatprep.subr.bf16.mxu0 0
        %4010 = vmatpush1.bf16.msra.mxu0 %v3940
        %4011 = vmatprep.subr.bf16.mxu0 0
        %4012 = vmatpush1.bf16.msra.mxu0 0
        %4013 = vmatprep.subr.bf16.mxu0 0
        %4014 = vmatpush1.bf16.msra.mxu0 0
        %4015 = vmatprep.subr.bf16.mxu0 0
        %4016 = vmatpush1.bf16.msra.mxu0 0
        %4017 = vmatprep.subr.bf16.mxu0 0
        %4018 = vmatpush1.bf16.msra.mxu0 0
        %4019 = vmatprep.subr.bf16.mxu0 0
        %4020 = vmatpush1.bf16.msra.mxu0 0
        %4021 = vmatprep.subr.bf16.mxu0 0
        %4022 = vmatpush1.bf16.msra.mxu0 0
        %4023 = vmatprep.subr.bf16.mxu0 0
        %4024 = vmatpush1.bf16.msra.mxu0 0
        %4025 = vmatprep.mubr.bf16.mxu0 %v3928
        %4026 = vmatmul.mubr.bf16.gmra.mrb[0].mxu0 %v3785
        %v4027 = vpop.f32.mrb[0].mxu0
        %v4028 = vadd.f32 0.0, %v4027
        %v4029 = vpop.f32.mrb[0].mxu0
        %v4030 = vpop.f32.mrb[0].mxu0
        %v4031 = vadd.f32 0.0, %v4030
        %v4032 = vpop.f32.mrb[0].mxu0
        %4033 = vmatprep.mubr.bf16.mxu0 %v3931
        %4034 = vmatmul.mubr.bf16.gmra.mrb[0].mxu0 %v3784
        %v4035 = vpop.f32.mrb[0].mxu0
        %v4036 = vadd.f32 0.0, %v4035
        %v4037 = vpop.f32.mrb[0].mxu0
        %v4038 = vpop.f32.mrb[0].mxu0
        %v4039 = vpop.f32.mrb[0].mxu0
        %4040 = vdwg.mxu0
        %v4041 = vadd.f32 %v3739, %v3977
        %v4042 = vadd.f32 %v3740, %v3979
        %v4043 = vadd.f32 %v3741, %v4028
        %v4044 = vadd.f32 %v3742, %v3981
        %v4045 = vadd.f32 %v3743, %v3983
        %v4046 = vadd.f32 %v3744, %v4031
        %v4047 = vadd.f32 %v3745, %v3987
        %v4048 = vadd.f32 %v3746, %v3989
        %v4049 = vadd.f32 %v3747, %v4036
        %v4050 = vld [vmem:[#allocation7] sm:$0xf]
        %v4051 = vld [vmem:[#allocation7 + $0x4] sm:$0xf]
        %v4052 = vld [vmem:[#allocation7 + $0x8] sm:$0x1]
        %v4053 = vpack.c.bf16 %v4044, %v4041
        %v4054 = vpack.c.bf16 %v4045, %v4042
        %v4055 = vpack.c.bf16 %v4046, %v4043
        %v4056 = vpack.c.bf16 %v4047, %v4047
        %v4057 = vpack.c.bf16 %v4048, %v4048
        %v4058 = vpack.c.bf16 %v4049, %v4049
        %v4062 = vunpack.c.l.b16 %v4050
        %v4063 = vunpack.c.l.b16 %v4051
        %v4064 = vunpack.c.l.b16 %v4052
        %v4065 = vpack.c.b16 %v4063, %v4062
        %v4066 = vpack.c.b16 %v4064, %v4064
        %vm4067 = vcmask 146432
        %v4069 = vsel %vm4067, %v4065, 0
        %v4072 = vsel %vm4067, %v4066, 0
        %vm4074 = vcmask 1040384
        %v4076 = vsel %vm4074, %v4056, 0
        %v4079 = vsel %vm4074, %v4057, 0
        %v4082 = vsel %vm4074, %v4058, 0
        %4084 = vmatprep.subr.bf16.mxu0 %v4054
        %4085 = vmatpush1.bf16.msra.mxu0 %v4053
        %4086 = vmatprep.subr.bf16.mxu0 %v4079
        %4087 = vmatpush1.bf16.msra.mxu0 %v4076
        %4088 = vmatprep.subr.bf16.mxu0 0
        %4089 = vmatpush1.bf16.msra.mxu0 0
        %4090 = vmatprep.subr.bf16.mxu0 0
        %4091 = vmatpush1.bf16.msra.mxu0 0
        %4092 = vmatprep.subr.bf16.mxu0 0
        %4093 = vmatpush1.bf16.msra.mxu0 0
        %4094 = vmatprep.subr.bf16.mxu0 0
        %4095 = vmatpush1.bf16.msra.mxu0 0
        %4096 = vmatprep.subr.bf16.mxu0 0
        %4097 = vmatpush1.bf16.msra.mxu0 0
        %4098 = vmatprep.subr.bf16.mxu0 0
        %4099 = vmatpush1.bf16.msra.mxu0 0
        %4100 = vmatprep.subr.bf16.mxu0 0
        %4101 = vmatpush1.bf16.msra.mxu0 0
        %4102 = vmatprep.subr.bf16.mxu0 0
        %4103 = vmatpush1.bf16.msra.mxu0 0
        %4104 = vmatprep.subr.bf16.mxu0 0
        %4105 = vmatpush1.bf16.msra.mxu0 0
        %4106 = vmatprep.subr.bf16.mxu0 0
        %4107 = vmatpush1.bf16.msra.mxu0 0
        %4108 = vmatprep.subr.bf16.mxu0 0
        %4109 = vmatpush1.bf16.msra.mxu0 0
        %4110 = vmatprep.subr.bf16.mxu0 0
        %4111 = vmatpush1.bf16.msra.mxu0 0
        %4112 = vmatprep.subr.bf16.mxu0 0
        %4113 = vmatpush1.bf16.msra.mxu0 0
        %4114 = vmatprep.subr.bf16.mxu0 0
        %4115 = vmatpush1.bf16.msra.mxu0 0
        %4116 = vmatprep.mubr.bf16.mxu0 0
        %4117 = vmatmul.mubr.bf16.gmra.mrb[0].mxu0 %v4069
        %v4118 = vpop.f32.mrb[0].mxu0
        %v4119 = vadd.f32 0.0, %v4118
        %v4120 = vpop.f32.mrb[0].mxu0
        %v4121 = vadd.f32 0.0, %v4120
        %v4122 = vpop.f32.mrb[0].mxu0
        %v4123 = vadd.f32 0.0, %v4122
        %v4124 = vpop.f32.mrb[0].mxu0
        %v4125 = vadd.f32 0.0, %v4124
        %4126 = vmatprep.mubr.bf16.mxu0 0
        %4127 = vmatmul.mubr.bf16.gmra.mrb[0].mxu0 %v4072
        %v4128 = vpop.f32.mrb[0].mxu0
        %v4129 = vadd.f32 0.0, %v4128
        %v4130 = vpop.f32.mrb[0].mxu0
        %v4131 = vadd.f32 0.0, %v4130
        %v4132 = vpop.f32.mrb[0].mxu0
        %v4133 = vpop.f32.mrb[0].mxu0
        %4134 = vdwg.mxu0
        %4135 = vmatprep.subr.bf16.mxu0 0
        %4136 = vmatpush1.bf16.msra.mxu0 %v4055
        %4137 = vmatprep.subr.bf16.mxu0 0
        %4138 = vmatpush1.bf16.msra.mxu0 %v4082
        %4139 = vmatprep.subr.bf16.mxu0 0
        %4140 = vmatpush1.bf16.msra.mxu0 0
        %4141 = vmatprep.subr.bf16.mxu0 0
        %4142 = vmatpush1.bf16.msra.mxu0 0
        %4143 = vmatprep.subr.bf16.mxu0 0
        %4144 = vmatpush1.bf16.msra.mxu0 0
        %4145 = vmatprep.subr.bf16.mxu0 0
        %4146 = vmatpush1.bf16.msra.mxu0 0
        %4147 = vmatprep.subr.bf16.mxu0 0
        %4148 = vmatpush1.bf16.msra.mxu0 0
        %4149 = vmatprep.subr.bf16.mxu0 0
        %4150 = vmatpush1.bf16.msra.mxu0 0
        %4151 = vmatprep.subr.bf16.mxu0 0
        %4152 = vmatpush1.bf16.msra.mxu0 0
        %4153 = vmatprep.subr.bf16.mxu0 0
        %4154 = vmatpush1.bf16.msra.mxu0 0
        %4155 = vmatprep.subr.bf16.mxu0 0
        %4156 = vmatpush1.bf16.msra.mxu0 0
        %4157 = vmatprep.subr.bf16.mxu0 0
        %4158 = vmatpush1.bf16.msra.mxu0 0
        %4159 = vmatprep.subr.bf16.mxu0 0
        %4160 = vmatpush1.bf16.msra.mxu0 0
        %4161 = vmatprep.subr.bf16.mxu0 0
        %4162 = vmatpush1.bf16.msra.mxu0 0
        %4163 = vmatprep.subr.bf16.mxu0 0
        %4164 = vmatpush1.bf16.msra.mxu0 0
        %4165 = vmatprep.subr.bf16.mxu0 0
        %4166 = vmatpush1.bf16.msra.mxu0 0
        %4167 = vmatprep.mubr.bf16.mxu0 0
        %4168 = vmatmul.mubr.bf16.gmra.mrb[0].mxu0 %v4069
        %v4169 = vpop.f32.mrb[0].mxu0
        %v4170 = vadd.f32 0.0, %v4169
        %v4171 = vpop.f32.mrb[0].mxu0
        %v4172 = vpop.f32.mrb[0].mxu0
        %v4173 = vadd.f32 0.0, %v4172
        %v4174 = vpop.f32.mrb[0].mxu0
        %4175 = vmatprep.mubr.bf16.mxu0 0
        %4176 = vmatmul.mubr.bf16.gmra.mrb[0].mxu0 %v4072
        %v4177 = vpop.f32.mrb[0].mxu0
        %v4178 = vadd.f32 0.0, %v4177
        %v4179 = vpop.f32.mrb[0].mxu0
        %v4180 = vpop.f32.mrb[0].mxu0
        %v4181 = vpop.f32.mrb[0].mxu0
        %4182 = vdwg.mxu0
        %vm4189 = vcmask 1046528
        %v4190 = vrot.slane %v4123, 1
        %v4191 = vrot.slane %v4129, 1
        %v4192 = vsel %vm4189, %v4190, %v4191
        %v4193 = vrot.slane %v4125, 1
        %v4194 = vrot.slane %v4131, 1
        %v4195 = vsel %vm4189, %v4193, %v4194
        %v4196 = vrot.slane %v4173, 1
        %v4197 = vrot.slane %v4178, 1
        %v4198 = vsel %vm4189, %v4196, %v4197
        %v4205 = vmax.f32 %v4119, %v4192
        %v4206 = vmax.f32 %v4121, %v4195
        %v4207 = vmax.f32 %v4170, %v4198
        %v4208 = vmax.f32 %v4123, %v4191
        %v4209 = vmax.f32 %v4125, %v4194
        %v4210 = vmax.f32 %v4173, %v4197
        %4215 = vrot.lane.b32.xlu0 %v4206, 112
        %v4216 = vpop.permute.xlu0 %4215
        %4217 = vrot.lane.b32.xlu0 %v4207, 112
        %v4218 = vpop.permute.xlu0 %4217
        %4219 = vrot.lane.b32.xlu0 %v4209, 112
        %v4220 = vpop.permute.xlu0 %4219
        %4221 = vrot.lane.b32.xlu0 %v4210, 112
        %v4222 = vpop.permute.xlu0 %4221
        %vm4223 = vcmask 916480
        %v4224 = vsel %vm4223, %v4216, %v4218
        %v4225 = vsel %vm4223, %v4220, %v4222
        %v4230 = vmax.f32 %v4205, %v4224
        %v4231 = vmax.f32 %v4206, %v4218
        %v4232 = vmax.f32 %v4208, %v4225
        %v4233 = vmax.f32 %v4209, %v4222
        %v4234 = vld [vmem:[%s5] sm:$0x3]
        %v4236 = vlaneseq
        %v4237 = vshrl.u32 %v4236, 7
        %v4238 = vsub.s32 0, %v4237
        %v4239 = vrot.slane %v4234, %v4238
        %v4240 = vlaneseq
        %v4241 = vshrl.u32 %v4240, 7
        %v4242 = vsub.s32 1, %v4241
        %v4243 = vrot.slane %v4234, %v4242
        %v4246 = vadd.f32 %v4230, %v4239
        %v4247 = vadd.f32 %v4231, %v4243
        %v4248 = vadd.f32 %v4232, %v4239
        %v4249 = vadd.f32 %v4233, %v4243
        %v4250 = vmax.f32 %v4246, 0.0
        %v4251 = vmax.f32 %v4247, 0.0
        %v4252 = vmax.f32 %v4248, 0.0
        %v4253 = vmax.f32 %v4249, 0.0
        %v4254 = vpack.c.bf16 %v4252, %v4250
        %v4255 = vpack.c.bf16 %v4253, %v4251
        %v4256 = vld [vmem:[#allocation8] sm:$0xf]
        %v4257 = vld [vmem:[#allocation8 + $0x4] sm:$0xf]
        %v4258 = vld [vmem:[#allocation8 + $0x8] sm:$0xf]
        %v4259 = vld [vmem:[#allocation8 + $0xc] sm:$0xf]
        %v4260 = vld [vmem:[#allocation8 + $0x10] sm:$0xf]
        %v4261 = vld [vmem:[#allocation8 + $0x14] sm:$0xf]
        %v4262 = vld [vmem:[#allocation8 + $0x18] sm:$0xf]
        %v4263 = vld [vmem:[#allocation8 + $0x1c] sm:$0xf]
        %v4264 = vld [vmem:[#allocation8 + $0x20] sm:$0xf]
        %v4265 = vld [vmem:[#allocation8 + $0x24] sm:$0xf]
        %v4266 = vld [vmem:[#allocation8 + $0x28] sm:$0xf]
        %v4267 = vld [vmem:[#allocation8 + $0x2c] sm:$0xf]
        %v4268 = vld [vmem:[#allocation8 + $0x30] sm:$0xf]
        %v4269 = vld [vmem:[#allocation8 + $0x34] sm:$0xf]
        %v4270 = vld [vmem:[#allocation8 + $0x38] sm:$0xf]
        %v4271 = vld [vmem:[#allocation8 + $0x3c] sm:$0xf]
        %v4272 = vld [vmem:[#allocation8 + $0x40] sm:$0xf]
        %v4273 = vld [vmem:[#allocation8 + $0x44] sm:$0xf]
        %s4274 = scalar_lea.vmem [#allocation8], 72
        %v4275 = vld [vmem:[%s4274] sm:$0xf]
        %v4276 = vld [vmem:[%s4274 + $0x4] sm:$0xf]
        %v4277 = vld [vmem:[%s4274 + $0x8] sm:$0xf]
        %v4278 = vld [vmem:[%s4274 + $0xc] sm:$0xf]
        %v4279 = vld [vmem:[%s4274 + $0x10] sm:$0xf]
        %v4280 = vld [vmem:[%s4274 + $0x14] sm:$0xf]
        %v4281 = vld [vmem:[%s4274 + $0x18] sm:$0xf]
        %v4282 = vld [vmem:[%s4274 + $0x1c] sm:$0xf]
        %v4283 = vld [vmem:[%s4274 + $0x20] sm:$0xf]
        %v4284 = vld [vmem:[%s4274 + $0x24] sm:$0xf]
        %v4285 = vld [vmem:[%s4274 + $0x28] sm:$0xf]
        %v4286 = vld [vmem:[%s4274 + $0x2c] sm:$0xf]
        %v4287 = vld [vmem:[%s4274 + $0x30] sm:$0xf]
        %v4288 = vld [vmem:[%s4274 + $0x34] sm:$0xf]
        %v4289 = vld [vmem:[%s4274 + $0x38] sm:$0xf]
        %v4290 = vld [vmem:[%s4274 + $0x3c] sm:$0xf]
        %v4291 = vld [vmem:[%s4274 + $0x40] sm:$0xf]
        %v4292 = vld [vmem:[%s4274 + $0x44] sm:$0xf]
        %v4294 = vshrl.u32 %v4254, 16
        %v4297 = vshrl.u32 %v4255, 16
        %v4318 = vunpack.c.l.b16 %v4275
        %v4319 = vunpack.c.l.b16 %v4276
        %v4320 = vunpack.c.l.b16 %v4277
        %v4321 = vunpack.c.l.b16 %v4278
        %v4322 = vunpack.c.l.b16 %v4279
        %v4323 = vunpack.c.l.b16 %v4280
        %v4324 = vunpack.c.l.b16 %v4281
        %v4325 = vunpack.c.l.b16 %v4282
        %v4326 = vunpack.c.l.b16 %v4283
        %v4327 = vunpack.c.l.b16 %v4284
        %v4328 = vunpack.c.l.b16 %v4285
        %v4329 = vunpack.c.l.b16 %v4286
        %v4330 = vunpack.c.l.b16 %v4287
        %v4331 = vunpack.c.l.b16 %v4288
        %v4332 = vunpack.c.l.b16 %v4289
        %v4333 = vunpack.c.l.b16 %v4290
        %v4334 = vunpack.c.l.b16 %v4291
        %v4335 = vunpack.c.l.b16 %v4292
        %v4336 = vpack.c.b16 %v4319, %v4318
        %v4337 = vpack.c.b16 %v4321, %v4320
        %v4338 = vpack.c.b16 %v4323, %v4322
        %v4339 = vpack.c.b16 %v4325, %v4324
        %v4340 = vpack.c.b16 %v4327, %v4326
        %v4341 = vpack.c.b16 %v4329, %v4328
        %v4342 = vpack.c.b16 %v4331, %v4330
        %v4343 = vpack.c.b16 %v4333, %v4332
        %v4344 = vpack.c.b16 %v4335, %v4334
        %v4355 = vsel %vm807, %v4297, 0
        %4357 = vmatprep.subr.bf16.mxu0 0
        %4358 = vmatpush1.bf16.msra.mxu0 %v4336
        %4359 = vmatprep.subr.bf16.mxu0 0
        %4360 = vmatpush1.bf16.msra.mxu0 %v4337
        %4361 = vmatprep.subr.bf16.mxu0 0
        %4362 = vmatpush1.bf16.msra.mxu0 %v4338
        %4363 = vmatprep.subr.bf16.mxu0 0
        %4364 = vmatpush1.bf16.msra.mxu0 %v4339
        %4365 = vmatprep.subr.bf16.mxu0 0
        %4366 = vmatpush1.bf16.msra.mxu0 %v4340
        %4367 = vmatprep.subr.bf16.mxu0 0
        %4368 = vmatpush1.bf16.msra.mxu0 %v4341
        %4369 = vmatprep.subr.bf16.mxu0 0
        %4370 = vmatpush1.bf16.msra.mxu0 %v4342
        %4371 = vmatprep.subr.bf16.mxu0 0
        %4372 = vmatpush1.bf16.msra.mxu0 %v4343
        %4373 = vmatprep.subr.bf16.mxu0 0
        %4374 = vmatpush1.bf16.msra.mxu0 %v4344
        %4375 = vmatprep.subr.bf16.mxu0 0
        %4376 = vmatpush1.bf16.msra.mxu0 0
        %4377 = vmatprep.subr.bf16.mxu0 0
        %4378 = vmatpush1.bf16.msra.mxu0 0
        %4379 = vmatprep.subr.bf16.mxu0 0
        %4380 = vmatpush1.bf16.msra.mxu0 0
        %4381 = vmatprep.subr.bf16.mxu0 0
        %4382 = vmatpush1.bf16.msra.mxu0 0
        %4383 = vmatprep.subr.bf16.mxu0 0
        %4384 = vmatpush1.bf16.msra.mxu0 0
        %4385 = vmatprep.subr.bf16.mxu0 0
        %4386 = vmatpush1.bf16.msra.mxu0 0
        %4387 = vmatprep.subr.bf16.mxu0 0
        %4388 = vmatpush1.bf16.msra.mxu0 0
        %4389 = vmatprep.mubr.bf16.mxu0 %v4355
        %4390 = vmatmul.mubr.bf16.gmra.mrb[0].mxu0 %v4294
        %v4391 = vpop.f32.mrb[0].mxu0
        %v4392 = vadd.f32 0.0, %v4391
        %v4393 = vpop.f32.mrb[0].mxu0
        %v4394 = vpop.f32.mrb[0].mxu0
        %v4395 = vpop.f32.mrb[0].mxu0
        %4396 = vdwg.mxu0
        %v4415 = vunpack.c.l.b16 %v4256
        %v4416 = vunpack.c.l.b16 %v4257
        %v4417 = vunpack.c.l.b16 %v4258
        %v4418 = vunpack.c.l.b16 %v4259
        %v4419 = vunpack.c.l.b16 %v4260
        %v4420 = vunpack.c.l.b16 %v4261
        %v4421 = vunpack.c.l.b16 %v4262
        %v4422 = vunpack.c.l.b16 %v4263
        %v4423 = vunpack.c.l.b16 %v4264
        %v4424 = vunpack.c.l.b16 %v4265
        %v4425 = vunpack.c.l.b16 %v4266
        %v4426 = vunpack.c.l.b16 %v4267
        %v4427 = vunpack.c.l.b16 %v4268
        %v4428 = vunpack.c.l.b16 %v4269
        %v4429 = vunpack.c.l.b16 %v4270
        %v4430 = vunpack.c.l.b16 %v4271
        %v4431 = vunpack.c.l.b16 %v4272
        %v4432 = vunpack.c.l.b16 %v4273
        %v4433 = vpack.c.b16 %v4416, %v4415
        %v4434 = vpack.c.b16 %v4418, %v4417
        %v4435 = vpack.c.b16 %v4420, %v4419
        %v4436 = vpack.c.b16 %v4422, %v4421
        %v4437 = vpack.c.b16 %v4424, %v4423
        %v4438 = vpack.c.b16 %v4426, %v4425
        %v4439 = vpack.c.b16 %v4428, %v4427
        %v4440 = vpack.c.b16 %v4430, %v4429
        %v4441 = vpack.c.b16 %v4432, %v4431
        %v4451 = vsel %vm807, %v4255, 0
        %4453 = vmatprep.subr.bf16.mxu0 0
        %4454 = vmatpush1.bf16.msra.mxu0 %v4433
        %4455 = vmatprep.subr.bf16.mxu0 0
        %4456 = vmatpush1.bf16.msra.mxu0 %v4434
        %4457 = vmatprep.subr.bf16.mxu0 0
        %4458 = vmatpush1.bf16.msra.mxu0 %v4435
        %4459 = vmatprep.subr.bf16.mxu0 0
        %4460 = vmatpush1.bf16.msra.mxu0 %v4436
        %4461 = vmatprep.subr.bf16.mxu0 0
        %4462 = vmatpush1.bf16.msra.mxu0 %v4437
        %4463 = vmatprep.subr.bf16.mxu0 0
        %4464 = vmatpush1.bf16.msra.mxu0 %v4438
        %4465 = vmatprep.subr.bf16.mxu0 0
        %4466 = vmatpush1.bf16.msra.mxu0 %v4439
        %4467 = vmatprep.subr.bf16.mxu0 0
        %4468 = vmatpush1.bf16.msra.mxu0 %v4440
        %4469 = vmatprep.subr.bf16.mxu0 0
        %4470 = vmatpush1.bf16.msra.mxu0 %v4441
        %4471 = vmatprep.subr.bf16.mxu0 0
        %4472 = vmatpush1.bf16.msra.mxu0 0
        %4473 = vmatprep.subr.bf16.mxu0 0
        %4474 = vmatpush1.bf16.msra.mxu0 0
        %4475 = vmatprep.subr.bf16.mxu0 0
        %4476 = vmatpush1.bf16.msra.mxu0 0
        %4477 = vmatprep.subr.bf16.mxu0 0
        %4478 = vmatpush1.bf16.msra.mxu0 0
        %4479 = vmatprep.subr.bf16.mxu0 0
        %4480 = vmatpush1.bf16.msra.mxu0 0
        %4481 = vmatprep.subr.bf16.mxu0 0
        %4482 = vmatpush1.bf16.msra.mxu0 0
        %4483 = vmatprep.subr.bf16.mxu0 0
        %4484 = vmatpush1.bf16.msra.mxu0 0
        %4485 = vmatprep.mubr.bf16.mxu0 %v4451
        %4486 = vmatmul.mubr.bf16.gmra.mrb[0].mxu0 %v4254
        %v4487 = vpop.f32.mrb[0].mxu0
        %v4488 = vadd.f32 %v4392, %v4487
        %v4489 = vpop.f32.mrb[0].mxu0
        %v4490 = vpop.f32.mrb[0].mxu0
        %v4491 = vpop.f32.mrb[0].mxu0
        %4492 = vdwg.mxu0
        %s4493 = scalar_lea.vmem [#allocation8], 144
        %v4494 = vld [vmem:[%s4493] sm:$0xf]
        %v4495 = vld [vmem:[%s4493 + $0x4] sm:$0xf]
        %v4496 = vld [vmem:[%s4493 + $0x8] sm:$0xf]
        %v4497 = vld [vmem:[%s4493 + $0xc] sm:$0xf]
        %v4498 = vld [vmem:[%s4493 + $0x10] sm:$0xf]
        %v4499 = vld [vmem:[%s4493 + $0x14] sm:$0xf]
        %v4500 = vld [vmem:[%s4493 + $0x18] sm:$0xf]
        %v4501 = vld [vmem:[%s4493 + $0x1c] sm:$0xf]
        %v4502 = vld [vmem:[%s4493 + $0x20] sm:$0xf]
        %v4503 = vld [vmem:[%s4493 + $0x24] sm:$0xf]
        %v4504 = vld [vmem:[%s4493 + $0x28] sm:$0xf]
        %v4505 = vld [vmem:[%s4493 + $0x2c] sm:$0xf]
        %v4506 = vld [vmem:[%s4493 + $0x30] sm:$0xf]
        %v4507 = vld [vmem:[%s4493 + $0x34] sm:$0xf]
        %v4508 = vld [vmem:[%s4493 + $0x38] sm:$0xf]
        %v4509 = vld [vmem:[%s4493 + $0x3c] sm:$0xf]
        %v4510 = vld [vmem:[%s4493 + $0x40] sm:$0xf]
        %v4511 = vld [vmem:[%s4493 + $0x44] sm:$0xf]
        %v4514 = vrot.slane %v4254, 1
        %v4515 = vrot.slane %v4255, 1
        %v4535 = vunpack.c.l.b16 %v4494
        %v4536 = vunpack.c.l.b16 %v4495
        %v4537 = vunpack.c.l.b16 %v4496
        %v4538 = vunpack.c.l.b16 %v4497
        %v4539 = vunpack.c.l.b16 %v4498
        %v4540 = vunpack.c.l.b16 %v4499
        %v4541 = vunpack.c.l.b16 %v4500
        %v4542 = vunpack.c.l.b16 %v4501
        %v4543 = vunpack.c.l.b16 %v4502
        %v4544 = vunpack.c.l.b16 %v4503
        %v4545 = vunpack.c.l.b16 %v4504
        %v4546 = vunpack.c.l.b16 %v4505
        %v4547 = vunpack.c.l.b16 %v4506
        %v4548 = vunpack.c.l.b16 %v4507
        %v4549 = vunpack.c.l.b16 %v4508
        %v4550 = vunpack.c.l.b16 %v4509
        %v4551 = vunpack.c.l.b16 %v4510
        %v4552 = vunpack.c.l.b16 %v4511
        %v4553 = vpack.c.b16 %v4536, %v4535
        %v4554 = vpack.c.b16 %v4538, %v4537
        %v4555 = vpack.c.b16 %v4540, %v4539
        %v4556 = vpack.c.b16 %v4542, %v4541
        %v4557 = vpack.c.b16 %v4544, %v4543
        %v4558 = vpack.c.b16 %v4546, %v4545
        %v4559 = vpack.c.b16 %v4548, %v4547
        %v4560 = vpack.c.b16 %v4550, %v4549
        %v4561 = vpack.c.b16 %v4552, %v4551
        %v4572 = vsel %vm807, %v4515, 0
        %4574 = vmatprep.subr.bf16.mxu0 0
        %4575 = vmatpush1.bf16.msra.mxu0 %v4553
        %4576 = vmatprep.subr.bf16.mxu0 0
        %4577 = vmatpush1.bf16.msra.mxu0 %v4554
        %4578 = vmatprep.subr.bf16.mxu0 0
        %4579 = vmatpush1.bf16.msra.mxu0 %v4555
        %4580 = vmatprep.subr.bf16.mxu0 0
        %4581 = vmatpush1.bf16.msra.mxu0 %v4556
        %4582 = vmatprep.subr.bf16.mxu0 0
        %4583 = vmatpush1.bf16.msra.mxu0 %v4557
        %4584 = vmatprep.subr.bf16.mxu0 0
        %4585 = vmatpush1.bf16.msra.mxu0 %v4558
        %4586 = vmatprep.subr.bf16.mxu0 0
        %4587 = vmatpush1.bf16.msra.mxu0 %v4559
        %4588 = vmatprep.subr.bf16.mxu0 0
        %4589 = vmatpush1.bf16.msra.mxu0 %v4560
        %4590 = vmatprep.subr.bf16.mxu0 0
        %4591 = vmatpush1.bf16.msra.mxu0 %v4561
        %4592 = vmatprep.subr.bf16.mxu0 0
        %4593 = vmatpush1.bf16.msra.mxu0 0
        %4594 = vmatprep.subr.bf16.mxu0 0
        %4595 = vmatpush1.bf16.msra.mxu0 0
        %4596 = vmatprep.subr.bf16.mxu0 0
        %4597 = vmatpush1.bf16.msra.mxu0 0
        %4598 = vmatprep.subr.bf16.mxu0 0
        %4599 = vmatpush1.bf16.msra.mxu0 0
        %4600 = vmatprep.subr.bf16.mxu0 0
        %4601 = vmatpush1.bf16.msra.mxu0 0
        %4602 = vmatprep.subr.bf16.mxu0 0
        %4603 = vmatpush1.bf16.msra.mxu0 0
        %4604 = vmatprep.subr.bf16.mxu0 0
        %4605 = vmatpush1.bf16.msra.mxu0 0
        %4606 = vmatprep.mubr.bf16.mxu0 %v4572
        %4607 = vmatmul.mubr.bf16.gmra.mrb[0].mxu0 %v4514
        %v4608 = vpop.f32.mrb[0].mxu0
        %v4609 = vadd.f32 0.0, %v4608
        %v4610 = vpop.f32.mrb[0].mxu0
        %v4611 = vpop.f32.mrb[0].mxu0
        %v4612 = vpop.f32.mrb[0].mxu0
        %4613 = vdwg.mxu0
        %v4614 = vadd.f32 %v4488, %v4609
        %s4615 = scalar_lea.vmem [#allocation8], 216
        %v4616 = vld [vmem:[%s4615] sm:$0xf]
        %v4617 = vld [vmem:[%s4615 + $0x4] sm:$0xf]
        %v4618 = vld [vmem:[%s4615 + $0x8] sm:$0xf]
        %v4619 = vld [vmem:[%s4615 + $0xc] sm:$0xf]
        %v4620 = vld [vmem:[%s4615 + $0x10] sm:$0xf]
        %v4621 = vld [vmem:[%s4615 + $0x14] sm:$0xf]
        %v4622 = vld [vmem:[%s4615 + $0x18] sm:$0xf]
        %v4623 = vld [vmem:[%s4615 + $0x1c] sm:$0xf]
        %v4624 = vld [vmem:[%s4615 + $0x20] sm:$0xf]
        %v4625 = vld [vmem:[%s4615 + $0x24] sm:$0xf]
        %v4626 = vld [vmem:[%s4615 + $0x28] sm:$0xf]
        %v4627 = vld [vmem:[%s4615 + $0x2c] sm:$0xf]
        %v4628 = vld [vmem:[%s4615 + $0x30] sm:$0xf]
        %v4629 = vld [vmem:[%s4615 + $0x34] sm:$0xf]
        %v4630 = vld [vmem:[%s4615 + $0x38] sm:$0xf]
        %v4631 = vld [vmem:[%s4615 + $0x3c] sm:$0xf]
        %v4632 = vld [vmem:[%s4615 + $0x40] sm:$0xf]
        %v4633 = vld [vmem:[%s4615 + $0x44] sm:$0xf]
        %v4634 = vrot.slane %v4294, 1
        %v4635 = vrot.slane %v4297, 1
        %v4655 = vunpack.c.l.b16 %v4616
        %v4656 = vunpack.c.l.b16 %v4617
        %v4657 = vunpack.c.l.b16 %v4618
        %v4658 = vunpack.c.l.b16 %v4619
        %v4659 = vunpack.c.l.b16 %v4620
        %v4660 = vunpack.c.l.b16 %v4621
        %v4661 = vunpack.c.l.b16 %v4622
        %v4662 = vunpack.c.l.b16 %v4623
        %v4663 = vunpack.c.l.b16 %v4624
        %v4664 = vunpack.c.l.b16 %v4625
        %v4665 = vunpack.c.l.b16 %v4626
        %v4666 = vunpack.c.l.b16 %v4627
        %v4667 = vunpack.c.l.b16 %v4628
        %v4668 = vunpack.c.l.b16 %v4629
        %v4669 = vunpack.c.l.b16 %v4630
        %v4670 = vunpack.c.l.b16 %v4631
        %v4671 = vunpack.c.l.b16 %v4632
        %v4672 = vunpack.c.l.b16 %v4633
        %v4673 = vpack.c.b16 %v4656, %v4655
        %v4674 = vpack.c.b16 %v4658, %v4657
        %v4675 = vpack.c.b16 %v4660, %v4659
        %v4676 = vpack.c.b16 %v4662, %v4661
        %v4677 = vpack.c.b16 %v4664, %v4663
        %v4678 = vpack.c.b16 %v4666, %v4665
        %v4679 = vpack.c.b16 %v4668, %v4667
        %v4680 = vpack.c.b16 %v4670, %v4669
        %v4681 = vpack.c.b16 %v4672, %v4671
        %v4692 = vsel %vm807, %v4635, 0
        %4694 = vmatprep.subr.bf16.mxu0 0
        %4695 = vmatpush1.bf16.msra.mxu0 %v4673
        %4696 = vmatprep.subr.bf16.mxu0 0
        %4697 = vmatpush1.bf16.msra.mxu0 %v4674
        %4698 = vmatprep.subr.bf16.mxu0 0
        %4699 = vmatpush1.bf16.msra.mxu0 %v4675
        %4700 = vmatprep.subr.bf16.mxu0 0
        %4701 = vmatpush1.bf16.msra.mxu0 %v4676
        %4702 = vmatprep.subr.bf16.mxu0 0
        %4703 = vmatpush1.bf16.msra.mxu0 %v4677
        %4704 = vmatprep.subr.bf16.mxu0 0
        %4705 = vmatpush1.bf16.msra.mxu0 %v4678
        %4706 = vmatprep.subr.bf16.mxu0 0
        %4707 = vmatpush1.bf16.msra.mxu0 %v4679
        %4708 = vmatprep.subr.bf16.mxu0 0
        %4709 = vmatpush1.bf16.msra.mxu0 %v4680
        %4710 = vmatprep.subr.bf16.mxu0 0
        %4711 = vmatpush1.bf16.msra.mxu0 %v4681
        %4712 = vmatprep.subr.bf16.mxu0 0
        %4713 = vmatpush1.bf16.msra.mxu0 0
        %4714 = vmatprep.subr.bf16.mxu0 0
        %4715 = vmatpush1.bf16.msra.mxu0 0
        %4716 = vmatprep.subr.bf16.mxu0 0
        %4717 = vmatpush1.bf16.msra.mxu0 0
        %4718 = vmatprep.subr.bf16.mxu0 0
        %4719 = vmatpush1.bf16.msra.mxu0 0
        %4720 = vmatprep.subr.bf16.mxu0 0
        %4721 = vmatpush1.bf16.msra.mxu0 0
        %4722 = vmatprep.subr.bf16.mxu0 0
        %4723 = vmatpush1.bf16.msra.mxu0 0
        %4724 = vmatprep.subr.bf16.mxu0 0
        %4725 = vmatpush1.bf16.msra.mxu0 0
        %4726 = vmatprep.mubr.bf16.mxu0 %v4692
        %4727 = vmatmul.mubr.bf16.gmra.mrb[0].mxu0 %v4634
        %v4728 = vpop.f32.mrb[0].mxu0
        %v4729 = vadd.f32 0.0, %v4728
        %v4730 = vpop.f32.mrb[0].mxu0
        %v4731 = vpop.f32.mrb[0].mxu0
        %v4732 = vpop.f32.mrb[0].mxu0
        %4733 = vdwg.mxu0
        %v4734 = vadd.f32 %v4614, %v4729
        %s4735 = scalar_lea.vmem [#allocation8], 288
        %v4736 = vld [vmem:[%s4735] sm:$0xf]
        %v4737 = vld [vmem:[%s4735 + $0x4] sm:$0xf]
        %v4738 = vld [vmem:[%s4735 + $0x8] sm:$0xf]
        %v4739 = vld [vmem:[%s4735 + $0xc] sm:$0xf]
        %v4740 = vld [vmem:[%s4735 + $0x10] sm:$0xf]
        %v4741 = vld [vmem:[%s4735 + $0x14] sm:$0xf]
        %v4742 = vld [vmem:[%s4735 + $0x18] sm:$0xf]
        %v4743 = vld [vmem:[%s4735 + $0x1c] sm:$0xf]
        %v4744 = vld [vmem:[%s4735 + $0x20] sm:$0xf]
        %v4745 = vld [vmem:[%s4735 + $0x24] sm:$0xf]
        %v4746 = vld [vmem:[%s4735 + $0x28] sm:$0xf]
        %v4747 = vld [vmem:[%s4735 + $0x2c] sm:$0xf]
        %v4748 = vld [vmem:[%s4735 + $0x30] sm:$0xf]
        %v4749 = vld [vmem:[%s4735 + $0x34] sm:$0xf]
        %v4750 = vld [vmem:[%s4735 + $0x38] sm:$0xf]
        %v4751 = vld [vmem:[%s4735 + $0x3c] sm:$0xf]
        %v4752 = vld [vmem:[%s4735 + $0x40] sm:$0xf]
        %v4753 = vld [vmem:[%s4735 + $0x44] sm:$0xf]
        %v4754 = vrot.slane %v4254, 2
        %v4755 = vrot.slane %v4255, 2
        %v4775 = vunpack.c.l.b16 %v4736
        %v4776 = vunpack.c.l.b16 %v4737
        %v4777 = vunpack.c.l.b16 %v4738
        %v4778 = vunpack.c.l.b16 %v4739
        %v4779 = vunpack.c.l.b16 %v4740
        %v4780 = vunpack.c.l.b16 %v4741
        %v4781 = vunpack.c.l.b16 %v4742
        %v4782 = vunpack.c.l.b16 %v4743
        %v4783 = vunpack.c.l.b16 %v4744
        %v4784 = vunpack.c.l.b16 %v4745
        %v4785 = vunpack.c.l.b16 %v4746
        %v4786 = vunpack.c.l.b16 %v4747
        %v4787 = vunpack.c.l.b16 %v4748
        %v4788 = vunpack.c.l.b16 %v4749
        %v4789 = vunpack.c.l.b16 %v4750
        %v4790 = vunpack.c.l.b16 %v4751
        %v4791 = vunpack.c.l.b16 %v4752
        %v4792 = vunpack.c.l.b16 %v4753
        %v4793 = vpack.c.b16 %v4776, %v4775
        %v4794 = vpack.c.b16 %v4778, %v4777
        %v4795 = vpack.c.b16 %v4780, %v4779
        %v4796 = vpack.c.b16 %v4782, %v4781
        %v4797 = vpack.c.b16 %v4784, %v4783
        %v4798 = vpack.c.b16 %v4786, %v4785
        %v4799 = vpack.c.b16 %v4788, %v4787
        %v4800 = vpack.c.b16 %v4790, %v4789
        %v4801 = vpack.c.b16 %v4792, %v4791
        %v4812 = vsel %vm807, %v4755, 0
        %4814 = vmatprep.subr.bf16.mxu0 0
        %4815 = vmatpush1.bf16.msra.mxu0 %v4793
        %4816 = vmatprep.subr.bf16.mxu0 0
        %4817 = vmatpush1.bf16.msra.mxu0 %v4794
        %4818 = vmatprep.subr.bf16.mxu0 0
        %4819 = vmatpush1.bf16.msra.mxu0 %v4795
        %4820 = vmatprep.subr.bf16.mxu0 0
        %4821 = vmatpush1.bf16.msra.mxu0 %v4796
        %4822 = vmatprep.subr.bf16.mxu0 0
        %4823 = vmatpush1.bf16.msra.mxu0 %v4797
        %4824 = vmatprep.subr.bf16.mxu0 0
        %4825 = vmatpush1.bf16.msra.mxu0 %v4798
        %4826 = vmatprep.subr.bf16.mxu0 0
        %4827 = vmatpush1.bf16.msra.mxu0 %v4799
        %4828 = vmatprep.subr.bf16.mxu0 0
        %4829 = vmatpush1.bf16.msra.mxu0 %v4800
        %4830 = vmatprep.subr.bf16.mxu0 0
        %4831 = vmatpush1.bf16.msra.mxu0 %v4801
        %4832 = vmatprep.subr.bf16.mxu0 0
        %4833 = vmatpush1.bf16.msra.mxu0 0
        %4834 = vmatprep.subr.bf16.mxu0 0
        %4835 = vmatpush1.bf16.msra.mxu0 0
        %4836 = vmatprep.subr.bf16.mxu0 0
        %4837 = vmatpush1.bf16.msra.mxu0 0
        %4838 = vmatprep.subr.bf16.mxu0 0
        %4839 = vmatpush1.bf16.msra.mxu0 0
        %4840 = vmatprep.subr.bf16.mxu0 0
        %4841 = vmatpush1.bf16.msra.mxu0 0
        %4842 = vmatprep.subr.bf16.mxu0 0
        %4843 = vmatpush1.bf16.msra.mxu0 0
        %4844 = vmatprep.subr.bf16.mxu0 0
        %4845 = vmatpush1.bf16.msra.mxu0 0
        %4846 = vmatprep.mubr.bf16.mxu0 %v4812
        %4847 = vmatmul.mubr.bf16.gmra.mrb[0].mxu0 %v4754
        %v4848 = vpop.f32.mrb[0].mxu0
        %v4849 = vadd.f32 0.0, %v4848
        %v4850 = vpop.f32.mrb[0].mxu0
        %v4851 = vpop.f32.mrb[0].mxu0
        %v4852 = vpop.f32.mrb[0].mxu0
        %4853 = vdwg.mxu0
        %v4854 = vadd.f32 %v4734, %v4849
        %s4855 = scalar_lea.vmem [#allocation8], 360
        %v4856 = vld [vmem:[%s4855] sm:$0xf]
        %v4857 = vld [vmem:[%s4855 + $0x4] sm:$0xf]
        %v4858 = vld [vmem:[%s4855 + $0x8] sm:$0xf]
        %v4859 = vld [vmem:[%s4855 + $0xc] sm:$0xf]
        %v4860 = vld [vmem:[%s4855 + $0x10] sm:$0xf]
        %v4861 = vld [vmem:[%s4855 + $0x14] sm:$0xf]
        %v4862 = vld [vmem:[%s4855 + $0x18] sm:$0xf]
        %v4863 = vld [vmem:[%s4855 + $0x1c] sm:$0xf]
        %v4864 = vld [vmem:[%s4855 + $0x20] sm:$0xf]
        %v4865 = vld [vmem:[%s4855 + $0x24] sm:$0xf]
        %v4866 = vld [vmem:[%s4855 + $0x28] sm:$0xf]
        %v4867 = vld [vmem:[%s4855 + $0x2c] sm:$0xf]
        %v4868 = vld [vmem:[%s4855 + $0x30] sm:$0xf]
        %v4869 = vld [vmem:[%s4855 + $0x34] sm:$0xf]
        %v4870 = vld [vmem:[%s4855 + $0x38] sm:$0xf]
        %v4871 = vld [vmem:[%s4855 + $0x3c] sm:$0xf]
        %v4872 = vld [vmem:[%s4855 + $0x40] sm:$0xf]
        %v4873 = vld [vmem:[%s4855 + $0x44] sm:$0xf]
        %v4874 = vrot.slane %v4294, 2
        %v4875 = vrot.slane %v4297, 2
        %v4895 = vunpack.c.l.b16 %v4856
        %v4896 = vunpack.c.l.b16 %v4857
        %v4897 = vunpack.c.l.b16 %v4858
        %v4898 = vunpack.c.l.b16 %v4859
        %v4899 = vunpack.c.l.b16 %v4860
        %v4900 = vunpack.c.l.b16 %v4861
        %v4901 = vunpack.c.l.b16 %v4862
        %v4902 = vunpack.c.l.b16 %v4863
        %v4903 = vunpack.c.l.b16 %v4864
        %v4904 = vunpack.c.l.b16 %v4865
        %v4905 = vunpack.c.l.b16 %v4866
        %v4906 = vunpack.c.l.b16 %v4867
        %v4907 = vunpack.c.l.b16 %v4868
        %v4908 = vunpack.c.l.b16 %v4869
        %v4909 = vunpack.c.l.b16 %v4870
        %v4910 = vunpack.c.l.b16 %v4871
        %v4911 = vunpack.c.l.b16 %v4872
        %v4912 = vunpack.c.l.b16 %v4873
        %v4913 = vpack.c.b16 %v4896, %v4895
        %v4914 = vpack.c.b16 %v4898, %v4897
        %v4915 = vpack.c.b16 %v4900, %v4899
        %v4916 = vpack.c.b16 %v4902, %v4901
        %v4917 = vpack.c.b16 %v4904, %v4903
        %v4918 = vpack.c.b16 %v4906, %v4905
        %v4919 = vpack.c.b16 %v4908, %v4907
        %v4920 = vpack.c.b16 %v4910, %v4909
        %v4921 = vpack.c.b16 %v4912, %v4911
        %v4932 = vsel %vm807, %v4875, 0
        %4934 = vmatprep.subr.bf16.mxu0 0
        %4935 = vmatpush1.bf16.msra.mxu0 %v4913
        %4936 = vmatprep.subr.bf16.mxu0 0
        %4937 = vmatpush1.bf16.msra.mxu0 %v4914
        %4938 = vmatprep.subr.bf16.mxu0 0
        %4939 = vmatpush1.bf16.msra.mxu0 %v4915
        %4940 = vmatprep.subr.bf16.mxu0 0
        %4941 = vmatpush1.bf16.msra.mxu0 %v4916
        %4942 = vmatprep.subr.bf16.mxu0 0
        %4943 = vmatpush1.bf16.msra.mxu0 %v4917
        %4944 = vmatprep.subr.bf16.mxu0 0
        %4945 = vmatpush1.bf16.msra.mxu0 %v4918
        %4946 = vmatprep.subr.bf16.mxu0 0
        %4947 = vmatpush1.bf16.msra.mxu0 %v4919
        %4948 = vmatprep.subr.bf16.mxu0 0
        %4949 = vmatpush1.bf16.msra.mxu0 %v4920
        %4950 = vmatprep.subr.bf16.mxu0 0
        %4951 = vmatpush1.bf16.msra.mxu0 %v4921
        %4952 = vmatprep.subr.bf16.mxu0 0
        %4953 = vmatpush1.bf16.msra.mxu0 0
        %4954 = vmatprep.subr.bf16.mxu0 0
        %4955 = vmatpush1.bf16.msra.mxu0 0
        %4956 = vmatprep.subr.bf16.mxu0 0
        %4957 = vmatpush1.bf16.msra.mxu0 0
        %4958 = vmatprep.subr.bf16.mxu0 0
        %4959 = vmatpush1.bf16.msra.mxu0 0
        %4960 = vmatprep.subr.bf16.mxu0 0
        %4961 = vmatpush1.bf16.msra.mxu0 0
        %4962 = vmatprep.subr.bf16.mxu0 0
        %4963 = vmatpush1.bf16.msra.mxu0 0
        %4964 = vmatprep.subr.bf16.mxu0 0
        %4965 = vmatpush1.bf16.msra.mxu0 0
        %4966 = vmatprep.mubr.bf16.mxu0 %v4932
        %4967 = vmatmul.mubr.bf16.gmra.mrb[0].mxu0 %v4874
        %v4968 = vpop.f32.mrb[0].mxu0
        %v4969 = vadd.f32 0.0, %v4968
        %v4970 = vpop.f32.mrb[0].mxu0
        %v4971 = vpop.f32.mrb[0].mxu0
        %v4972 = vpop.f32.mrb[0].mxu0
        %4973 = vdwg.mxu0
        %v4974 = vadd.f32 %v4854, %v4969
        %s4975 = scalar_lea.vmem [#allocation8], 432
        %v4976 = vld [vmem:[%s4975] sm:$0xf]
        %v4977 = vld [vmem:[%s4975 + $0x4] sm:$0xf]
        %v4978 = vld [vmem:[%s4975 + $0x8] sm:$0xf]
        %v4979 = vld [vmem:[%s4975 + $0xc] sm:$0xf]
        %v4980 = vld [vmem:[%s4975 + $0x10] sm:$0xf]
        %v4981 = vld [vmem:[%s4975 + $0x14] sm:$0xf]
        %v4982 = vld [vmem:[%s4975 + $0x18] sm:$0xf]
        %v4983 = vld [vmem:[%s4975 + $0x1c] sm:$0xf]
        %v4984 = vld [vmem:[%s4975 + $0x20] sm:$0xf]
        %v4985 = vld [vmem:[%s4975 + $0x24] sm:$0xf]
        %v4986 = vld [vmem:[%s4975 + $0x28] sm:$0xf]
        %v4987 = vld [vmem:[%s4975 + $0x2c] sm:$0xf]
        %v4988 = vld [vmem:[%s4975 + $0x30] sm:$0xf]
        %v4989 = vld [vmem:[%s4975 + $0x34] sm:$0xf]
        %v4990 = vld [vmem:[%s4975 + $0x38] sm:$0xf]
        %v4991 = vld [vmem:[%s4975 + $0x3c] sm:$0xf]
        %v4992 = vld [vmem:[%s4975 + $0x40] sm:$0xf]
        %v4993 = vld [vmem:[%s4975 + $0x44] sm:$0xf]
        %v4994 = vrot.slane %v4254, 3
        %v4995 = vrot.slane %v4255, 3
        %v5015 = vunpack.c.l.b16 %v4976
        %v5016 = vunpack.c.l.b16 %v4977
        %v5017 = vunpack.c.l.b16 %v4978
        %v5018 = vunpack.c.l.b16 %v4979
        %v5019 = vunpack.c.l.b16 %v4980
        %v5020 = vunpack.c.l.b16 %v4981
        %v5021 = vunpack.c.l.b16 %v4982
        %v5022 = vunpack.c.l.b16 %v4983
        %v5023 = vunpack.c.l.b16 %v4984
        %v5024 = vunpack.c.l.b16 %v4985
        %v5025 = vunpack.c.l.b16 %v4986
        %v5026 = vunpack.c.l.b16 %v4987
        %v5027 = vunpack.c.l.b16 %v4988
        %v5028 = vunpack.c.l.b16 %v4989
        %v5029 = vunpack.c.l.b16 %v4990
        %v5030 = vunpack.c.l.b16 %v4991
        %v5031 = vunpack.c.l.b16 %v4992
        %v5032 = vunpack.c.l.b16 %v4993
        %v5033 = vpack.c.b16 %v5016, %v5015
        %v5034 = vpack.c.b16 %v5018, %v5017
        %v5035 = vpack.c.b16 %v5020, %v5019
        %v5036 = vpack.c.b16 %v5022, %v5021
        %v5037 = vpack.c.b16 %v5024, %v5023
        %v5038 = vpack.c.b16 %v5026, %v5025
        %v5039 = vpack.c.b16 %v5028, %v5027
        %v5040 = vpack.c.b16 %v5030, %v5029
        %v5041 = vpack.c.b16 %v5032, %v5031
        %v5052 = vsel %vm807, %v4995, 0
        %5054 = vmatprep.subr.bf16.mxu0 0
        %5055 = vmatpush1.bf16.msra.mxu0 %v5033
        %5056 = vmatprep.subr.bf16.mxu0 0
        %5057 = vmatpush1.bf16.msra.mxu0 %v5034
        %5058 = vmatprep.subr.bf16.mxu0 0
        %5059 = vmatpush1.bf16.msra.mxu0 %v5035
        %5060 = vmatprep.subr.bf16.mxu0 0
        %5061 = vmatpush1.bf16.msra.mxu0 %v5036
        %5062 = vmatprep.subr.bf16.mxu0 0
        %5063 = vmatpush1.bf16.msra.mxu0 %v5037
        %5064 = vmatprep.subr.bf16.mxu0 0
        %5065 = vmatpush1.bf16.msra.mxu0 %v5038
        %5066 = vmatprep.subr.bf16.mxu0 0
        %5067 = vmatpush1.bf16.msra.mxu0 %v5039
        %5068 = vmatprep.subr.bf16.mxu0 0
        %5069 = vmatpush1.bf16.msra.mxu0 %v5040
        %5070 = vmatprep.subr.bf16.mxu0 0
        %5071 = vmatpush1.bf16.msra.mxu0 %v5041
        %5072 = vmatprep.subr.bf16.mxu0 0
        %5073 = vmatpush1.bf16.msra.mxu0 0
        %5074 = vmatprep.subr.bf16.mxu0 0
        %5075 = vmatpush1.bf16.msra.mxu0 0
        %5076 = vmatprep.subr.bf16.mxu0 0
        %5077 = vmatpush1.bf16.msra.mxu0 0
        %5078 = vmatprep.subr.bf16.mxu0 0
        %5079 = vmatpush1.bf16.msra.mxu0 0
        %5080 = vmatprep.subr.bf16.mxu0 0
        %5081 = vmatpush1.bf16.msra.mxu0 0
        %5082 = vmatprep.subr.bf16.mxu0 0
        %5083 = vmatpush1.bf16.msra.mxu0 0
        %5084 = vmatprep.subr.bf16.mxu0 0
        %5085 = vmatpush1.bf16.msra.mxu0 0
        %5086 = vmatprep.mubr.bf16.mxu0 %v5052
        %5087 = vmatmul.mubr.bf16.gmra.mrb[0].mxu0 %v4994
        %v5088 = vpop.f32.mrb[0].mxu0
        %v5089 = vadd.f32 0.0, %v5088
        %v5090 = vpop.f32.mrb[0].mxu0
        %v5091 = vpop.f32.mrb[0].mxu0
        %v5092 = vpop.f32.mrb[0].mxu0
        %5093 = vdwg.mxu0
        %v5094 = vadd.f32 %v4974, %v5089
        %s5095 = scalar_lea.vmem [#allocation8], 504
        %v5096 = vld [vmem:[%s5095] sm:$0xf]
        %v5097 = vld [vmem:[%s5095 + $0x4] sm:$0xf]
        %v5098 = vld [vmem:[%s5095 + $0x8] sm:$0xf]
        %v5099 = vld [vmem:[%s5095 + $0xc] sm:$0xf]
        %v5100 = vld [vmem:[%s5095 + $0x10] sm:$0xf]
        %v5101 = vld [vmem:[%s5095 + $0x14] sm:$0xf]
        %v5102 = vld [vmem:[%s5095 + $0x18] sm:$0xf]
        %v5103 = vld [vmem:[%s5095 + $0x1c] sm:$0xf]
        %v5104 = vld [vmem:[%s5095 + $0x20] sm:$0xf]
        %v5105 = vld [vmem:[%s5095 + $0x24] sm:$0xf]
        %v5106 = vld [vmem:[%s5095 + $0x28] sm:$0xf]
        %v5107 = vld [vmem:[%s5095 + $0x2c] sm:$0xf]
        %v5108 = vld [vmem:[%s5095 + $0x30] sm:$0xf]
        %v5109 = vld [vmem:[%s5095 + $0x34] sm:$0xf]
        %v5110 = vld [vmem:[%s5095 + $0x38] sm:$0xf]
        %v5111 = vld [vmem:[%s5095 + $0x3c] sm:$0xf]
        %v5112 = vld [vmem:[%s5095 + $0x40] sm:$0xf]
        %v5113 = vld [vmem:[%s5095 + $0x44] sm:$0xf]
        %v5114 = vrot.slane %v4294, 3
        %v5115 = vrot.slane %v4297, 3
        %v5135 = vunpack.c.l.b16 %v5096
        %v5136 = vunpack.c.l.b16 %v5097
        %v5137 = vunpack.c.l.b16 %v5098
        %v5138 = vunpack.c.l.b16 %v5099
        %v5139 = vunpack.c.l.b16 %v5100
        %v5140 = vunpack.c.l.b16 %v5101
        %v5141 = vunpack.c.l.b16 %v5102
        %v5142 = vunpack.c.l.b16 %v5103
        %v5143 = vunpack.c.l.b16 %v5104
        %v5144 = vunpack.c.l.b16 %v5105
        %v5145 = vunpack.c.l.b16 %v5106
        %v5146 = vunpack.c.l.b16 %v5107
        %v5147 = vunpack.c.l.b16 %v5108
        %v5148 = vunpack.c.l.b16 %v5109
        %v5149 = vunpack.c.l.b16 %v5110
        %v5150 = vunpack.c.l.b16 %v5111
        %v5151 = vunpack.c.l.b16 %v5112
        %v5152 = vunpack.c.l.b16 %v5113
        %v5153 = vpack.c.b16 %v5136, %v5135
        %v5154 = vpack.c.b16 %v5138, %v5137
        %v5155 = vpack.c.b16 %v5140, %v5139
        %v5156 = vpack.c.b16 %v5142, %v5141
        %v5157 = vpack.c.b16 %v5144, %v5143
        %v5158 = vpack.c.b16 %v5146, %v5145
        %v5159 = vpack.c.b16 %v5148, %v5147
        %v5160 = vpack.c.b16 %v5150, %v5149
        %v5161 = vpack.c.b16 %v5152, %v5151
        %v5172 = vsel %vm807, %v5115, 0
        %5174 = vmatprep.subr.bf16.mxu0 0
        %5175 = vmatpush1.bf16.msra.mxu0 %v5153
        %5176 = vmatprep.subr.bf16.mxu0 0
        %5177 = vmatpush1.bf16.msra.mxu0 %v5154
        %5178 = vmatprep.subr.bf16.mxu0 0
        %5179 = vmatpush1.bf16.msra.mxu0 %v5155
        %5180 = vmatprep.subr.bf16.mxu0 0
        %5181 = vmatpush1.bf16.msra.mxu0 %v5156
        %5182 = vmatprep.subr.bf16.mxu0 0
        %5183 = vmatpush1.bf16.msra.mxu0 %v5157
        %5184 = vmatprep.subr.bf16.mxu0 0
        %5185 = vmatpush1.bf16.msra.mxu0 %v5158
        %5186 = vmatprep.subr.bf16.mxu0 0
        %5187 = vmatpush1.bf16.msra.mxu0 %v5159
        %5188 = vmatprep.subr.bf16.mxu0 0
        %5189 = vmatpush1.bf16.msra.mxu0 %v5160
        %5190 = vmatprep.subr.bf16.mxu0 0
        %5191 = vmatpush1.bf16.msra.mxu0 %v5161
        %5192 = vmatprep.subr.bf16.mxu0 0
        %5193 = vmatpush1.bf16.msra.mxu0 0
        %5194 = vmatprep.subr.bf16.mxu0 0
        %5195 = vmatpush1.bf16.msra.mxu0 0
        %5196 = vmatprep.subr.bf16.mxu0 0
        %5197 = vmatpush1.bf16.msra.mxu0 0
        %5198 = vmatprep.subr.bf16.mxu0 0
        %5199 = vmatpush1.bf16.msra.mxu0 0
        %5200 = vmatprep.subr.bf16.mxu0 0
        %5201 = vmatpush1.bf16.msra.mxu0 0
        %5202 = vmatprep.subr.bf16.mxu0 0
        %5203 = vmatpush1.bf16.msra.mxu0 0
        %5204 = vmatprep.subr.bf16.mxu0 0
        %5205 = vmatpush1.bf16.msra.mxu0 0
        %5206 = vmatprep.mubr.bf16.mxu0 %v5172
        %5207 = vmatmul.mubr.bf16.gmra.mrb[0].mxu0 %v5114
        %v5208 = vpop.f32.mrb[0].mxu0
        %v5209 = vadd.f32 0.0, %v5208
        %v5210 = vpop.f32.mrb[0].mxu0
        %v5211 = vpop.f32.mrb[0].mxu0
        %v5212 = vpop.f32.mrb[0].mxu0
        %5213 = vdwg.mxu0
        %v5214 = vadd.f32 %v5094, %v5209
        %s5215 = scalar_lea.vmem [#allocation8], 576
        %v5216 = vld [vmem:[%s5215] sm:$0xf]
        %v5217 = vld [vmem:[%s5215 + $0x4] sm:$0xf]
        %v5218 = vld [vmem:[%s5215 + $0x8] sm:$0xf]
        %v5219 = vld [vmem:[%s5215 + $0xc] sm:$0xf]
        %v5220 = vld [vmem:[%s5215 + $0x10] sm:$0xf]
        %v5221 = vld [vmem:[%s5215 + $0x14] sm:$0xf]
        %v5222 = vld [vmem:[%s5215 + $0x18] sm:$0xf]
        %v5223 = vld [vmem:[%s5215 + $0x1c] sm:$0xf]
        %v5224 = vld [vmem:[%s5215 + $0x20] sm:$0xf]
        %v5225 = vld [vmem:[%s5215 + $0x24] sm:$0xf]
        %v5226 = vld [vmem:[%s5215 + $0x28] sm:$0xf]
        %v5227 = vld [vmem:[%s5215 + $0x2c] sm:$0xf]
        %v5228 = vld [vmem:[%s5215 + $0x30] sm:$0xf]
        %v5229 = vld [vmem:[%s5215 + $0x34] sm:$0xf]
        %v5230 = vld [vmem:[%s5215 + $0x38] sm:$0xf]
        %v5231 = vld [vmem:[%s5215 + $0x3c] sm:$0xf]
        %v5232 = vld [vmem:[%s5215 + $0x40] sm:$0xf]
        %v5233 = vld [vmem:[%s5215 + $0x44] sm:$0xf]
        %v5234 = vrot.slane %v4254, 4
        %v5235 = vrot.slane %v4255, 4
        %v5255 = vunpack.c.l.b16 %v5216
        %v5256 = vunpack.c.l.b16 %v5217
        %v5257 = vunpack.c.l.b16 %v5218
        %v5258 = vunpack.c.l.b16 %v5219
        %v5259 = vunpack.c.l.b16 %v5220
        %v5260 = vunpack.c.l.b16 %v5221
        %v5261 = vunpack.c.l.b16 %v5222
        %v5262 = vunpack.c.l.b16 %v5223
        %v5263 = vunpack.c.l.b16 %v5224
        %v5264 = vunpack.c.l.b16 %v5225
        %v5265 = vunpack.c.l.b16 %v5226
        %v5266 = vunpack.c.l.b16 %v5227
        %v5267 = vunpack.c.l.b16 %v5228
        %v5268 = vunpack.c.l.b16 %v5229
        %v5269 = vunpack.c.l.b16 %v5230
        %v5270 = vunpack.c.l.b16 %v5231
        %v5271 = vunpack.c.l.b16 %v5232
        %v5272 = vunpack.c.l.b16 %v5233
        %v5273 = vpack.c.b16 %v5256, %v5255
        %v5274 = vpack.c.b16 %v5258, %v5257
        %v5275 = vpack.c.b16 %v5260, %v5259
        %v5276 = vpack.c.b16 %v5262, %v5261
        %v5277 = vpack.c.b16 %v5264, %v5263
        %v5278 = vpack.c.b16 %v5266, %v5265
        %v5279 = vpack.c.b16 %v5268, %v5267
        %v5280 = vpack.c.b16 %v5270, %v5269
        %v5281 = vpack.c.b16 %v5272, %v5271
        %v5292 = vsel %vm807, %v5235, 0
        %5294 = vmatprep.subr.bf16.mxu0 0
        %5295 = vmatpush1.bf16.msra.mxu0 %v5273
        %5296 = vmatprep.subr.bf16.mxu0 0
        %5297 = vmatpush1.bf16.msra.mxu0 %v5274
        %5298 = vmatprep.subr.bf16.mxu0 0
        %5299 = vmatpush1.bf16.msra.mxu0 %v5275
        %5300 = vmatprep.subr.bf16.mxu0 0
        %5301 = vmatpush1.bf16.msra.mxu0 %v5276
        %5302 = vmatprep.subr.bf16.mxu0 0
        %5303 = vmatpush1.bf16.msra.mxu0 %v5277
        %5304 = vmatprep.subr.bf16.mxu0 0
        %5305 = vmatpush1.bf16.msra.mxu0 %v5278
        %5306 = vmatprep.subr.bf16.mxu0 0
        %5307 = vmatpush1.bf16.msra.mxu0 %v5279
        %5308 = vmatprep.subr.bf16.mxu0 0
        %5309 = vmatpush1.bf16.msra.mxu0 %v5280
        %5310 = vmatprep.subr.bf16.mxu0 0
        %5311 = vmatpush1.bf16.msra.mxu0 %v5281
        %5312 = vmatprep.subr.bf16.mxu0 0
        %5313 = vmatpush1.bf16.msra.mxu0 0
        %5314 = vmatprep.subr.bf16.mxu0 0
        %5315 = vmatpush1.bf16.msra.mxu0 0
        %5316 = vmatprep.subr.bf16.mxu0 0
        %5317 = vmatpush1.bf16.msra.mxu0 0
        %5318 = vmatprep.subr.bf16.mxu0 0
        %5319 = vmatpush1.bf16.msra.mxu0 0
        %5320 = vmatprep.subr.bf16.mxu0 0
        %5321 = vmatpush1.bf16.msra.mxu0 0
        %5322 = vmatprep.subr.bf16.mxu0 0
        %5323 = vmatpush1.bf16.msra.mxu0 0
        %5324 = vmatprep.subr.bf16.mxu0 0
        %5325 = vmatpush1.bf16.msra.mxu0 0
        %5326 = vmatprep.mubr.bf16.mxu0 %v5292
        %5327 = vmatmul.mubr.bf16.gmra.mrb[0].mxu0 %v5234
        %v5328 = vpop.f32.mrb[0].mxu0
        %v5329 = vadd.f32 0.0, %v5328
        %v5330 = vpop.f32.mrb[0].mxu0
        %v5331 = vpop.f32.mrb[0].mxu0
        %v5332 = vpop.f32.mrb[0].mxu0
        %5333 = vdwg.mxu0
        %v5334 = vadd.f32 %v5214, %v5329
        %v5335 = vld [vmem:[%s8] sm:$0x1]
        %v5336 = vadd.f32 %v5334, %v5335
        %v5337 = vmax.f32 %v5336, 0.0
        %v5338 = vpack.c.bf16 %v5337, %v5337
        %v5339 = vld [vmem:[%s9] sm:$0xf]
        %v5340 = vld [vmem:[%s9 + $0x4] sm:$0xf]
        %v5341 = vld [vmem:[%s9 + $0x8] sm:$0xf]
        %v5342 = vld [vmem:[%s9 + $0xc] sm:$0xf]
        %v5343 = vld [vmem:[%s9 + $0x10] sm:$0xf]
        %v5344 = vld [vmem:[%s9 + $0x14] sm:$0xf]
        %v5345 = vld [vmem:[%s9 + $0x18] sm:$0xf]
        %v5346 = vld [vmem:[%s9 + $0x1c] sm:$0xf]
        %v5347 = vld [vmem:[%s9 + $0x20] sm:$0xf]
        %v5348 = vld [vmem:[%s9 + $0x24] sm:$0xf]
        %v5349 = vld [vmem:[%s9 + $0x28] sm:$0xf]
        %v5350 = vld [vmem:[%s9 + $0x2c] sm:$0xf]
        %v5351 = vld [vmem:[%s9 + $0x30] sm:$0xf]
        %v5352 = vld [vmem:[%s9 + $0x34] sm:$0xf]
        %v5353 = vld [vmem:[%s9 + $0x38] sm:$0xf]
        %v5354 = vld [vmem:[%s10] sm:$0x1]
        %v5370 = vunpack.c.l.b16 %v5339
        %v5371 = vunpack.c.l.b16 %v5340
        %v5372 = vunpack.c.l.b16 %v5341
        %v5373 = vunpack.c.l.b16 %v5342
        %v5374 = vunpack.c.l.b16 %v5343
        %v5375 = vunpack.c.l.b16 %v5344
        %v5376 = vunpack.c.l.b16 %v5345
        %v5377 = vunpack.c.l.b16 %v5346
        %v5378 = vunpack.c.l.b16 %v5347
        %v5379 = vunpack.c.l.b16 %v5348
        %v5380 = vunpack.c.l.b16 %v5349
        %v5381 = vunpack.c.l.b16 %v5350
        %v5382 = vunpack.c.l.b16 %v5351
        %v5383 = vunpack.c.l.b16 %v5352
        %v5384 = vunpack.c.l.b16 %v5353
        %v5385 = vpack.c.b16 %v5371, %v5370
        %v5386 = vpack.c.b16 %v5373, %v5372
        %v5387 = vpack.c.b16 %v5375, %v5374
        %v5388 = vpack.c.b16 %v5377, %v5376
        %v5389 = vpack.c.b16 %v5379, %v5378
        %v5390 = vpack.c.b16 %v5381, %v5380
        %v5391 = vpack.c.b16 %v5383, %v5382
        %v5392 = vpack.c.b16 %v5384, %v5384
        %vm5400 = vcmask 982016
        %v5402 = vsel %vm5400, %v5338, 0
        %vm5404 = vcmask 1043456
        %v5406 = vsel %vm5404, %v5392, 0
        %5408 = vmatprep.subr.bf16.mxu0 0
        %5409 = vmatpush1.bf16.msra.mxu0 %v5385
        %5410 = vmatprep.subr.bf16.mxu0 0
        %5411 = vmatpush1.bf16.msra.mxu0 %v5386
        %5412 = vmatprep.subr.bf16.mxu0 0
        %5413 = vmatpush1.bf16.msra.mxu0 %v5387
        %5414 = vmatprep.subr.bf16.mxu0 0
        %5415 = vmatpush1.bf16.msra.mxu0 %v5388
        %5416 = vmatprep.subr.bf16.mxu0 0
        %5417 = vmatpush1.bf16.msra.mxu0 %v5389
        %5418 = vmatprep.subr.bf16.mxu0 0
        %5419 = vmatpush1.bf16.msra.mxu0 %v5390
        %5420 = vmatprep.subr.bf16.mxu0 0
        %5421 = vmatpush1.bf16.msra.mxu0 %v5391
        %5422 = vmatprep.subr.bf16.mxu0 0
        %5423 = vmatpush1.bf16.msra.mxu0 %v5406
        %5424 = vmatprep.subr.bf16.mxu0 0
        %5425 = vmatpush1.bf16.msra.mxu0 0
        %5426 = vmatprep.subr.bf16.mxu0 0
        %5427 = vmatpush1.bf16.msra.mxu0 0
        %5428 = vmatprep.subr.bf16.mxu0 0
        %5429 = vmatpush1.bf16.msra.mxu0 0
        %5430 = vmatprep.subr.bf16.mxu0 0
        %5431 = vmatpush1.bf16.msra.mxu0 0
        %5432 = vmatprep.subr.bf16.mxu0 0
        %5433 = vmatpush1.bf16.msra.mxu0 0
        %5434 = vmatprep.subr.bf16.mxu0 0
        %5435 = vmatpush1.bf16.msra.mxu0 0
        %5436 = vmatprep.subr.bf16.mxu0 0
        %5437 = vmatpush1.bf16.msra.mxu0 0
        %5438 = vmatprep.subr.bf16.mxu0 0
        %5439 = vmatpush1.bf16.msra.mxu0 0
        %5440 = vmatprep.mubr.bf16.mxu0 0
        %5441 = vmatmul.mubr.bf16.gmra.mrb[0].mxu0 %v5402
        %v5442 = vpop.f32.mrb[0].mxu0
        %v5443 = vadd.f32 %v5354, %v5442
        %v5444 = vpop.f32.mrb[0].mxu0
        %v5445 = vpop.f32.mrb[0].mxu0
        %v5446 = vpop.f32.mrb[0].mxu0
        %5447 = vdwg.mxu0
        %v5448 = vmax.f32 %v5443, 0.0
        %v5449 = vpack.c.bf16 %v5448, %v5448
        %v5450 = vld [vmem:[%s11] sm:$0xf]
        %v5451 = vld [vmem:[%s11 + $0x4] sm:$0xf]
        %v5452 = vld [vmem:[%s11 + $0x8] sm:$0xf]
        %v5453 = vld [vmem:[%s11 + $0xc] sm:$0xf]
        %v5454 = vld [vmem:[%s11 + $0x10] sm:$0xf]
        %v5455 = vld [vmem:[%s11 + $0x14] sm:$0xf]
        %v5456 = vld [vmem:[%s11 + $0x18] sm:$0xf]
        %v5457 = vld [vmem:[%s11 + $0x1c] sm:$0xf]
        %v5458 = vld [vmem:[%s11 + $0x20] sm:$0xf]
        %v5459 = vld [vmem:[%s11 + $0x24] sm:$0xf]
        %v5460 = vld [vmem:[%s11 + $0x28] sm:$0x3]
        %v5461 = vld [vmem:[#allocation10] sm:$0x1]
        %v5473 = vunpack.c.l.b16 %v5450
        %v5474 = vunpack.c.l.b16 %v5451
        %v5475 = vunpack.c.l.b16 %v5452
        %v5476 = vunpack.c.l.b16 %v5453
        %v5477 = vunpack.c.l.b16 %v5454
        %v5478 = vunpack.c.l.b16 %v5455
        %v5479 = vunpack.c.l.b16 %v5456
        %v5480 = vunpack.c.l.b16 %v5457
        %v5481 = vunpack.c.l.b16 %v5458
        %v5482 = vunpack.c.l.b16 %v5459
        %v5483 = vunpack.c.l.b16 %v5460
        %v5484 = vpack.c.b16 %v5474, %v5473
        %v5485 = vpack.c.b16 %v5476, %v5475
        %v5486 = vpack.c.b16 %v5478, %v5477
        %v5487 = vpack.c.b16 %v5480, %v5479
        %v5488 = vpack.c.b16 %v5482, %v5481
        %v5489 = vpack.c.b16 %v5483, %v5483
        %vm5495 = vcmask 687104
        %v5497 = vsel %vm5495, %v5449, 0
        %v5500 = vsel %vm2430, %v5489, 0
        %5502 = vmatprep.subr.bf16.mxu0 0
        %5503 = vmatpush1.bf16.msra.mxu0 %v5484
        %5504 = vmatprep.subr.bf16.mxu0 0
        %5505 = vmatpush1.bf16.msra.mxu0 %v5485
        %5506 = vmatprep.subr.bf16.mxu0 0
        %5507 = vmatpush1.bf16.msra.mxu0 %v5486
        %5508 = vmatprep.subr.bf16.mxu0 0
        %5509 = vmatpush1.bf16.msra.mxu0 %v5487
        %5510 = vmatprep.subr.bf16.mxu0 0
        %5511 = vmatpush1.bf16.msra.mxu0 %v5488
        %5512 = vmatprep.subr.bf16.mxu0 0
        %5513 = vmatpush1.bf16.msra.mxu0 %v5500
        %5514 = vmatprep.subr.bf16.mxu0 0
        %5515 = vmatpush1.bf16.msra.mxu0 0
        %5516 = vmatprep.subr.bf16.mxu0 0
        %5517 = vmatpush1.bf16.msra.mxu0 0
        %5518 = vmatprep.subr.bf16.mxu0 0
        %5519 = vmatpush1.bf16.msra.mxu0 0
        %5520 = vmatprep.subr.bf16.mxu0 0
        %5521 = vmatpush1.bf16.msra.mxu0 0
        %5522 = vmatprep.subr.bf16.mxu0 0
        %5523 = vmatpush1.bf16.msra.mxu0 0
        %5524 = vmatprep.subr.bf16.mxu0 0
        %5525 = vmatpush1.bf16.msra.mxu0 0
        %5526 = vmatprep.subr.bf16.mxu0 0
        %5527 = vmatpush1.bf16.msra.mxu0 0
        %5528 = vmatprep.subr.bf16.mxu0 0
        %5529 = vmatpush1.bf16.msra.mxu0 0
        %5530 = vmatprep.subr.bf16.mxu0 0
        %5531 = vmatpush1.bf16.msra.mxu0 0
        %5532 = vmatprep.subr.bf16.mxu0 0
        %5533 = vmatpush1.bf16.msra.mxu0 0
        %5534 = vmatprep.mubr.bf16.mxu0 0
        %5535 = vmatmul.mubr.bf16.gmra.mrb[0].mxu0 %v5497
        %v5536 = vpop.f32.mrb[0].mxu0
        %v5537 = vadd.f32 %v5461, %v5536
        %v5538 = vpop.f32.mrb[0].mxu0
        %v5539 = vpop.f32.mrb[0].mxu0
        %v5540 = vpop.f32.mrb[0].mxu0
        %5541 = vdwg.mxu0
        %vm5542 = vcmask 49152
        %5543 = vst.msk [vmem:[%s503] sm:$0x1] %vm5542, %v5537
        %s5544 = sand.u32 %s316, 1
        %s5545 = scalar_lea.sflag [#allocation4], %s5544
        %s5546 = sand.u32 %s316, 1
        %s5547 = scalar_lea.vmem [#allocation11], %s5546
        // Predicated region
        $region93: #{net_forward.1} parent=71 // pred_check
          %p5548 = pneg %p326
        $region94: #{net_forward.1} parent=71 // pred_check_branch
          %5550 = sbr.rel (%p5548) target = $region96
        $region95: #{net_forward.1} parent=71 // pred_region
          %s5552 = ssub.s32 16, 16
          %5553 = vsyncadd %s5545, %s5552
          %s5554 = smul.addr %s30, 16
          %s5555 = scalar_lea.hbm %s13, %s5554
          %s5557 = sshll.u32 %s5547, 4
          %s5558 = int_to_ptr.vmem [resolvable:$true] %s5557
          %5560 = dma.vmem_to_hbm [thread:$0]  %s5558, 16, %s5555, %s5545
        $region96: #{net_forward.1} parent=71 // pred_fallthru
          _
      $region72: #{net_forward.1} parent=5 // pred_fallthru
        _
      %p5561 = scmp.le.s32.totalorder 2, %s25
      // Predicated region
      $region97: #{net_forward.1} parent=5 // pred_check
        %p5562 = pneg %p5561
      $region98: #{net_forward.1} parent=5 // pred_check_branch
        %5564 = sbr.rel (%p5562) target = $region100
      $region99: #{net_forward.1} parent=5 // pred_region
        %s5565 = ssub.s32 %s25, 2
        // Predicated region
        $region101: #{net_forward.1} parent=99 // pred_check
          %p5566 = pneg %p332
        $region102: #{net_forward.1} parent=99 // pred_check_branch
          %5568 = sbr.rel (%p5566) target = $region104
        $region103: #{net_forward.1} parent=99 // pred_region
          %s5569 = sand.u32 %s317, 1
          %s5570 = scalar_lea.sflag [#allocation4], %s5569
          %s5571 = sand.u32 %s317, 1
          %s5572 = scalar_lea.vmem [#allocation11], %s5571
          %5573 = dma.done %s5570, 16
        $region104: #{net_forward.1} parent=99 // pred_fallthru
          _
      $region100: #{net_forward.1} parent=5 // pred_fallthru
        _
    $region6: #{net_forward.1} parent=1 // loop_footer
      %s29 = sadd.s32 1, %s25
    $region7: #{net_forward.1} parent=1 // loop_footer_branch
      %24 = sbr.rel target = $region3
    $region8: #{net_forward.1} parent=1 // loop_exit
      _
    %5574 = vsyncpa [#allocation3], 1
    %s5575 = scalar_lea.sflag [#allocation3], 1
    %5576 = vsyncpa %s5575, 1
    %5577 = vsyncpa [#allocation6], 1
    %5578 = vsyncpa [#allocation9], 1
    %5579 = vsyncpa [#allocation4], 1
    %s5580 = scalar_lea.sflag [#allocation4], 1
    %5581 = vsyncpa %s5580, 1

</llo_original>
